<compile_context>
chip_gen: v7x
topology: tpu7x:2x2x1
jax: 0.10.0
libtpu: 0.0.40
codegen_flags: <defaults>
</compile_context>

<pallas_src>
import functools

import numpy as np
import jax
import jax.numpy as jnp
from jax import lax
from jax.experimental import pallas as pl
from jax.experimental.pallas import tpu as pltpu


# ----------------------------------------------------------------------------
# Fused kernel: [Conv(K, same-pad) + bias + ReLU + MaxPool2x2]*L -> flatten -> MLP
# One grid program == one batch element.
# ----------------------------------------------------------------------------
def _make_fused_kernel(conv_dims, lin_dims, K, H, W):
    """conv_dims: [(Cin, Cout), ...]; lin_dims: [(din, dout), ...]."""
    n_conv = len(conv_dims)
    n_lin = len(lin_dims)
    p = (K - 1) // 2

    def kernel(*refs):
        i = 0
        x_ref = refs[i]; i += 1
        conv_w = [(refs[i + 2 * l], refs[i + 2 * l + 1]) for l in range(n_conv)]
        i += 2 * n_conv
        lin_w = [(refs[i + 2 * l], refs[i + 2 * l + 1]) for l in range(n_lin)]
        i += 2 * n_lin
        out_ref = refs[i]
        feat_ref = refs[i + 1]
        i += 2
        pad_refs = refs[i:i + n_conv]; i += n_conv     # zero-padded image scratch
        im_refs = refs[i:i + n_conv]; i += n_conv      # im2col scratch
        flat_ref = refs[i]                             # (1, flat_dim) scratch

        # ---------------- conv stack ----------------
        y = x_ref[...]                                 # (H, W, Cin) f32
        hi, wi = H, W
        for l in range(n_conv):
            cin, cout = conv_dims[l]
            pad_ref, im_ref = pad_refs[l], im_refs[l]
            w_ref, b_ref = conv_w[l]

            # in-kernel zero padding (no XLA pad op / HBM round trip)
            pad_ref[...] = jnp.zeros(pad_ref.shape, pad_ref.dtype)
            pad_ref[p:p + hi, p:p + wi, :] = y

            # im2col into VMEM scratch -> single (K*K*Cin)-deep contraction
            for kh in range(K):
                for kw in range(K):
                    t = kh * K + kw
                    win = pad_ref[kh:kh + hi, kw:kw + wi, :]          # (hi, wi, cin)
                    im_ref[:, t * cin:(t + 1) * cin] = win.reshape(hi * wi, cin)

            # one MXU matmul per conv layer: bf16 inputs, f32 accumulation
            acc = jnp.dot(im_ref[...].astype(jnp.bfloat16),
                          w_ref[...].astype(jnp.bfloat16),
                          preferred_element_type=jnp.float32)         # (hi*wi, cout)
            acc = jnp.maximum(acc + b_ref[...], 0.0)                  # bias + ReLU (f32)

            # 2x2 max pool, stride 2 (channel/lane dim untouched by the reshapes)
            z = acc.reshape(hi, wi // 2, 2, cout)
            z = jnp.max(z, axis=2)                                    # pool over W
            z = z.reshape(hi // 2, 2, wi // 2, cout)
            y = jnp.maximum(z[:, 0], z[:, 1])                         # pool over H
            hi //= 2
            wi //= 2

        # -------- flatten in torch's (C, H, W) order == conv_out.view(batch, -1) -----
        c_last = conv_dims[-1][1]
        s = hi * wi
        yr = y.reshape(s, c_last)         # (H*W, C) -- lane-preserving reshape
        yt = jnp.transpose(yr)            # (C, H*W) -- small 2-D transpose (XLU)
        for c in range(c_last):           # lay rows out contiguously -> lane-dense row
            flat_ref[:, c * s:(c + 1) * s] = yt[c:c + 1, :]
        h = flat_ref[...]                 # (1, flat_dim)

        # ---------------- MLP (features = input of the last Linear) ----------------
        for l in range(n_lin):
            w_ref, b_ref = lin_w[l]
            if l == n_lin - 1:
                feat_ref[...] = h
            h = jnp.dot(h.astype(jnp.bfloat16), w_ref[...].astype(jnp.bfloat16),
                        preferred_element_type=jnp.float32) + b_ref[...]
            if l < n_lin - 1:
                h = jnp.maximum(h, 0.0)
        out_ref[...] = h

    return kernel


# ----------------------------------------------------------------------------
# Wrapper: one pallas_call for the entire forward pass.
# ----------------------------------------------------------------------------
def conv_lin_seq_forward(x_nchw, conv_params, lin_params, kernel_dim):
    B, Cin, H, W = x_nchw.shape
    K = kernel_dim
    assert K % 2 == 1, "same-padding conv assumes odd kernel_dim"
    p = (K - 1) // 2

    # single layout conversion at the PyTorch boundary (NCHW -> NHWC)
    x_nhwc = jnp.transpose(x_nchw, (0, 2, 3, 1))

    conv_dims, conv_args, pad_scratch, im_scratch = [], [], [], []
    hi, wi, cprev = H, W, Cin
    for (w, b) in conv_params:                         # w: (K, K, Cin, Cout)  (HWIO)
        cout = w.shape[-1]
        conv_dims.append((cprev, cout))
        conv_args += [w.reshape(K * K * cprev, cout), b.reshape(1, cout)]
        pad_scratch.append(pltpu.VMEM((hi + 2 * p, wi + 2 * p, cprev), jnp.float32))
        im_scratch.append(pltpu.VMEM((hi * wi, K * K * cprev), jnp.float32))
        assert hi % 2 == 0 and wi % 2 == 0, "MaxPool2d(2) assumes even spatial dims"
        hi //= 2
        wi //= 2
        cprev = cout

    flat_dim = cprev * hi * wi
    lin_dims = [w.shape for (w, _) in lin_params]
    lin_args = []
    for (w, b) in lin_params:
        lin_args += [w, b.reshape(1, -1)]
    out_dim = lin_dims[-1][1]
    feat_dim = lin_dims[-1][0]

    kernel = _make_fused_kernel(conv_dims, lin_dims, K, H, W)

    def _whole_spec(shape):                 # whole array in VMEM, same block every step
        zeros = (0,) * len(shape)
        return pl.BlockSpec(shape, lambda b: zeros)

    in_specs = [pl.BlockSpec((None, H, W, Cin), lambda b: (b, 0, 0, 0))]
    in_specs += [_whole_spec(a.shape) for a in conv_args + lin_args]

    out_specs = (pl.BlockSpec((None, 1, out_dim), lambda b: (b, 0, 0)),
                 pl.BlockSpec((None, 1, feat_dim), lambda b: (b, 0, 0)))

    out, feat = pl.pallas_call(
        kernel,
        grid=(B,),
        out_shape=(jax.ShapeDtypeStruct((B, 1, out_dim), jnp.float32),
                   jax.ShapeDtypeStruct((B, 1, feat_dim), jnp.float32)),
        in_specs=in_specs,
        out_specs=out_specs,
        scratch_shapes=pad_scratch + im_scratch
                       + [pltpu.VMEM((1, flat_dim), jnp.float32)],
        compiler_params=pltpu.CompilerParams(
            dimension_semantics=("parallel",),   # batch sharded across v7x's 2 TCs
        ),
    )(x_nhwc, *conv_args, *lin_args)
    return out[:, 0, :], feat[:, 0, :]


# ----------------------------------------------------------------------------
# Deterministic parameter initialization (synthetic; shapes follow the module)
# ----------------------------------------------------------------------------
def init_params(key, input_dims, output_dim, linear_hidden_dims, kernel_dim,
                conv_hidden_dims):
    H, W, C = input_dims
    dims = [C] + list(conv_hidden_dims)
    conv_params = []
    for i in range(len(dims) - 1):
        key, k1, k2 = jax.random.split(key, 3)
        fan_in = kernel_dim * kernel_dim * dims[i]
        w = jax.random.normal(k1, (kernel_dim, kernel_dim, dims[i], dims[i + 1]),
                              jnp.float32) / np.sqrt(fan_in)
        b = jax.random.normal(k2, (dims[i + 1],), jnp.float32) * 0.01
        conv_params.append((w, b))

    L = len(conv_hidden_dims)
    flat_dim = conv_hidden_dims[-1] * (H // 2 ** L) * (W // 2 ** L)
    ldims = [flat_dim] + list(linear_hidden_dims) + [output_dim]
    lin_params = []
    for i in range(len(ldims) - 1):
        key, k1, k2 = jax.random.split(key, 3)
        w = jax.random.normal(k1, (ldims[i], ldims[i + 1]),
                              jnp.float32) / np.sqrt(ldims[i])
        b = jax.random.normal(k2, (ldims[i + 1],), jnp.float32) * 0.01
        lin_params.append((w, b))
    return conv_params, lin_params


# ----------------------------------------------------------------------------
# XLA reference.  matmul_dtype=bf16 matches the kernel's MXU-boundary numerics
# exactly (f32 accumulation); matmul_dtype=f32 gives a full-precision sanity ref.
# ----------------------------------------------------------------------------
def _ref_forward(x_nchw, conv_params, lin_params, kernel_dim,
                 matmul_dtype=jnp.bfloat16):
    p = (kernel_dim - 1) // 2
    x = jnp.transpose(x_nchw, (0, 2, 3, 1))
    for (w, b) in conv_params:
        x = lax.conv_general_dilated(
            x.astype(matmul_dtype), w.astype(matmul_dtype), (1, 1), [(p, p), (p, p)],
            dimension_numbers=("NHWC", "HWIO", "NHWC"),
            preferred_element_type=jnp.float32)
        x = jnp.maximum(x + b, 0.0)
        x = lax.reduce_window(x, -jnp.inf, lax.max, (1, 2, 2, 1), (1, 2, 2, 1),
                              "VALID")
    B = x.shape[0]
    h = jnp.transpose(x, (0, 3, 1, 2)).reshape(B, -1)   # torch view(batch, -1) order
    feat = h
    for i, (w, b) in enumerate(lin_params):
        if i == len(lin_params) - 1:
            feat = h
        h = jnp.dot(h.astype(matmul_dtype), w.astype(matmul_dtype),
                    preferred_element_type=jnp.float32) + b
        if i < len(lin_params) - 1:
            h = jnp.maximum(h, 0.0)
    return h, feat


if __name__ == "__main__":
    # Module hyper-parameters (small, consistent with ConvLinSeq.__init__):
    input_dims = (16, 16, 4)        # (H, W, C) -- input_dims[2] is channel_dim
    output_dim = 10
    linear_hidden_dims = [32]
    conv_hidden_dims = [8, 16]
    kernel_dim = 3
    batch = 2                       # p_drop = None -> exact match with reference

    key = jax.random.PRNGKey(0)
    key, kx = jax.random.split(key)
    # PyTorch conv input is NCHW.
    x = jax.random.normal(
        kx, (batch, input_dims[2], input_dims[0], input_dims[1]), jnp.float32)

    conv_params, lin_params = init_params(
        key, input_dims, output_dim, linear_hidden_dims, kernel_dim,
        conv_hidden_dims)

    fwd = jax.jit(functools.partial(conv_lin_seq_forward, kernel_dim=kernel_dim))
    output, features = fwd(x, conv_params, lin_params)
    jax.block_until_ready((output, features))

    # Tight check vs. a numerics-matched reference (bf16 at the MXU, f32 accumulate).
    ref_out, ref_feat = _ref_forward(x, conv_params, lin_params, kernel_dim,
                                     matmul_dtype=jnp.bfloat16)
    np.testing.assert_allclose(np.asarray(output), np.asarray(ref_out),
                               rtol=5e-3, atol=5e-3)
    np.testing.assert_allclose(np.asarray(features), np.asarray(ref_feat),
                               rtol=5e-3, atol=5e-3)

    # Loose sanity check vs. a float32 reference (bounds the bf16-cast error).
    ref_out32, ref_feat32 = _ref_forward(x, conv_params, lin_params, kernel_dim,
                                         matmul_dtype=jnp.float32)
    np.testing.assert_allclose(np.asarray(output), np.asarray(ref_out32),
                               rtol=5e-2, atol=5e-2)
    np.testing.assert_allclose(np.asarray(features), np.asarray(ref_feat32),
                               rtol=5e-2, atol=5e-2)

    print("KERNEL_OK")
</pallas_src>

<mosaic_0001>
module attributes {stable_mosaic.version = 11 : i64} {
  func.func @kernel(%arg0: i32, %arg1: memref<1x16x16x4xf32, #tpu.memory_space<vmem>>, %arg2: memref<36x8xf32, #tpu.memory_space<vmem>>, %arg3: memref<1x8xf32, #tpu.memory_space<vmem>>, %arg4: memref<72x16xf32, #tpu.memory_space<vmem>>, %arg5: memref<1x16xf32, #tpu.memory_space<vmem>>, %arg6: memref<256x32xf32, #tpu.memory_space<vmem>>, %arg7: memref<1x32xf32, #tpu.memory_space<vmem>>, %arg8: memref<32x10xf32, #tpu.memory_space<vmem>>, %arg9: memref<1x10xf32, #tpu.memory_space<vmem>>, %arg10: memref<1x1x10xf32, #tpu.memory_space<vmem>>, %arg11: memref<1x1x32xf32, #tpu.memory_space<vmem>>, %arg12: memref<18x18x4xf32, #tpu.memory_space<vmem>>, %arg13: memref<10x10x8xf32, #tpu.memory_space<vmem>>, %arg14: memref<256x36xf32, #tpu.memory_space<vmem>>, %arg15: memref<64x72xf32, #tpu.memory_space<vmem>>, %arg16: memref<1x256xf32, #tpu.memory_space<vmem>>) attributes {dimension_semantics = [#tpu.dimension_semantics<parallel>], iteration_bounds = array<i64: 2>, scalar_prefetch = 0 : i64, scratch_operands = 5 : i64, tpu.core_type = #tpu.core_type<tc>, window_params = [{transform_indices = @transform_0, window_bounds = array<i64: 1, 16, 16, 4>}, {pipeline_mode = #tpu.pipeline_mode<synchronous>, transform_indices = @transform_1, window_bounds = array<i64: 36, 8>}, {pipeline_mode = #tpu.pipeline_mode<synchronous>, transform_indices = @transform_2, window_bounds = array<i64: 1, 8>}, {pipeline_mode = #tpu.pipeline_mode<synchronous>, transform_indices = @transform_3, window_bounds = array<i64: 72, 16>}, {pipeline_mode = #tpu.pipeline_mode<synchronous>, transform_indices = @transform_4, window_bounds = array<i64: 1, 16>}, {pipeline_mode = #tpu.pipeline_mode<synchronous>, transform_indices = @transform_5, window_bounds = array<i64: 256, 32>}, {pipeline_mode = #tpu.pipeline_mode<synchronous>, transform_indices = @transform_6, window_bounds = array<i64: 1, 32>}, {pipeline_mode = #tpu.pipeline_mode<synchronous>, transform_indices = @transform_7, window_bounds = array<i64: 32, 10>}, {pipeline_mode = #tpu.pipeline_mode<synchronous>, transform_indices = @transform_8, window_bounds = array<i64: 1, 10>}, {transform_indices = @transform_9, window_bounds = array<i64: 1, 1, 10>}, {transform_indices = @transform_10, window_bounds = array<i64: 1, 1, 32>}]} {
    %c0 = arith.constant 0 : index
    %c0_0 = arith.constant 0 : index
    %c0_1 = arith.constant 0 : index
    %c0_2 = arith.constant 0 : index
    %0 = vector.load %arg1[%c0, %c0_0, %c0_1, %c0_2] : memref<1x16x16x4xf32, #tpu.memory_space<vmem>>, vector<1x16x16x4xf32>
    %1 = vector.shape_cast %0 : vector<1x16x16x4xf32> to vector<16x16x4xf32>
    %cst = arith.constant 0.000000e+00 : f32
    %2 = vector.broadcast %cst : f32 to vector<18x18x4xf32>
    %c0_3 = arith.constant 0 : index
    %c0_4 = arith.constant 0 : index
    %c0_5 = arith.constant 0 : index
    %3 = vector.load %arg12[%c0_3, %c0_4, %c0_5] : memref<18x18x4xf32, #tpu.memory_space<vmem>>, vector<18x18x4xf32>
    tpu.vector_store %arg12[%c0_3, %c0_4, %c0_5], %2 {strides = array<i32>} : memref<18x18x4xf32, #tpu.memory_space<vmem>>, vector<18x18x4xf32>,
    %c1 = arith.constant 1 : index
    %c1_6 = arith.constant 1 : index
    %c0_7 = arith.constant 0 : index
    %4 = vector.load %arg12[%c1, %c1_6, %c0_7] : memref<18x18x4xf32, #tpu.memory_space<vmem>>, vector<16x16x4xf32>
    tpu.vector_store %arg12[%c1, %c1_6, %c0_7], %1 {strides = array<i32>} : memref<18x18x4xf32, #tpu.memory_space<vmem>>, vector<16x16x4xf32>,
    %c0_8 = arith.constant 0 : index
    %c0_9 = arith.constant 0 : index
    %c0_10 = arith.constant 0 : index
    %5 = vector.load %arg12[%c0_8, %c0_9, %c0_10] : memref<18x18x4xf32, #tpu.memory_space<vmem>>, vector<16x16x4xf32>
    %6 = vector.shape_cast %5 : vector<16x16x4xf32> to vector<256x4xf32>
    %c0_11 = arith.constant 0 : index
    %c0_12 = arith.constant 0 : index
    %7 = vector.load %arg14[%c0_11, %c0_12] : memref<256x36xf32, #tpu.memory_space<vmem>>, vector<256x4xf32>
    tpu.vector_store %arg14[%c0_11, %c0_12], %6 {strides = array<i32>} : memref<256x36xf32, #tpu.memory_space<vmem>>, vector<256x4xf32>,
    %c0_13 = arith.constant 0 : index
    %c1_14 = arith.constant 1 : index
    %c0_15 = arith.constant 0 : index
    %8 = vector.load %arg12[%c0_13, %c1_14, %c0_15] : memref<18x18x4xf32, #tpu.memory_space<vmem>>, vector<16x16x4xf32>
    %9 = vector.shape_cast %8 : vector<16x16x4xf32> to vector<256x4xf32>
    %c0_16 = arith.constant 0 : index
    %c4 = arith.constant 4 : index
    %10 = vector.load %arg14[%c0_16, %c4] : memref<256x36xf32, #tpu.memory_space<vmem>>, vector<256x4xf32>
    tpu.vector_store %arg14[%c0_16, %c4], %9 {strides = array<i32>} : memref<256x36xf32, #tpu.memory_space<vmem>>, vector<256x4xf32>,
    %c0_17 = arith.constant 0 : index
    %c2 = arith.constant 2 : index
    %c0_18 = arith.constant 0 : index
    %11 = vector.load %arg12[%c0_17, %c2, %c0_18] : memref<18x18x4xf32, #tpu.memory_space<vmem>>, vector<16x16x4xf32>
    %12 = vector.shape_cast %11 : vector<16x16x4xf32> to vector<256x4xf32>
    %c0_19 = arith.constant 0 : index
    %c8 = arith.constant 8 : index
    %13 = vector.load %arg14[%c0_19, %c8] : memref<256x36xf32, #tpu.memory_space<vmem>>, vector<256x4xf32>
    tpu.vector_store %arg14[%c0_19, %c8], %12 {strides = array<i32>} : memref<256x36xf32, #tpu.memory_space<vmem>>, vector<256x4xf32>,
    %c1_20 = arith.constant 1 : index
    %c0_21 = arith.constant 0 : index
    %c0_22 = arith.constant 0 : index
    %14 = vector.load %arg12[%c1_20, %c0_21, %c0_22] : memref<18x18x4xf32, #tpu.memory_space<vmem>>, vector<16x16x4xf32>
    %15 = vector.shape_cast %14 : vector<16x16x4xf32> to vector<256x4xf32>
    %c0_23 = arith.constant 0 : index
    %c12 = arith.constant 12 : index
    %16 = vector.load %arg14[%c0_23, %c12] : memref<256x36xf32, #tpu.memory_space<vmem>>, vector<256x4xf32>
    tpu.vector_store %arg14[%c0_23, %c12], %15 {strides = array<i32>} : memref<256x36xf32, #tpu.memory_space<vmem>>, vector<256x4xf32>,
    %c1_24 = arith.constant 1 : index
    %c1_25 = arith.constant 1 : index
    %c0_26 = arith.constant 0 : index
    %17 = vector.load %arg12[%c1_24, %c1_25, %c0_26] : memref<18x18x4xf32, #tpu.memory_space<vmem>>, vector<16x16x4xf32>
    %18 = vector.shape_cast %17 : vector<16x16x4xf32> to vector<256x4xf32>
    %c0_27 = arith.constant 0 : index
    %c16 = arith.constant 16 : index
    %19 = vector.load %arg14[%c0_27, %c16] : memref<256x36xf32, #tpu.memory_space<vmem>>, vector<256x4xf32>
    tpu.vector_store %arg14[%c0_27, %c16], %18 {strides = array<i32>} : memref<256x36xf32, #tpu.memory_space<vmem>>, vector<256x4xf32>,
    %c1_28 = arith.constant 1 : index
    %c2_29 = arith.constant 2 : index
    %c0_30 = arith.constant 0 : index
    %20 = vector.load %arg12[%c1_28, %c2_29, %c0_30] : memref<18x18x4xf32, #tpu.memory_space<vmem>>, vector<16x16x4xf32>
    %21 = vector.shape_cast %20 : vector<16x16x4xf32> to vector<256x4xf32>
    %c0_31 = arith.constant 0 : index
    %c20 = arith.constant 20 : index
    %22 = vector.load %arg14[%c0_31, %c20] : memref<256x36xf32, #tpu.memory_space<vmem>>, vector<256x4xf32>
    tpu.vector_store %arg14[%c0_31, %c20], %21 {strides = array<i32>} : memref<256x36xf32, #tpu.memory_space<vmem>>, vector<256x4xf32>,
    %c2_32 = arith.constant 2 : index
    %c0_33 = arith.constant 0 : index
    %c0_34 = arith.constant 0 : index
    %23 = vector.load %arg12[%c2_32, %c0_33, %c0_34] : memref<18x18x4xf32, #tpu.memory_space<vmem>>, vector<16x16x4xf32>
    %24 = vector.shape_cast %23 : vector<16x16x4xf32> to vector<256x4xf32>
    %c0_35 = arith.constant 0 : index
    %c24 = arith.constant 24 : index
    %25 = vector.load %arg14[%c0_35, %c24] : memref<256x36xf32, #tpu.memory_space<vmem>>, vector<256x4xf32>
    tpu.vector_store %arg14[%c0_35, %c24], %24 {strides = array<i32>} : memref<256x36xf32, #tpu.memory_space<vmem>>, vector<256x4xf32>,
    %c2_36 = arith.constant 2 : index
    %c1_37 = arith.constant 1 : index
    %c0_38 = arith.constant 0 : index
    %26 = vector.load %arg12[%c2_36, %c1_37, %c0_38] : memref<18x18x4xf32, #tpu.memory_space<vmem>>, vector<16x16x4xf32>
    %27 = vector.shape_cast %26 : vector<16x16x4xf32> to vector<256x4xf32>
    %c0_39 = arith.constant 0 : index
    %c28 = arith.constant 28 : index
    %28 = vector.load %arg14[%c0_39, %c28] : memref<256x36xf32, #tpu.memory_space<vmem>>, vector<256x4xf32>
    tpu.vector_store %arg14[%c0_39, %c28], %27 {strides = array<i32>} : memref<256x36xf32, #tpu.memory_space<vmem>>, vector<256x4xf32>,
    %c2_40 = arith.constant 2 : index
    %c2_41 = arith.constant 2 : index
    %c0_42 = arith.constant 0 : index
    %29 = vector.load %arg12[%c2_40, %c2_41, %c0_42] : memref<18x18x4xf32, #tpu.memory_space<vmem>>, vector<16x16x4xf32>
    %30 = vector.shape_cast %29 : vector<16x16x4xf32> to vector<256x4xf32>
    %c0_43 = arith.constant 0 : index
    %c32 = arith.constant 32 : index
    %31 = vector.load %arg14[%c0_43, %c32] : memref<256x36xf32, #tpu.memory_space<vmem>>, vector<256x4xf32>
    tpu.vector_store %arg14[%c0_43, %c32], %30 {strides = array<i32>} : memref<256x36xf32, #tpu.memory_space<vmem>>, vector<256x4xf32>,
    %c0_44 = arith.constant 0 : index
    %c0_45 = arith.constant 0 : index
    %32 = vector.load %arg14[%c0_44, %c0_45] : memref<256x36xf32, #tpu.memory_space<vmem>>, vector<256x36xf32>
    %33 = arith.truncf %32 : vector<256x36xf32> to vector<256x36xbf16>
    %c0_46 = arith.constant 0 : index
    %c0_47 = arith.constant 0 : index
    %34 = vector.load %arg2[%c0_46, %c0_47] : memref<36x8xf32, #tpu.memory_space<vmem>>, vector<36x8xf32>
    %35 = arith.truncf %34 : vector<36x8xf32> to vector<36x8xbf16>
    %cst_48 = arith.constant dense<0.000000e+00> : vector<256x8xf32>
    %36 = tpu.matmul %33, %35, %cst_48 {dimension_numbers = #tpu.dot_dimension_numbers<[1], [0], [0], [1], [0, 0, 1, 1], [], []>} : vector<256x36xbf16>, vector<36x8xbf16>, vector<256x8xf32> -> vector<256x8xf32>
    %c0_49 = arith.constant 0 : index
    %c0_50 = arith.constant 0 : index
    %37 = vector.load %arg3[%c0_49, %c0_50] : memref<1x8xf32, #tpu.memory_space<vmem>>, vector<1x8xf32>
    %38 = vector.broadcast %37 : vector<1x8xf32> to vector<256x8xf32>
    %39 = arith.addf %36, %38 : vector<256x8xf32>
    %cst_51 = arith.constant 0.000000e+00 : f32
    %40 = vector.broadcast %cst_51 : f32 to vector<256x8xf32>
    %41 = arith.maximumf %39, %40 : vector<256x8xf32>
    %42 = vector.shape_cast %41 : vector<256x8xf32> to vector<16x8x2x8xf32>
    %cst_52 = arith.constant dense<0xFF800000> : vector<16x8x8xf32>
    %43 = vector.multi_reduction <maximumf>, %42, %cst_52 [2] : vector<16x8x2x8xf32> to vector<16x8x8xf32>
    %44 = vector.shape_cast %43 : vector<16x8x8xf32> to vector<8x2x8x8xf32>
    %45 = vector.extract_strided_slice %44 {offsets = [0, 0, 0, 0], sizes = [8, 1, 8, 8], strides = [1, 1, 1, 1]} : vector<8x2x8x8xf32> to vector<8x1x8x8xf32>
    %46 = vector.shape_cast %45 : vector<8x1x8x8xf32> to vector<8x8x8xf32>
    %47 = vector.extract_strided_slice %44 {offsets = [0, 1, 0, 0], sizes = [8, 1, 8, 8], strides = [1, 1, 1, 1]} : vector<8x2x8x8xf32> to vector<8x1x8x8xf32>
    %48 = vector.shape_cast %47 : vector<8x1x8x8xf32> to vector<8x8x8xf32>
    %49 = arith.maximumf %46, %48 : vector<8x8x8xf32>
    %cst_53 = arith.constant 0.000000e+00 : f32
    %50 = vector.broadcast %cst_53 : f32 to vector<10x10x8xf32>
    %c0_54 = arith.constant 0 : index
    %c0_55 = arith.constant 0 : index
    %c0_56 = arith.constant 0 : index
    %51 = vector.load %arg13[%c0_54, %c0_55, %c0_56] : memref<10x10x8xf32, #tpu.memory_space<vmem>>, vector<10x10x8xf32>
    tpu.vector_store %arg13[%c0_54, %c0_55, %c0_56], %50 {strides = array<i32>} : memref<10x10x8xf32, #tpu.memory_space<vmem>>, vector<10x10x8xf32>,
    %c1_57 = arith.constant 1 : index
    %c1_58 = arith.constant 1 : index
    %c0_59 = arith.constant 0 : index
    %52 = vector.load %arg13[%c1_57, %c1_58, %c0_59] : memref<10x10x8xf32, #tpu.memory_space<vmem>>, vector<8x8x8xf32>
    tpu.vector_store %arg13[%c1_57, %c1_58, %c0_59], %49 {strides = array<i32>} : memref<10x10x8xf32, #tpu.memory_space<vmem>>, vector<8x8x8xf32>,
    %c0_60 = arith.constant 0 : index
    %c0_61 = arith.constant 0 : index
    %c0_62 = arith.constant 0 : index
    %53 = vector.load %arg13[%c0_60, %c0_61, %c0_62] : memref<10x10x8xf32, #tpu.memory_space<vmem>>, vector<8x8x8xf32>
    %54 = vector.shape_cast %53 : vector<8x8x8xf32> to vector<64x8xf32>
    %c0_63 = arith.constant 0 : index
    %c0_64 = arith.constant 0 : index
    %55 = vector.load %arg15[%c0_63, %c0_64] : memref<64x72xf32, #tpu.memory_space<vmem>>, vector<64x8xf32>
    tpu.vector_store %arg15[%c0_63, %c0_64], %54 {strides = array<i32>} : memref<64x72xf32, #tpu.memory_space<vmem>>, vector<64x8xf32>,
    %c0_65 = arith.constant 0 : index
    %c1_66 = arith.constant 1 : index
    %c0_67 = arith.constant 0 : index
    %56 = vector.load %arg13[%c0_65, %c1_66, %c0_67] : memref<10x10x8xf32, #tpu.memory_space<vmem>>, vector<8x8x8xf32>
    %57 = vector.shape_cast %56 : vector<8x8x8xf32> to vector<64x8xf32>
    %c0_68 = arith.constant 0 : index
    %c8_69 = arith.constant 8 : index
    %58 = vector.load %arg15[%c0_68, %c8_69] : memref<64x72xf32, #tpu.memory_space<vmem>>, vector<64x8xf32>
    tpu.vector_store %arg15[%c0_68, %c8_69], %57 {strides = array<i32>} : memref<64x72xf32, #tpu.memory_space<vmem>>, vector<64x8xf32>,
    %c0_70 = arith.constant 0 : index
    %c2_71 = arith.constant 2 : index
    %c0_72 = arith.constant 0 : index
    %59 = vector.load %arg13[%c0_70, %c2_71, %c0_72] : memref<10x10x8xf32, #tpu.memory_space<vmem>>, vector<8x8x8xf32>
    %60 = vector.shape_cast %59 : vector<8x8x8xf32> to vector<64x8xf32>
    %c0_73 = arith.constant 0 : index
    %c16_74 = arith.constant 16 : index
    %61 = vector.load %arg15[%c0_73, %c16_74] : memref<64x72xf32, #tpu.memory_space<vmem>>, vector<64x8xf32>
    tpu.vector_store %arg15[%c0_73, %c16_74], %60 {strides = array<i32>} : memref<64x72xf32, #tpu.memory_space<vmem>>, vector<64x8xf32>,
    %c1_75 = arith.constant 1 : index
    %c0_76 = arith.constant 0 : index
    %c0_77 = arith.constant 0 : index
    %62 = vector.load %arg13[%c1_75, %c0_76, %c0_77] : memref<10x10x8xf32, #tpu.memory_space<vmem>>, vector<8x8x8xf32>
    %63 = vector.shape_cast %62 : vector<8x8x8xf32> to vector<64x8xf32>
    %c0_78 = arith.constant 0 : index
    %c24_79 = arith.constant 24 : index
    %64 = vector.load %arg15[%c0_78, %c24_79] : memref<64x72xf32, #tpu.memory_space<vmem>>, vector<64x8xf32>
    tpu.vector_store %arg15[%c0_78, %c24_79], %63 {strides = array<i32>} : memref<64x72xf32, #tpu.memory_space<vmem>>, vector<64x8xf32>,
    %c1_80 = arith.constant 1 : index
    %c1_81 = arith.constant 1 : index
    %c0_82 = arith.constant 0 : index
    %65 = vector.load %arg13[%c1_80, %c1_81, %c0_82] : memref<10x10x8xf32, #tpu.memory_space<vmem>>, vector<8x8x8xf32>
    %66 = vector.shape_cast %65 : vector<8x8x8xf32> to vector<64x8xf32>
    %c0_83 = arith.constant 0 : index
    %c32_84 = arith.constant 32 : index
    %67 = vector.load %arg15[%c0_83, %c32_84] : memref<64x72xf32, #tpu.memory_space<vmem>>, vector<64x8xf32>
    tpu.vector_store %arg15[%c0_83, %c32_84], %66 {strides = array<i32>} : memref<64x72xf32, #tpu.memory_space<vmem>>, vector<64x8xf32>,
    %c1_85 = arith.constant 1 : index
    %c2_86 = arith.constant 2 : index
    %c0_87 = arith.constant 0 : index
    %68 = vector.load %arg13[%c1_85, %c2_86, %c0_87] : memref<10x10x8xf32, #tpu.memory_space<vmem>>, vector<8x8x8xf32>
    %69 = vector.shape_cast %68 : vector<8x8x8xf32> to vector<64x8xf32>
    %c0_88 = arith.constant 0 : index
    %c40 = arith.constant 40 : index
    %70 = vector.load %arg15[%c0_88, %c40] : memref<64x72xf32, #tpu.memory_space<vmem>>, vector<64x8xf32>
    tpu.vector_store %arg15[%c0_88, %c40], %69 {strides = array<i32>} : memref<64x72xf32, #tpu.memory_space<vmem>>, vector<64x8xf32>,
    %c2_89 = arith.constant 2 : index
    %c0_90 = arith.constant 0 : index
    %c0_91 = arith.constant 0 : index
    %71 = vector.load %arg13[%c2_89, %c0_90, %c0_91] : memref<10x10x8xf32, #tpu.memory_space<vmem>>, vector<8x8x8xf32>
    %72 = vector.shape_cast %71 : vector<8x8x8xf32> to vector<64x8xf32>
    %c0_92 = arith.constant 0 : index
    %c48 = arith.constant 48 : index
    %73 = vector.load %arg15[%c0_92, %c48] : memref<64x72xf32, #tpu.memory_space<vmem>>, vector<64x8xf32>
    tpu.vector_store %arg15[%c0_92, %c48], %72 {strides = array<i32>} : memref<64x72xf32, #tpu.memory_space<vmem>>, vector<64x8xf32>,
    %c2_93 = arith.constant 2 : index
    %c1_94 = arith.constant 1 : index
    %c0_95 = arith.constant 0 : index
    %74 = vector.load %arg13[%c2_93, %c1_94, %c0_95] : memref<10x10x8xf32, #tpu.memory_space<vmem>>, vector<8x8x8xf32>
    %75 = vector.shape_cast %74 : vector<8x8x8xf32> to vector<64x8xf32>
    %c0_96 = arith.constant 0 : index
    %c56 = arith.constant 56 : index
    %76 = vector.load %arg15[%c0_96, %c56] : memref<64x72xf32, #tpu.memory_space<vmem>>, vector<64x8xf32>
    tpu.vector_store %arg15[%c0_96, %c56], %75 {strides = array<i32>} : memref<64x72xf32, #tpu.memory_space<vmem>>, vector<64x8xf32>,
    %c2_97 = arith.constant 2 : index
    %c2_98 = arith.constant 2 : index
    %c0_99 = arith.constant 0 : index
    %77 = vector.load %arg13[%c2_97, %c2_98, %c0_99] : memref<10x10x8xf32, #tpu.memory_space<vmem>>, vector<8x8x8xf32>
    %78 = vector.shape_cast %77 : vector<8x8x8xf32> to vector<64x8xf32>
    %c0_100 = arith.constant 0 : index
    %c64 = arith.constant 64 : index
    %79 = vector.load %arg15[%c0_100, %c64] : memref<64x72xf32, #tpu.memory_space<vmem>>, vector<64x8xf32>
    tpu.vector_store %arg15[%c0_100, %c64], %78 {strides = array<i32>} : memref<64x72xf32, #tpu.memory_space<vmem>>, vector<64x8xf32>,
    %c0_101 = arith.constant 0 : index
    %c0_102 = arith.constant 0 : index
    %80 = vector.load %arg15[%c0_101, %c0_102] : memref<64x72xf32, #tpu.memory_space<vmem>>, vector<64x72xf32>
    %81 = arith.truncf %80 : vector<64x72xf32> to vector<64x72xbf16>
    %c0_103 = arith.constant 0 : index
    %c0_104 = arith.constant 0 : index
    %82 = vector.load %arg4[%c0_103, %c0_104] : memref<72x16xf32, #tpu.memory_space<vmem>>, vector<72x16xf32>
    %83 = arith.truncf %82 : vector<72x16xf32> to vector<72x16xbf16>
    %cst_105 = arith.constant dense<0.000000e+00> : vector<64x16xf32>
    %84 = tpu.matmul %81, %83, %cst_105 {dimension_numbers = #tpu.dot_dimension_numbers<[1], [0], [0], [1], [0, 0, 1, 1], [], []>} : vector<64x72xbf16>, vector<72x16xbf16>, vector<64x16xf32> -> vector<64x16xf32>
    %c0_106 = arith.constant 0 : index
    %c0_107 = arith.constant 0 : index
    %85 = vector.load %arg5[%c0_106, %c0_107] : memref<1x16xf32, #tpu.memory_space<vmem>>, vector<1x16xf32>
    %86 = vector.broadcast %85 : vector<1x16xf32> to vector<64x16xf32>
    %87 = arith.addf %84, %86 : vector<64x16xf32>
    %cst_108 = arith.constant 0.000000e+00 : f32
    %88 = vector.broadcast %cst_108 : f32 to vector<64x16xf32>
    %89 = arith.maximumf %87, %88 : vector<64x16xf32>
    %90 = vector.shape_cast %89 : vector<64x16xf32> to vector<8x4x2x16xf32>
    %cst_109 = arith.constant dense<0xFF800000> : vector<8x4x16xf32>
    %91 = vector.multi_reduction <maximumf>, %90, %cst_109 [2] : vector<8x4x2x16xf32> to vector<8x4x16xf32>
    %92 = vector.shape_cast %91 : vector<8x4x16xf32> to vector<4x2x4x16xf32>
    %93 = vector.extract_strided_slice %92 {offsets = [0, 0, 0, 0], sizes = [4, 1, 4, 16], strides = [1, 1, 1, 1]} : vector<4x2x4x16xf32> to vector<4x1x4x16xf32>
    %94 = vector.shape_cast %93 : vector<4x1x4x16xf32> to vector<4x4x16xf32>
    %95 = vector.extract_strided_slice %92 {offsets = [0, 1, 0, 0], sizes = [4, 1, 4, 16], strides = [1, 1, 1, 1]} : vector<4x2x4x16xf32> to vector<4x1x4x16xf32>
    %96 = vector.shape_cast %95 : vector<4x1x4x16xf32> to vector<4x4x16xf32>
    %97 = arith.maximumf %94, %96 : vector<4x4x16xf32>
    %98 = vector.shape_cast %97 : vector<4x4x16xf32> to vector<16x16xf32>
    %99 = tpu.transpose %98, [1, 0] : vector<16x16xf32> -> vector<16x16xf32>
    %100 = vector.extract_strided_slice %99 {offsets = [0, 0], sizes = [1, 16], strides = [1, 1]} : vector<16x16xf32> to vector<1x16xf32>
    %c0_110 = arith.constant 0 : index
    %c0_111 = arith.constant 0 : index
    %101 = vector.load %arg16[%c0_110, %c0_111] : memref<1x256xf32, #tpu.memory_space<vmem>>, vector<1x16xf32>
    tpu.vector_store %arg16[%c0_110, %c0_111], %100 {strides = array<i32>} : memref<1x256xf32, #tpu.memory_space<vmem>>, vector<1x16xf32>,
    %102 = vector.extract_strided_slice %99 {offsets = [1, 0], sizes = [1, 16], strides = [1, 1]} : vector<16x16xf32> to vector<1x16xf32>
    %c0_112 = arith.constant 0 : index
    %c16_113 = arith.constant 16 : index
    %103 = vector.load %arg16[%c0_112, %c16_113] : memref<1x256xf32, #tpu.memory_space<vmem>>, vector<1x16xf32>
    tpu.vector_store %arg16[%c0_112, %c16_113], %102 {strides = array<i32>} : memref<1x256xf32, #tpu.memory_space<vmem>>, vector<1x16xf32>,
    %104 = vector.extract_strided_slice %99 {offsets = [2, 0], sizes = [1, 16], strides = [1, 1]} : vector<16x16xf32> to vector<1x16xf32>
    %c0_114 = arith.constant 0 : index
    %c32_115 = arith.constant 32 : index
    %105 = vector.load %arg16[%c0_114, %c32_115] : memref<1x256xf32, #tpu.memory_space<vmem>>, vector<1x16xf32>
    tpu.vector_store %arg16[%c0_114, %c32_115], %104 {strides = array<i32>} : memref<1x256xf32, #tpu.memory_space<vmem>>, vector<1x16xf32>,
    %106 = vector.extract_strided_slice %99 {offsets = [3, 0], sizes = [1, 16], strides = [1, 1]} : vector<16x16xf32> to vector<1x16xf32>
    %c0_116 = arith.constant 0 : index
    %c48_117 = arith.constant 48 : index
    %107 = vector.load %arg16[%c0_116, %c48_117] : memref<1x256xf32, #tpu.memory_space<vmem>>, vector<1x16xf32>
    tpu.vector_store %arg16[%c0_116, %c48_117], %106 {strides = array<i32>} : memref<1x256xf32, #tpu.memory_space<vmem>>, vector<1x16xf32>,
    %108 = vector.extract_strided_slice %99 {offsets = [4, 0], sizes = [1, 16], strides = [1, 1]} : vector<16x16xf32> to vector<1x16xf32>
    %c0_118 = arith.constant 0 : index
    %c64_119 = arith.constant 64 : index
    %109 = vector.load %arg16[%c0_118, %c64_119] : memref<1x256xf32, #tpu.memory_space<vmem>>, vector<1x16xf32>
    tpu.vector_store %arg16[%c0_118, %c64_119], %108 {strides = array<i32>} : memref<1x256xf32, #tpu.memory_space<vmem>>, vector<1x16xf32>,
    %110 = vector.extract_strided_slice %99 {offsets = [5, 0], sizes = [1, 16], strides = [1, 1]} : vector<16x16xf32> to vector<1x16xf32>
    %c0_120 = arith.constant 0 : index
    %c80 = arith.constant 80 : index
    %111 = vector.load %arg16[%c0_120, %c80] : memref<1x256xf32, #tpu.memory_space<vmem>>, vector<1x16xf32>
    tpu.vector_store %arg16[%c0_120, %c80], %110 {strides = array<i32>} : memref<1x256xf32, #tpu.memory_space<vmem>>, vector<1x16xf32>,
    %112 = vector.extract_strided_slice %99 {offsets = [6, 0], sizes = [1, 16], strides = [1, 1]} : vector<16x16xf32> to vector<1x16xf32>
    %c0_121 = arith.constant 0 : index
    %c96 = arith.constant 96 : index
    %113 = vector.load %arg16[%c0_121, %c96] : memref<1x256xf32, #tpu.memory_space<vmem>>, vector<1x16xf32>
    tpu.vector_store %arg16[%c0_121, %c96], %112 {strides = array<i32>} : memref<1x256xf32, #tpu.memory_space<vmem>>, vector<1x16xf32>,
    %114 = vector.extract_strided_slice %99 {offsets = [7, 0], sizes = [1, 16], strides = [1, 1]} : vector<16x16xf32> to vector<1x16xf32>
    %c0_122 = arith.constant 0 : index
    %c112 = arith.constant 112 : index
    %115 = vector.load %arg16[%c0_122, %c112] : memref<1x256xf32, #tpu.memory_space<vmem>>, vector<1x16xf32>
    tpu.vector_store %arg16[%c0_122, %c112], %114 {strides = array<i32>} : memref<1x256xf32, #tpu.memory_space<vmem>>, vector<1x16xf32>,
    %116 = vector.extract_strided_slice %99 {offsets = [8, 0], sizes = [1, 16], strides = [1, 1]} : vector<16x16xf32> to vector<1x16xf32>
    %c0_123 = arith.constant 0 : index
    %c128 = arith.constant 128 : index
    %117 = vector.load %arg16[%c0_123, %c128] : memref<1x256xf32, #tpu.memory_space<vmem>>, vector<1x16xf32>
    tpu.vector_store %arg16[%c0_123, %c128], %116 {strides = array<i32>} : memref<1x256xf32, #tpu.memory_space<vmem>>, vector<1x16xf32>,
    %118 = vector.extract_strided_slice %99 {offsets = [9, 0], sizes = [1, 16], strides = [1, 1]} : vector<16x16xf32> to vector<1x16xf32>
    %c0_124 = arith.constant 0 : index
    %c144 = arith.constant 144 : index
    %119 = vector.load %arg16[%c0_124, %c144] : memref<1x256xf32, #tpu.memory_space<vmem>>, vector<1x16xf32>
    tpu.vector_store %arg16[%c0_124, %c144], %118 {strides = array<i32>} : memref<1x256xf32, #tpu.memory_space<vmem>>, vector<1x16xf32>,
    %120 = vector.extract_strided_slice %99 {offsets = [10, 0], sizes = [1, 16], strides = [1, 1]} : vector<16x16xf32> to vector<1x16xf32>
    %c0_125 = arith.constant 0 : index
    %c160 = arith.constant 160 : index
    %121 = vector.load %arg16[%c0_125, %c160] : memref<1x256xf32, #tpu.memory_space<vmem>>, vector<1x16xf32>
    tpu.vector_store %arg16[%c0_125, %c160], %120 {strides = array<i32>} : memref<1x256xf32, #tpu.memory_space<vmem>>, vector<1x16xf32>,
    %122 = vector.extract_strided_slice %99 {offsets = [11, 0], sizes = [1, 16], strides = [1, 1]} : vector<16x16xf32> to vector<1x16xf32>
    %c0_126 = arith.constant 0 : index
    %c176 = arith.constant 176 : index
    %123 = vector.load %arg16[%c0_126, %c176] : memref<1x256xf32, #tpu.memory_space<vmem>>, vector<1x16xf32>
    tpu.vector_store %arg16[%c0_126, %c176], %122 {strides = array<i32>} : memref<1x256xf32, #tpu.memory_space<vmem>>, vector<1x16xf32>,
    %124 = vector.extract_strided_slice %99 {offsets = [12, 0], sizes = [1, 16], strides = [1, 1]} : vector<16x16xf32> to vector<1x16xf32>
    %c0_127 = arith.constant 0 : index
    %c192 = arith.constant 192 : index
    %125 = vector.load %arg16[%c0_127, %c192] : memref<1x256xf32, #tpu.memory_space<vmem>>, vector<1x16xf32>
    tpu.vector_store %arg16[%c0_127, %c192], %124 {strides = array<i32>} : memref<1x256xf32, #tpu.memory_space<vmem>>, vector<1x16xf32>,
    %126 = vector.extract_strided_slice %99 {offsets = [13, 0], sizes = [1, 16], strides = [1, 1]} : vector<16x16xf32> to vector<1x16xf32>
    %c0_128 = arith.constant 0 : index
    %c208 = arith.constant 208 : index
    %127 = vector.load %arg16[%c0_128, %c208] : memref<1x256xf32, #tpu.memory_space<vmem>>, vector<1x16xf32>
    tpu.vector_store %arg16[%c0_128, %c208], %126 {strides = array<i32>} : memref<1x256xf32, #tpu.memory_space<vmem>>, vector<1x16xf32>,
    %128 = vector.extract_strided_slice %99 {offsets = [14, 0], sizes = [1, 16], strides = [1, 1]} : vector<16x16xf32> to vector<1x16xf32>
    %c0_129 = arith.constant 0 : index
    %c224 = arith.constant 224 : index
    %129 = vector.load %arg16[%c0_129, %c224] : memref<1x256xf32, #tpu.memory_space<vmem>>, vector<1x16xf32>
    tpu.vector_store %arg16[%c0_129, %c224], %128 {strides = array<i32>} : memref<1x256xf32, #tpu.memory_space<vmem>>, vector<1x16xf32>,
    %130 = vector.extract_strided_slice %99 {offsets = [15, 0], sizes = [1, 16], strides = [1, 1]} : vector<16x16xf32> to vector<1x16xf32>
    %c0_130 = arith.constant 0 : index
    %c240 = arith.constant 240 : index
    %131 = vector.load %arg16[%c0_130, %c240] : memref<1x256xf32, #tpu.memory_space<vmem>>, vector<1x16xf32>
    tpu.vector_store %arg16[%c0_130, %c240], %130 {strides = array<i32>} : memref<1x256xf32, #tpu.memory_space<vmem>>, vector<1x16xf32>,
    %c0_131 = arith.constant 0 : index
    %c0_132 = arith.constant 0 : index
    %132 = vector.load %arg16[%c0_131, %c0_132] : memref<1x256xf32, #tpu.memory_space<vmem>>, vector<1x256xf32>
    %133 = arith.truncf %132 : vector<1x256xf32> to vector<1x256xbf16>
    %c0_133 = arith.constant 0 : index
    %c0_134 = arith.constant 0 : index
    %134 = vector.load %arg6[%c0_133, %c0_134] : memref<256x32xf32, #tpu.memory_space<vmem>>, vector<256x32xf32>
    %135 = arith.truncf %134 : vector<256x32xf32> to vector<256x32xbf16>
    %cst_135 = arith.constant dense<0.000000e+00> : vector<1x32xf32>
    %136 = tpu.matmul %133, %135, %cst_135 {dimension_numbers = #tpu.dot_dimension_numbers<[1], [0], [0], [1], [0, 0, 1, 1], [], []>} : vector<1x256xbf16>, vector<256x32xbf16>, vector<1x32xf32> -> vector<1x32xf32>
    %c0_136 = arith.constant 0 : index
    %c0_137 = arith.constant 0 : index
    %137 = vector.load %arg7[%c0_136, %c0_137] : memref<1x32xf32, #tpu.memory_space<vmem>>, vector<1x32xf32>
    %138 = arith.addf %136, %137 : vector<1x32xf32>
    %cst_138 = arith.constant 0.000000e+00 : f32
    %139 = vector.broadcast %cst_138 : f32 to vector<1x32xf32>
    %140 = arith.maximumf %138, %139 : vector<1x32xf32>
    %c0_139 = arith.constant 0 : index
    %c0_140 = arith.constant 0 : index
    %c0_141 = arith.constant 0 : index
    %141 = vector.load %arg11[%c0_139, %c0_140, %c0_141] : memref<1x1x32xf32, #tpu.memory_space<vmem>>, vector<1x1x32xf32>
    %142 = vector.shape_cast %141 : vector<1x1x32xf32> to vector<1x32xf32>
    %143 = vector.shape_cast %140 : vector<1x32xf32> to vector<1x1x32xf32>
    tpu.vector_store %arg11[%c0_139, %c0_140, %c0_141], %143 {strides = array<i32>} : memref<1x1x32xf32, #tpu.memory_space<vmem>>, vector<1x1x32xf32>,
    %144 = arith.truncf %140 : vector<1x32xf32> to vector<1x32xbf16>
    %c0_142 = arith.constant 0 : index
    %c0_143 = arith.constant 0 : index
    %145 = vector.load %arg8[%c0_142, %c0_143] : memref<32x10xf32, #tpu.memory_space<vmem>>, vector<32x10xf32>
    %146 = arith.truncf %145 : vector<32x10xf32> to vector<32x10xbf16>
    %cst_144 = arith.constant dense<0.000000e+00> : vector<1x10xf32>
    %147 = tpu.matmul %144, %146, %cst_144 {dimension_numbers = #tpu.dot_dimension_numbers<[1], [0], [0], [1], [0, 0, 1, 1], [], []>} : vector<1x32xbf16>, vector<32x10xbf16>, vector<1x10xf32> -> vector<1x10xf32>
    %c0_145 = arith.constant 0 : index
    %c0_146 = arith.constant 0 : index
    %148 = vector.load %arg9[%c0_145, %c0_146] : memref<1x10xf32, #tpu.memory_space<vmem>>, vector<1x10xf32>
    %149 = arith.addf %147, %148 : vector<1x10xf32>
    %c0_147 = arith.constant 0 : index
    %c0_148 = arith.constant 0 : index
    %c0_149 = arith.constant 0 : index
    %150 = vector.load %arg10[%c0_147, %c0_148, %c0_149] : memref<1x1x10xf32, #tpu.memory_space<vmem>>, vector<1x1x10xf32>
    %151 = vector.shape_cast %150 : vector<1x1x10xf32> to vector<1x10xf32>
    %152 = vector.shape_cast %149 : vector<1x10xf32> to vector<1x1x10xf32>
    tpu.vector_store %arg10[%c0_147, %c0_148, %c0_149], %152 {strides = array<i32>} : memref<1x1x10xf32, #tpu.memory_space<vmem>>, vector<1x1x10xf32>,
    return
  }
  func.func @transform_0(%arg0: i32) -> (i32, i32, i32, i32) {
    %c0_i32 = arith.constant 0 : i32
    %c0_i32_0 = arith.constant 0 : i32
    %c0_i32_1 = arith.constant 0 : i32
    %c0_i32_2 = arith.constant 0 : i32
    return %arg0, %c0_i32, %c0_i32_0, %c0_i32_1 : i32, i32, i32, i32
  }
  func.func @transform_1(%arg0: i32) -> (i32, i32) {
    %c0_i32 = arith.constant 0 : i32
    %c0_i32_0 = arith.constant 0 : i32
    %c0_i32_1 = arith.constant 0 : i32
    return %c0_i32, %c0_i32_0 : i32, i32
  }
  func.func @transform_2(%arg0: i32) -> (i32, i32) {
    %c0_i32 = arith.constant 0 : i32
    %c0_i32_0 = arith.constant 0 : i32
    %c0_i32_1 = arith.constant 0 : i32
    return %c0_i32, %c0_i32_0 : i32, i32
  }
  func.func @transform_3(%arg0: i32) -> (i32, i32) {
    %c0_i32 = arith.constant 0 : i32
    %c0_i32_0 = arith.constant 0 : i32
    %c0_i32_1 = arith.constant 0 : i32
    return %c0_i32, %c0_i32_0 : i32, i32
  }
  func.func @transform_4(%arg0: i32) -> (i32, i32) {
    %c0_i32 = arith.constant 0 : i32
    %c0_i32_0 = arith.constant 0 : i32
    %c0_i32_1 = arith.constant 0 : i32
    return %c0_i32, %c0_i32_0 : i32, i32
  }
  func.func @transform_5(%arg0: i32) -> (i32, i32) {
    %c0_i32 = arith.constant 0 : i32
    %c0_i32_0 = arith.constant 0 : i32
    %c0_i32_1 = arith.constant 0 : i32
    return %c0_i32, %c0_i32_0 : i32, i32
  }
  func.func @transform_6(%arg0: i32) -> (i32, i32) {
    %c0_i32 = arith.constant 0 : i32
    %c0_i32_0 = arith.constant 0 : i32
    %c0_i32_1 = arith.constant 0 : i32
    return %c0_i32, %c0_i32_0 : i32, i32
  }
  func.func @transform_7(%arg0: i32) -> (i32, i32) {
    %c0_i32 = arith.constant 0 : i32
    %c0_i32_0 = arith.constant 0 : i32
    %c0_i32_1 = arith.constant 0 : i32
    return %c0_i32, %c0_i32_0 : i32, i32
  }
  func.func @transform_8(%arg0: i32) -> (i32, i32) {
    %c0_i32 = arith.constant 0 : i32
    %c0_i32_0 = arith.constant 0 : i32
    %c0_i32_1 = arith.constant 0 : i32
    return %c0_i32, %c0_i32_0 : i32, i32
  }
  func.func @transform_9(%arg0: i32) -> (i32, i32, i32) {
    %c0_i32 = arith.constant 0 : i32
    %c0_i32_0 = arith.constant 0 : i32
    %c0_i32_1 = arith.constant 0 : i32
    return %arg0, %c0_i32, %c0_i32_0 : i32, i32, i32
  }
  func.func @transform_10(%arg0: i32) -> (i32, i32, i32) {
    %c0_i32 = arith.constant 0 : i32
    %c0_i32_0 = arith.constant 0 : i32
    %c0_i32_1 = arith.constant 0 : i32
    return %arg0, %c0_i32, %c0_i32_0 : i32, i32, i32
  }
}

</mosaic_0001>

<llo_original>
// kernel: conv_lin_seq_forward.1
$region0: #{conv_lin_seq_forward.1}
  #allocation0 [shape = 'u32[]', space=smem, size = 0x4, offset = 0x4, fixed_abs, tag = 'smem constant byte address 0x4 - core index']
  #allocation1 [shape = 'u32[144,128]{1,0:T(1,128)}', space=vmem, size = 0x12000, scoped, tag = 'internal scratch']
  #allocation2 [shape = 'f32[18,18,4]{2,1,0:T(8,128)}', space=vmem, size = 0x36000, scoped, tag = 'scratch operand']
  #allocation3 [shape = 'f32[10,10,8]{2,1,0:T(8,128)}', space=vmem, size = 0x14000, scoped, tag = 'scratch operand']
  #allocation4 [shape = 'f32[256,36]{1,0:T(8,128)}', space=vmem, size = 0x20000, scoped, tag = 'scratch operand']
  #allocation5 [shape = 'f32[64,72]{1,0:T(8,128)}', space=vmem, size = 0x8000, scoped, tag = 'scratch operand']
  #allocation6 [shape = 'f32[1,256]{1,0:T(1,128)}', space=vmem, size = 0x400, scoped, tag = 'scratch operand']
  %s0 = inlined_call_operand.vmem [shape: f32[2,16,16,4], index: 0, kind: input, shape index: {}]
  %s1 = inlined_call_operand.vmem [shape: f32[36,8], index: 1, kind: input, shape index: {}]
  %s2 = inlined_call_operand.vmem [shape: f32[1,8], index: 2, kind: input, shape index: {}]
  %s3 = inlined_call_operand.vmem [shape: f32[72,16], index: 3, kind: input, shape index: {}]
  %s4 = inlined_call_operand.vmem [shape: f32[1,16], index: 4, kind: input, shape index: {}]
  %s5 = inlined_call_operand.vmem [shape: f32[256,32], index: 5, kind: input, shape index: {}]
  %s6 = inlined_call_operand.vmem [shape: f32[1,32], index: 6, kind: input, shape index: {}]
  %s7 = inlined_call_operand.vmem [shape: f32[32,10], index: 7, kind: input, shape index: {}]
  %s8 = inlined_call_operand.vmem [shape: f32[1,10], index: 8, kind: input, shape index: {}]
  %s9 = inlined_call_operand.hbm [shape: f32[2,1,10], index: 9, kind: output, shape index: {0}]
  %s10 = inlined_call_operand.hbm [shape: f32[2,1,32], index: 10, kind: output, shape index: {1}]
  %11 = xla_tuple %s9, %s10
  %s12 = sld [smem:[#allocation0]]
  $region77: #{conv_lin_seq_forward.1} parent=0
    _
  %s14 = ssub.s32 1, %s12
  %s15 = scalar_select 0, %s14, %s12
  $region1: #{conv_lin_seq_forward.1} parent=0
    #allocation7 [shape = 'u8[1024]{0}', space=vmem, size = 0x400, scoped, tag = 'output window, operand 0']
    #allocation8 [shape = 's32[2]{0}', space=sflag, size = 0x8, scoped, tag = 'scoped memory for conv_lin_seq_forward.1']
    #allocation9 [shape = 'u8[1024]{0}', space=vmem, size = 0x400, scoped, tag = 'output window, operand 1']
    #allocation10 [shape = 's32[2]{0}', space=sflag, size = 0x8, scoped, tag = 'scoped memory for conv_lin_seq_forward.1']
    %16 = vsyncpa [#allocation8], 0
    %s17 = scalar_lea.sflag [#allocation8], 1
    %18 = vsyncpa %s17, 0
    %19 = vsyncpa [#allocation10], 0
    %s20 = scalar_lea.sflag [#allocation10], 1
    %21 = vsyncpa %s20, 0
    loop: start=0, step=1, limit=4
    $region2: #{conv_lin_seq_forward.1} parent=1 // loop_pre_header
      _
    $region3: #{conv_lin_seq_forward.1} parent=1 // loop_header
      %s23 = sphi 0, %s27
      %p24 = scmp.ge.s32.totalorder %s23, 4
      %s33 = sphi 0, %s35
      %s36 = sphi 0, %s33
      %s37 = sphi 0, %s36
      %s53 = sphi 0, %s37
      %s57 = sphi 0, %s57
      %s59 = sphi 0, %s57
      %s60 = sphi 0, %s59
      %s74 = sphi 0, %s60
      %s78 = sphi 0, %s78
      %s80 = sphi 0, %s78
      %s81 = sphi 0, %s80
      %s95 = sphi 0, %s81
      %s99 = sphi 0, %s99
      %s101 = sphi 0, %s99
      %s102 = sphi 0, %s101
      %s116 = sphi 0, %s102
      %s120 = sphi 0, %s120
      %s122 = sphi 0, %s120
      %s123 = sphi 0, %s122
      %s137 = sphi 0, %s123
      %s141 = sphi 0, %s141
      %s143 = sphi 0, %s141
      %s144 = sphi 0, %s143
      %s158 = sphi 0, %s144
      %s162 = sphi 0, %s162
      %s164 = sphi 0, %s162
      %s165 = sphi 0, %s164
      %s179 = sphi 0, %s165
      %s183 = sphi 0, %s183
      %s185 = sphi 0, %s183
      %s186 = sphi 0, %s185
      %s200 = sphi 0, %s186
      %s204 = sphi 0, %s204
      %s206 = sphi 0, %s204
      %s207 = sphi 0, %s206
      %s221 = sphi 0, %s207
      %s227 = sphi 0, %s229
      %s230 = sphi 0, %s227
      %s231 = sphi 0, %s230
      %s247 = sphi 0, %s231
      %s253 = sphi 0, %s255
      %s256 = sphi 0, %s253
      %s257 = sphi 0, %s256
      %s273 = sphi 0, %s257
    $region4: #{conv_lin_seq_forward.1} parent=1 // loop_header_branch
      %26 = sbr.rel (%p24) target = $region8
    $region5: #{conv_lin_seq_forward.1} parent=1 // loop_body
      %s28 = ssub.s32 %s23, 1
      %s29 = ssub.s32 %s23, 2
      %s30 = sadd.s32 %s23, 1
      %s31 = ssub.s32 %s23, %s30
      %p32 = scmp.eq.s32.totalorder %s31, 0
      %s34 = sadd.s32 %s33, 1
      %s35 = scalar_select %p32, %s33, %s34
      %p38 = pneg %p32
      %p39 = scmp.eq.s32.totalorder %s23, 1
      %p40 = por %p38, %p39
      %p41 = scmp.ne.s32.totalorder %s33, %s36
      %p42 = scmp.eq.s32.totalorder %s23, 0
      %p43 = por %p41, %p42
      %p44 = scmp.ne.s32.totalorder %s33, %s36
      %p45 = scmp.eq.s32.totalorder %s28, 1
      %p46 = por %p44, %p45
      %p47 = scmp.ne.s32.totalorder %s36, %s37
      %p48 = scmp.eq.s32.totalorder %s28, 0
      %p49 = por %p47, %p48
      %p50 = scmp.ne.s32.totalorder %s36, %s37
      %p51 = scmp.eq.s32.totalorder %s29, 1
      %p52 = por %p50, %p51
      %p54 = scmp.ne.s32.totalorder %s37, %s53
      %p55 = scmp.eq.s32.totalorder %s29, 0
      %p56 = por %p54, %p55
      %s58 = sadd.s32 %s57, 1
      %p61 = scmp.eq.s32.totalorder %s23, 1
      %p62 = scmp.ne.s32.totalorder %s57, %s59
      %p63 = scmp.eq.s32.totalorder %s23, 0
      %p64 = por %p62, %p63
      %p65 = scmp.ne.s32.totalorder %s57, %s59
      %p66 = scmp.eq.s32.totalorder %s28, 1
      %p67 = por %p65, %p66
      %p68 = scmp.ne.s32.totalorder %s59, %s60
      %p69 = scmp.eq.s32.totalorder %s28, 0
      %p70 = por %p68, %p69
      %p71 = scmp.ne.s32.totalorder %s59, %s60
      %p72 = scmp.eq.s32.totalorder %s29, 1
      %p73 = por %p71, %p72
      %p75 = scmp.ne.s32.totalorder %s60, %s74
      %p76 = scmp.eq.s32.totalorder %s29, 0
      %p77 = por %p75, %p76
      %s79 = sadd.s32 %s78, 1
      %p82 = scmp.eq.s32.totalorder %s23, 1
      %p83 = scmp.ne.s32.totalorder %s78, %s80
      %p84 = scmp.eq.s32.totalorder %s23, 0
      %p85 = por %p83, %p84
      %p86 = scmp.ne.s32.totalorder %s78, %s80
      %p87 = scmp.eq.s32.totalorder %s28, 1
      %p88 = por %p86, %p87
      %p89 = scmp.ne.s32.totalorder %s80, %s81
      %p90 = scmp.eq.s32.totalorder %s28, 0
      %p91 = por %p89, %p90
      %p92 = scmp.ne.s32.totalorder %s80, %s81
      %p93 = scmp.eq.s32.totalorder %s29, 1
      %p94 = por %p92, %p93
      %p96 = scmp.ne.s32.totalorder %s81, %s95
      %p97 = scmp.eq.s32.totalorder %s29, 0
      %p98 = por %p96, %p97
      %s100 = sadd.s32 %s99, 1
      %p103 = scmp.eq.s32.totalorder %s23, 1
      %p104 = scmp.ne.s32.totalorder %s99, %s101
      %p105 = scmp.eq.s32.totalorder %s23, 0
      %p106 = por %p104, %p105
      %p107 = scmp.ne.s32.totalorder %s99, %s101
      %p108 = scmp.eq.s32.totalorder %s28, 1
      %p109 = por %p107, %p108
      %p110 = scmp.ne.s32.totalorder %s101, %s102
      %p111 = scmp.eq.s32.totalorder %s28, 0
      %p112 = por %p110, %p111
      %p113 = scmp.ne.s32.totalorder %s101, %s102
      %p114 = scmp.eq.s32.totalorder %s29, 1
      %p115 = por %p113, %p114
      %p117 = scmp.ne.s32.totalorder %s102, %s116
      %p118 = scmp.eq.s32.totalorder %s29, 0
      %p119 = por %p117, %p118
      %s121 = sadd.s32 %s120, 1
      %p124 = scmp.eq.s32.totalorder %s23, 1
      %p125 = scmp.ne.s32.totalorder %s120, %s122
      %p126 = scmp.eq.s32.totalorder %s23, 0
      %p127 = por %p125, %p126
      %p128 = scmp.ne.s32.totalorder %s120, %s122
      %p129 = scmp.eq.s32.totalorder %s28, 1
      %p130 = por %p128, %p129
      %p131 = scmp.ne.s32.totalorder %s122, %s123
      %p132 = scmp.eq.s32.totalorder %s28, 0
      %p133 = por %p131, %p132
      %p134 = scmp.ne.s32.totalorder %s122, %s123
      %p135 = scmp.eq.s32.totalorder %s29, 1
      %p136 = por %p134, %p135
      %p138 = scmp.ne.s32.totalorder %s123, %s137
      %p139 = scmp.eq.s32.totalorder %s29, 0
      %p140 = por %p138, %p139
      %s142 = sadd.s32 %s141, 1
      %p145 = scmp.eq.s32.totalorder %s23, 1
      %p146 = scmp.ne.s32.totalorder %s141, %s143
      %p147 = scmp.eq.s32.totalorder %s23, 0
      %p148 = por %p146, %p147
      %p149 = scmp.ne.s32.totalorder %s141, %s143
      %p150 = scmp.eq.s32.totalorder %s28, 1
      %p151 = por %p149, %p150
      %p152 = scmp.ne.s32.totalorder %s143, %s144
      %p153 = scmp.eq.s32.totalorder %s28, 0
      %p154 = por %p152, %p153
      %p155 = scmp.ne.s32.totalorder %s143, %s144
      %p156 = scmp.eq.s32.totalorder %s29, 1
      %p157 = por %p155, %p156
      %p159 = scmp.ne.s32.totalorder %s144, %s158
      %p160 = scmp.eq.s32.totalorder %s29, 0
      %p161 = por %p159, %p160
      %s163 = sadd.s32 %s162, 1
      %p166 = scmp.eq.s32.totalorder %s23, 1
      %p167 = scmp.ne.s32.totalorder %s162, %s164
      %p168 = scmp.eq.s32.totalorder %s23, 0
      %p169 = por %p167, %p168
      %p170 = scmp.ne.s32.totalorder %s162, %s164
      %p171 = scmp.eq.s32.totalorder %s28, 1
      %p172 = por %p170, %p171
      %p173 = scmp.ne.s32.totalorder %s164, %s165
      %p174 = scmp.eq.s32.totalorder %s28, 0
      %p175 = por %p173, %p174
      %p176 = scmp.ne.s32.totalorder %s164, %s165
      %p177 = scmp.eq.s32.totalorder %s29, 1
      %p178 = por %p176, %p177
      %p180 = scmp.ne.s32.totalorder %s165, %s179
      %p181 = scmp.eq.s32.totalorder %s29, 0
      %p182 = por %p180, %p181
      %s184 = sadd.s32 %s183, 1
      %p187 = scmp.eq.s32.totalorder %s23, 1
      %p188 = scmp.ne.s32.totalorder %s183, %s185
      %p189 = scmp.eq.s32.totalorder %s23, 0
      %p190 = por %p188, %p189
      %p191 = scmp.ne.s32.totalorder %s183, %s185
      %p192 = scmp.eq.s32.totalorder %s28, 1
      %p193 = por %p191, %p192
      %p194 = scmp.ne.s32.totalorder %s185, %s186
      %p195 = scmp.eq.s32.totalorder %s28, 0
      %p196 = por %p194, %p195
      %p197 = scmp.ne.s32.totalorder %s185, %s186
      %p198 = scmp.eq.s32.totalorder %s29, 1
      %p199 = por %p197, %p198
      %p201 = scmp.ne.s32.totalorder %s186, %s200
      %p202 = scmp.eq.s32.totalorder %s29, 0
      %p203 = por %p201, %p202
      %s205 = sadd.s32 %s204, 1
      %p208 = scmp.eq.s32.totalorder %s23, 1
      %p209 = scmp.ne.s32.totalorder %s204, %s206
      %p210 = scmp.eq.s32.totalorder %s23, 0
      %p211 = por %p209, %p210
      %p212 = scmp.ne.s32.totalorder %s204, %s206
      %p213 = scmp.eq.s32.totalorder %s28, 1
      %p214 = por %p212, %p213
      %p215 = scmp.ne.s32.totalorder %s206, %s207
      %p216 = scmp.eq.s32.totalorder %s28, 0
      %p217 = por %p215, %p216
      %p218 = scmp.ne.s32.totalorder %s206, %s207
      %p219 = scmp.eq.s32.totalorder %s29, 1
      %p220 = por %p218, %p219
      %p222 = scmp.ne.s32.totalorder %s207, %s221
      %p223 = scmp.eq.s32.totalorder %s29, 0
      %p224 = por %p222, %p223
      %s225 = ssub.s32 %s23, %s30
      %p226 = scmp.eq.s32.totalorder %s225, 0
      %s228 = sadd.s32 %s227, 1
      %s229 = scalar_select %p226, %s227, %s228
      %p232 = pneg %p226
      %p233 = scmp.eq.s32.totalorder %s23, 1
      %p234 = por %p232, %p233
      %p235 = scmp.ne.s32.totalorder %s227, %s230
      %p236 = scmp.eq.s32.totalorder %s23, 0
      %p237 = por %p235, %p236
      %p238 = scmp.ne.s32.totalorder %s227, %s230
      %p239 = scmp.eq.s32.totalorder %s28, 1
      %p240 = por %p238, %p239
      %p241 = scmp.ne.s32.totalorder %s230, %s231
      %p242 = scmp.eq.s32.totalorder %s28, 0
      %p243 = por %p241, %p242
      %p244 = scmp.ne.s32.totalorder %s230, %s231
      %p245 = scmp.eq.s32.totalorder %s29, 1
      %p246 = por %p244, %p245
      %p248 = scmp.ne.s32.totalorder %s231, %s247
      %p249 = scmp.eq.s32.totalorder %s29, 0
      %p250 = por %p248, %p249
      %s251 = ssub.s32 %s23, %s30
      %p252 = scmp.eq.s32.totalorder %s251, 0
      %s254 = sadd.s32 %s253, 1
      %s255 = scalar_select %p252, %s253, %s254
      %p258 = pneg %p252
      %p259 = scmp.eq.s32.totalorder %s23, 1
      %p260 = por %p258, %p259
      %p261 = scmp.ne.s32.totalorder %s253, %s256
      %p262 = scmp.eq.s32.totalorder %s23, 0
      %p263 = por %p261, %p262
      %p264 = scmp.ne.s32.totalorder %s253, %s256
      %p265 = scmp.eq.s32.totalorder %s28, 1
      %p266 = por %p264, %p265
      %p267 = scmp.ne.s32.totalorder %s256, %s257
      %p268 = scmp.eq.s32.totalorder %s28, 0
      %p269 = por %p267, %p268
      %p270 = scmp.ne.s32.totalorder %s256, %s257
      %p271 = scmp.eq.s32.totalorder %s29, 1
      %p272 = por %p270, %p271
      %p274 = scmp.ne.s32.totalorder %s257, %s273
      %p275 = scmp.eq.s32.totalorder %s29, 0
      %p276 = por %p274, %p275
      %p277 = scmp.le.s32.totalorder 1, %s23
      %p278 = scmp.lt.s32.totalorder %s23, 3
      %p279 = pnand %p277, %p278
      %p280 = pneg %p279
      // Predicated region
      $region9: #{conv_lin_seq_forward.1} parent=5 // pred_check
        _
      $region10: #{conv_lin_seq_forward.1} parent=5 // pred_check_branch
        %282 = sbr.rel (%p279) target = $region12
      $region11: #{conv_lin_seq_forward.1} parent=5 // pred_region
        %s283 = ssub.s32 %s23, 1
        // Predicated region
        $region13: #{conv_lin_seq_forward.1} parent=11 // pred_check
          %p284 = pneg %p70
        $region14: #{conv_lin_seq_forward.1} parent=11 // pred_check_branch
          %286 = sbr.rel (%p284) target = $region16
        $region15: #{conv_lin_seq_forward.1} parent=11 // pred_region
          _
        $region16: #{conv_lin_seq_forward.1} parent=11 // pred_fallthru
          _
        // Predicated region
        $region17: #{conv_lin_seq_forward.1} parent=11 // pred_check
          %p287 = pneg %p91
        $region18: #{conv_lin_seq_forward.1} parent=11 // pred_check_branch
          %289 = sbr.rel (%p287) target = $region20
        $region19: #{conv_lin_seq_forward.1} parent=11 // pred_region
          _
        $region20: #{conv_lin_seq_forward.1} parent=11 // pred_fallthru
          _
        // Predicated region
        $region21: #{conv_lin_seq_forward.1} parent=11 // pred_check
          %p290 = pneg %p112
        $region22: #{conv_lin_seq_forward.1} parent=11 // pred_check_branch
          %292 = sbr.rel (%p290) target = $region24
        $region23: #{conv_lin_seq_forward.1} parent=11 // pred_region
          _
        $region24: #{conv_lin_seq_forward.1} parent=11 // pred_fallthru
          _
        // Predicated region
        $region25: #{conv_lin_seq_forward.1} parent=11 // pred_check
          %p293 = pneg %p133
        $region26: #{conv_lin_seq_forward.1} parent=11 // pred_check_branch
          %295 = sbr.rel (%p293) target = $region28
        $region27: #{conv_lin_seq_forward.1} parent=11 // pred_region
          _
        $region28: #{conv_lin_seq_forward.1} parent=11 // pred_fallthru
          _
        // Predicated region
        $region29: #{conv_lin_seq_forward.1} parent=11 // pred_check
          %p296 = pneg %p154
        $region30: #{conv_lin_seq_forward.1} parent=11 // pred_check_branch
          %298 = sbr.rel (%p296) target = $region32
        $region31: #{conv_lin_seq_forward.1} parent=11 // pred_region
          _
        $region32: #{conv_lin_seq_forward.1} parent=11 // pred_fallthru
          _
        // Predicated region
        $region33: #{conv_lin_seq_forward.1} parent=11 // pred_check
          %p299 = pneg %p175
        $region34: #{conv_lin_seq_forward.1} parent=11 // pred_check_branch
          %301 = sbr.rel (%p299) target = $region36
        $region35: #{conv_lin_seq_forward.1} parent=11 // pred_region
          _
        $region36: #{conv_lin_seq_forward.1} parent=11 // pred_fallthru
          _
        // Predicated region
        $region37: #{conv_lin_seq_forward.1} parent=11 // pred_check
          %p302 = pneg %p196
        $region38: #{conv_lin_seq_forward.1} parent=11 // pred_check_branch
          %304 = sbr.rel (%p302) target = $region40
        $region39: #{conv_lin_seq_forward.1} parent=11 // pred_region
          _
        $region40: #{conv_lin_seq_forward.1} parent=11 // pred_fallthru
          _
        // Predicated region
        $region41: #{conv_lin_seq_forward.1} parent=11 // pred_check
          %p305 = pneg %p217
        $region42: #{conv_lin_seq_forward.1} parent=11 // pred_check_branch
          %307 = sbr.rel (%p305) target = $region44
        $region43: #{conv_lin_seq_forward.1} parent=11 // pred_region
          _
        $region44: #{conv_lin_seq_forward.1} parent=11 // pred_fallthru
          _
      $region12: #{conv_lin_seq_forward.1} parent=5 // pred_fallthru
        _
      %p308 = scmp.lt.s32.totalorder %s23, 2
      // Predicated region
      $region45: #{conv_lin_seq_forward.1} parent=5 // pred_check
        %p309 = pneg %p308
      $region46: #{conv_lin_seq_forward.1} parent=5 // pred_check_branch
        %311 = sbr.rel (%p309) target = $region48
      $region47: #{conv_lin_seq_forward.1} parent=5 // pred_region
        // Predicated region
        $region49: #{conv_lin_seq_forward.1} parent=47 // pred_check
          %p312 = pneg %p43
        $region50: #{conv_lin_seq_forward.1} parent=47 // pred_check_branch
          %314 = sbr.rel (%p312) target = $region52
        $region51: #{conv_lin_seq_forward.1} parent=47 // pred_region
          %p315 = scmp.lt.s32.totalorder %s23, 1
          %s316 = scalar_select %p315, %s23, 1
          %s317 = smul.addr %s316, 32
          %s318 = smul.addr %s317, 8
          %s319 = scalar_lea.vmem %s0, %s318
        $region52: #{conv_lin_seq_forward.1} parent=47 // pred_fallthru
          _
      $region48: #{conv_lin_seq_forward.1} parent=5 // pred_fallthru
        _
      %p320 = scmp.le.s32.totalorder 1, %s23
      %p321 = scmp.lt.s32.totalorder %s23, 3
      %p322 = pnand %p320, %p321
      %p323 = pneg %p322
      // Predicated region
      $region53: #{conv_lin_seq_forward.1} parent=5 // pred_check
        _
      $region54: #{conv_lin_seq_forward.1} parent=5 // pred_check_branch
        %325 = sbr.rel (%p322) target = $region56
      $region55: #{conv_lin_seq_forward.1} parent=5 // pred_region
        %s326 = ssub.s32 %s23, 1
        %p327 = scmp.lt.s32.totalorder %s28, 1
        %s328 = scalar_select %p327, %s28, 1
        %s329 = smul.addr %s328, 32
        %s330 = smul.addr %s329, 8
        %s331 = scalar_lea.vmem %s0, %s330
        %p332 = pneg %p49
        %p333 = pneg %p46
        %p334 = pneg %p70
        %p335 = pneg %p67
        %p336 = pneg %p91
        %p337 = pneg %p88
        %p338 = pneg %p112
        %p339 = pneg %p109
        %p340 = pneg %p133
        %p341 = pneg %p130
        %p342 = pneg %p154
        %p343 = pneg %p151
        %p344 = pneg %p175
        %p345 = pneg %p172
        %p346 = pneg %p196
        %p347 = pneg %p193
        %p348 = pneg %p217
        %p349 = pneg %p214
        %p350 = pneg %p243
        %p351 = pneg %p240
        %s352 = sand.u32 %s230, 1
        %s353 = scalar_lea.sflag [#allocation8], %s352
        %s354 = sand.u32 %s230, 1
        %s355 = scalar_lea.vmem [#allocation7], %s354
        %p356 = pneg %p269
        %p357 = pneg %p266
        %s358 = sand.u32 %s256, 1
        %s359 = scalar_lea.sflag [#allocation10], %s358
        %s360 = sand.u32 %s256, 1
        %s361 = scalar_lea.vmem [#allocation9], %s360
        %p362 = scmp.lt.s32.totalorder %s28, 1
        %s363 = scalar_select %p362, %s28, 1
        %s364 = smul.addr %s363, 32
        %s365 = smul.addr %s364, 8
        %s366 = scalar_lea.vmem %s0, %s365
        %v368 = vld [vmem:[%s366] sm:$0xff]
        %v369 = vld [vmem:[%s366 + $0x8] sm:$0xff]
        %v370 = vld [vmem:[%s366 + $0x10] sm:$0xff]
        %v371 = vld [vmem:[%s366 + $0x18] sm:$0xff]
        %v372 = vld [vmem:[%s366 + $0x20] sm:$0xff]
        %v373 = vld [vmem:[%s366 + $0x28] sm:$0xff]
        %v374 = vld [vmem:[%s366 + $0x30] sm:$0xff]
        %v375 = vld [vmem:[%s366 + $0x38] sm:$0xff]
        %v376 = vld [vmem:[%s366 + $0x40] sm:$0xff]
        %v377 = vld [vmem:[%s366 + $0x48] sm:$0xff]
        %v378 = vld [vmem:[%s366 + $0x50] sm:$0xff]
        %v379 = vld [vmem:[%s366 + $0x58] sm:$0xff]
        %v380 = vld [vmem:[%s366 + $0x60] sm:$0xff]
        %v381 = vld [vmem:[%s366 + $0x68] sm:$0xff]
        %v382 = vld [vmem:[%s366 + $0x70] sm:$0xff]
        %v383 = vld [vmem:[%s366 + $0x78] sm:$0xff]
        %v384 = vld [vmem:[%s366 + $0x80] sm:$0xff]
        %v385 = vld [vmem:[%s366 + $0x88] sm:$0xff]
        %v386 = vld [vmem:[%s366 + $0x90] sm:$0xff]
        %v387 = vld [vmem:[%s366 + $0x98] sm:$0xff]
        %v388 = vld [vmem:[%s366 + $0xa0] sm:$0xff]
        %v389 = vld [vmem:[%s366 + $0xa8] sm:$0xff]
        %v390 = vld [vmem:[%s366 + $0xb0] sm:$0xff]
        %v391 = vld [vmem:[%s366 + $0xb8] sm:$0xff]
        %v392 = vld [vmem:[%s366 + $0xc0] sm:$0xff]
        %v393 = vld [vmem:[%s366 + $0xc8] sm:$0xff]
        %v394 = vld [vmem:[%s366 + $0xd0] sm:$0xff]
        %v395 = vld [vmem:[%s366 + $0xd8] sm:$0xff]
        %v396 = vld [vmem:[%s366 + $0xe0] sm:$0xff]
        %v397 = vld [vmem:[%s366 + $0xe8] sm:$0xff]
        %v398 = vld [vmem:[%s366 + $0xf0] sm:$0xff]
        %v399 = vld [vmem:[%s366 + $0xf8] sm:$0xff]
        %vm400 = vcmask 31744
        %401 = vst.msk [vmem:[#allocation2] sm:$0xff] %vm400, 0.0
        %402 = vst.msk [vmem:[#allocation2 + $0x8] sm:$0xff] %vm400, 0.0
        %vm403 = vcmask 25600
        %404 = vst.msk [vmem:[#allocation2 + $0x10] sm:$0x3] %vm403, 0.0
        %405 = vst.msk [vmem:[#allocation2 + $0x18] sm:$0xff] %vm400, 0.0
        %406 = vst.msk [vmem:[#allocation2 + $0x20] sm:$0xff] %vm400, 0.0
        %407 = vst.msk [vmem:[#allocation2 + $0x28] sm:$0x3] %vm403, 0.0
        %408 = vst.msk [vmem:[#allocation2 + $0x30] sm:$0xff] %vm400, 0.0
        %409 = vst.msk [vmem:[#allocation2 + $0x38] sm:$0xff] %vm400, 0.0
        %410 = vst.msk [vmem:[#allocation2 + $0x40] sm:$0x3] %vm403, 0.0
        %411 = vst.msk [vmem:[#allocation2 + $0x48] sm:$0xff] %vm400, 0.0
        %412 = vst.msk [vmem:[#allocation2 + $0x50] sm:$0xff] %vm400, 0.0
        %413 = vst.msk [vmem:[#allocation2 + $0x58] sm:$0x3] %vm403, 0.0
        %414 = vst.msk [vmem:[#allocation2 + $0x60] sm:$0xff] %vm400, 0.0
        %415 = vst.msk [vmem:[#allocation2 + $0x68] sm:$0xff] %vm400, 0.0
        %416 = vst.msk [vmem:[#allocation2 + $0x70] sm:$0x3] %vm403, 0.0
        %417 = vst.msk [vmem:[#allocation2 + $0x78] sm:$0xff] %vm400, 0.0
        %418 = vst.msk [vmem:[#allocation2 + $0x80] sm:$0xff] %vm400, 0.0
        %419 = vst.msk [vmem:[#allocation2 + $0x88] sm:$0x3] %vm403, 0.0
        %420 = vst.msk [vmem:[#allocation2 + $0x90] sm:$0xff] %vm400, 0.0
        %421 = vst.msk [vmem:[#allocation2 + $0x98] sm:$0xff] %vm400, 0.0
        %422 = vst.msk [vmem:[#allocation2 + $0xa0] sm:$0x3] %vm403, 0.0
        %423 = vst.msk [vmem:[#allocation2 + $0xa8] sm:$0xff] %vm400, 0.0
        %424 = vst.msk [vmem:[#allocation2 + $0xb0] sm:$0xff] %vm400, 0.0
        %425 = vst.msk [vmem:[#allocation2 + $0xb8] sm:$0x3] %vm403, 0.0
        %426 = vst.msk [vmem:[#allocation2 + $0xc0] sm:$0xff] %vm400, 0.0
        %427 = vst.msk [vmem:[#allocation2 + $0xc8] sm:$0xff] %vm400, 0.0
        %428 = vst.msk [vmem:[#allocation2 + $0xd0] sm:$0x3] %vm403, 0.0
        %429 = vst.msk [vmem:[#allocation2 + $0xd8] sm:$0xff] %vm400, 0.0
        %430 = vst.msk [vmem:[#allocation2 + $0xe0] sm:$0xff] %vm400, 0.0
        %431 = vst.msk [vmem:[#allocation2 + $0xe8] sm:$0x3] %vm403, 0.0
        %432 = vst.msk [vmem:[#allocation2 + $0xf0] sm:$0xff] %vm400, 0.0
        %433 = vst.msk [vmem:[#allocation2 + $0xf8] sm:$0xff] %vm400, 0.0
        %434 = vst.msk [vmem:[#allocation2 + $0x100] sm:$0x3] %vm403, 0.0
        %435 = vst.msk [vmem:[#allocation2 + $0x108] sm:$0xff] %vm400, 0.0
        %436 = vst.msk [vmem:[#allocation2 + $0x110] sm:$0xff] %vm400, 0.0
        %437 = vst.msk [vmem:[#allocation2 + $0x118] sm:$0x3] %vm403, 0.0
        %438 = vst.msk [vmem:[#allocation2 + $0x120] sm:$0xff] %vm400, 0.0
        %439 = vst.msk [vmem:[#allocation2 + $0x128] sm:$0xff] %vm400, 0.0
        %440 = vst.msk [vmem:[#allocation2 + $0x130] sm:$0x3] %vm403, 0.0
        %441 = vst.msk [vmem:[#allocation2 + $0x138] sm:$0xff] %vm400, 0.0
        %442 = vst.msk [vmem:[#allocation2 + $0x140] sm:$0xff] %vm400, 0.0
        %443 = vst.msk [vmem:[#allocation2 + $0x148] sm:$0x3] %vm403, 0.0
        %444 = vst.msk [vmem:[#allocation2 + $0x150] sm:$0xff] %vm400, 0.0
        %445 = vst.msk [vmem:[#allocation2 + $0x158] sm:$0xff] %vm400, 0.0
        %446 = vst.msk [vmem:[#allocation2 + $0x160] sm:$0x3] %vm403, 0.0
        %447 = vst.msk [vmem:[#allocation2 + $0x168] sm:$0xff] %vm400, 0.0
        %448 = vst.msk [vmem:[#allocation2 + $0x170] sm:$0xff] %vm400, 0.0
        %449 = vst.msk [vmem:[#allocation2 + $0x178] sm:$0x3] %vm403, 0.0
        %450 = vst.msk [vmem:[#allocation2 + $0x180] sm:$0xff] %vm400, 0.0
        %451 = vst.msk [vmem:[#allocation2 + $0x188] sm:$0xff] %vm400, 0.0
        %452 = vst.msk [vmem:[#allocation2 + $0x190] sm:$0x3] %vm403, 0.0
        %453 = vst.msk [vmem:[#allocation2 + $0x198] sm:$0xff] %vm400, 0.0
        %454 = vst.msk [vmem:[#allocation2 + $0x1a0] sm:$0xff] %vm400, 0.0
        %455 = vst.msk [vmem:[#allocation2 + $0x1a8] sm:$0x3] %vm403, 0.0
        %s456 = scalar_lea.vmem [#allocation2], 24
        %457 = vst.msk [vmem:[%s456 + $0x1] sm:$0xff] %vm400, %v368
        %458 = vst.msk [vmem:[%s456 + $0x9] sm:$0xff] %vm400, %v369
        %459 = vst.msk [vmem:[%s456 + $0x19] sm:$0xff] %vm400, %v370
        %460 = vst.msk [vmem:[%s456 + $0x21] sm:$0xff] %vm400, %v371
        %461 = vst.msk [vmem:[%s456 + $0x31] sm:$0xff] %vm400, %v372
        %462 = vst.msk [vmem:[%s456 + $0x39] sm:$0xff] %vm400, %v373
        %463 = vst.msk [vmem:[%s456 + $0x49] sm:$0xff] %vm400, %v374
        %464 = vst.msk [vmem:[%s456 + $0x51] sm:$0xff] %vm400, %v375
        %465 = vst.msk [vmem:[%s456 + $0x61] sm:$0xff] %vm400, %v376
        %466 = vst.msk [vmem:[%s456 + $0x69] sm:$0xff] %vm400, %v377
        %467 = vst.msk [vmem:[%s456 + $0x79] sm:$0xff] %vm400, %v378
        %468 = vst.msk [vmem:[%s456 + $0x81] sm:$0xff] %vm400, %v379
        %469 = vst.msk [vmem:[%s456 + $0x91] sm:$0xff] %vm400, %v380
        %470 = vst.msk [vmem:[%s456 + $0x99] sm:$0xff] %vm400, %v381
        %471 = vst.msk [vmem:[%s456 + $0xa9] sm:$0xff] %vm400, %v382
        %472 = vst.msk [vmem:[%s456 + $0xb1] sm:$0xff] %vm400, %v383
        %473 = vst.msk [vmem:[%s456 + $0xc1] sm:$0xff] %vm400, %v384
        %474 = vst.msk [vmem:[%s456 + $0xc9] sm:$0xff] %vm400, %v385
        %475 = vst.msk [vmem:[%s456 + $0xd9] sm:$0xff] %vm400, %v386
        %476 = vst.msk [vmem:[%s456 + $0xe1] sm:$0xff] %vm400, %v387
        %477 = vst.msk [vmem:[%s456 + $0xf1] sm:$0xff] %vm400, %v388
        %478 = vst.msk [vmem:[%s456 + $0xf9] sm:$0xff] %vm400, %v389
        %479 = vst.msk [vmem:[%s456 + $0x109] sm:$0xff] %vm400, %v390
        %480 = vst.msk [vmem:[%s456 + $0x111] sm:$0xff] %vm400, %v391
        %481 = vst.msk [vmem:[%s456 + $0x121] sm:$0xff] %vm400, %v392
        %482 = vst.msk [vmem:[%s456 + $0x129] sm:$0xff] %vm400, %v393
        %483 = vst.msk [vmem:[%s456 + $0x139] sm:$0xff] %vm400, %v394
        %484 = vst.msk [vmem:[%s456 + $0x141] sm:$0xff] %vm400, %v395
        %485 = vst.msk [vmem:[%s456 + $0x151] sm:$0xff] %vm400, %v396
        %486 = vst.msk [vmem:[%s456 + $0x159] sm:$0xff] %vm400, %v397
        %487 = vst.msk [vmem:[%s456 + $0x169] sm:$0xff] %vm400, %v398
        %488 = vst.msk [vmem:[%s456 + $0x171] sm:$0xff] %vm400, %v399
        %v489 = vld [vmem:[#allocation2] sm:$0xff]
        %v490 = vld [vmem:[#allocation2 + $0x8] sm:$0xff]
        %v491 = vld [vmem:[#allocation2 + $0x18] sm:$0xff]
        %v492 = vld [vmem:[#allocation2 + $0x20] sm:$0xff]
        %v493 = vld [vmem:[#allocation2 + $0x30] sm:$0xff]
        %v494 = vld [vmem:[#allocation2 + $0x38] sm:$0xff]
        %v495 = vld [vmem:[#allocation2 + $0x48] sm:$0xff]
        %v496 = vld [vmem:[#allocation2 + $0x50] sm:$0xff]
        %v497 = vld [vmem:[#allocation2 + $0x60] sm:$0xff]
        %v498 = vld [vmem:[#allocation2 + $0x68] sm:$0xff]
        %v499 = vld [vmem:[#allocation2 + $0x78] sm:$0xff]
        %v500 = vld [vmem:[#allocation2 + $0x80] sm:$0xff]
        %v501 = vld [vmem:[#allocation2 + $0x90] sm:$0xff]
        %v502 = vld [vmem:[#allocation2 + $0x98] sm:$0xff]
        %v503 = vld [vmem:[#allocation2 + $0xa8] sm:$0xff]
        %v504 = vld [vmem:[#allocation2 + $0xb0] sm:$0xff]
        %v505 = vld [vmem:[#allocation2 + $0xc0] sm:$0xff]
        %v506 = vld [vmem:[#allocation2 + $0xc8] sm:$0xff]
        %v507 = vld [vmem:[#allocation2 + $0xd8] sm:$0xff]
        %v508 = vld [vmem:[#allocation2 + $0xe0] sm:$0xff]
        %v509 = vld [vmem:[#allocation2 + $0xf0] sm:$0xff]
        %v510 = vld [vmem:[#allocation2 + $0xf8] sm:$0xff]
        %v511 = vld [vmem:[#allocation2 + $0x108] sm:$0xff]
        %v512 = vld [vmem:[#allocation2 + $0x110] sm:$0xff]
        %v513 = vld [vmem:[#allocation2 + $0x120] sm:$0xff]
        %v514 = vld [vmem:[#allocation2 + $0x128] sm:$0xff]
        %v515 = vld [vmem:[#allocation2 + $0x138] sm:$0xff]
        %v516 = vld [vmem:[#allocation2 + $0x140] sm:$0xff]
        %v517 = vld [vmem:[#allocation2 + $0x150] sm:$0xff]
        %v518 = vld [vmem:[#allocation2 + $0x158] sm:$0xff]
        %v519 = vld [vmem:[#allocation2 + $0x168] sm:$0xff]
        %v520 = vld [vmem:[#allocation2 + $0x170] sm:$0xff]
        %521 = vst.msk [vmem:[#allocation4] sm:$0xff] %vm400, %v489
        %522 = vst.msk [vmem:[#allocation4 + $0x8] sm:$0xff] %vm400, %v490
        %523 = vst.msk [vmem:[#allocation4 + $0x10] sm:$0xff] %vm400, %v491
        %524 = vst.msk [vmem:[#allocation4 + $0x18] sm:$0xff] %vm400, %v492
        %525 = vst.msk [vmem:[#allocation4 + $0x20] sm:$0xff] %vm400, %v493
        %526 = vst.msk [vmem:[#allocation4 + $0x28] sm:$0xff] %vm400, %v494
        %527 = vst.msk [vmem:[#allocation4 + $0x30] sm:$0xff] %vm400, %v495
        %528 = vst.msk [vmem:[#allocation4 + $0x38] sm:$0xff] %vm400, %v496
        %529 = vst.msk [vmem:[#allocation4 + $0x40] sm:$0xff] %vm400, %v497
        %530 = vst.msk [vmem:[#allocation4 + $0x48] sm:$0xff] %vm400, %v498
        %531 = vst.msk [vmem:[#allocation4 + $0x50] sm:$0xff] %vm400, %v499
        %532 = vst.msk [vmem:[#allocation4 + $0x58] sm:$0xff] %vm400, %v500
        %533 = vst.msk [vmem:[#allocation4 + $0x60] sm:$0xff] %vm400, %v501
        %534 = vst.msk [vmem:[#allocation4 + $0x68] sm:$0xff] %vm400, %v502
        %535 = vst.msk [vmem:[#allocation4 + $0x70] sm:$0xff] %vm400, %v503
        %536 = vst.msk [vmem:[#allocation4 + $0x78] sm:$0xff] %vm400, %v504
        %537 = vst.msk [vmem:[#allocation4 + $0x80] sm:$0xff] %vm400, %v505
        %538 = vst.msk [vmem:[#allocation4 + $0x88] sm:$0xff] %vm400, %v506
        %539 = vst.msk [vmem:[#allocation4 + $0x90] sm:$0xff] %vm400, %v507
        %540 = vst.msk [vmem:[#allocation4 + $0x98] sm:$0xff] %vm400, %v508
        %541 = vst.msk [vmem:[#allocation4 + $0xa0] sm:$0xff] %vm400, %v509
        %542 = vst.msk [vmem:[#allocation4 + $0xa8] sm:$0xff] %vm400, %v510
        %543 = vst.msk [vmem:[#allocation4 + $0xb0] sm:$0xff] %vm400, %v511
        %544 = vst.msk [vmem:[#allocation4 + $0xb8] sm:$0xff] %vm400, %v512
        %545 = vst.msk [vmem:[#allocation4 + $0xc0] sm:$0xff] %vm400, %v513
        %546 = vst.msk [vmem:[#allocation4 + $0xc8] sm:$0xff] %vm400, %v514
        %547 = vst.msk [vmem:[#allocation4 + $0xd0] sm:$0xff] %vm400, %v515
        %548 = vst.msk [vmem:[#allocation4 + $0xd8] sm:$0xff] %vm400, %v516
        %549 = vst.msk [vmem:[#allocation4 + $0xe0] sm:$0xff] %vm400, %v517
        %550 = vst.msk [vmem:[#allocation4 + $0xe8] sm:$0xff] %vm400, %v518
        %551 = vst.msk [vmem:[#allocation4 + $0xf0] sm:$0xff] %vm400, %v519
        %552 = vst.msk [vmem:[#allocation4 + $0xf8] sm:$0xff] %vm400, %v520
        %v553 = vld [vmem:[#allocation2 + $0x1] sm:$0xff]
        %v554 = vld [vmem:[#allocation2 + $0x9] sm:$0xff]
        %v555 = vld [vmem:[#allocation2 + $0x19] sm:$0xff]
        %v556 = vld [vmem:[#allocation2 + $0x21] sm:$0xff]
        %v557 = vld [vmem:[#allocation2 + $0x31] sm:$0xff]
        %v558 = vld [vmem:[#allocation2 + $0x39] sm:$0xff]
        %v559 = vld [vmem:[#allocation2 + $0x49] sm:$0xff]
        %v560 = vld [vmem:[#allocation2 + $0x51] sm:$0xff]
        %v561 = vld [vmem:[#allocation2 + $0x61] sm:$0xff]
        %v562 = vld [vmem:[#allocation2 + $0x69] sm:$0xff]
        %v563 = vld [vmem:[#allocation2 + $0x79] sm:$0xff]
        %v564 = vld [vmem:[#allocation2 + $0x81] sm:$0xff]
        %v565 = vld [vmem:[#allocation2 + $0x91] sm:$0xff]
        %v566 = vld [vmem:[#allocation2 + $0x99] sm:$0xff]
        %v567 = vld [vmem:[#allocation2 + $0xa9] sm:$0xff]
        %v568 = vld [vmem:[#allocation2 + $0xb1] sm:$0xff]
        %v569 = vld [vmem:[#allocation2 + $0xc1] sm:$0xff]
        %v570 = vld [vmem:[#allocation2 + $0xc9] sm:$0xff]
        %v571 = vld [vmem:[#allocation2 + $0xd9] sm:$0xff]
        %v572 = vld [vmem:[#allocation2 + $0xe1] sm:$0xff]
        %v573 = vld [vmem:[#allocation2 + $0xf1] sm:$0xff]
        %v574 = vld [vmem:[#allocation2 + $0xf9] sm:$0xff]
        %v575 = vld [vmem:[#allocation2 + $0x109] sm:$0xff]
        %v576 = vld [vmem:[#allocation2 + $0x111] sm:$0xff]
        %v577 = vld [vmem:[#allocation2 + $0x121] sm:$0xff]
        %v578 = vld [vmem:[#allocation2 + $0x129] sm:$0xff]
        %v579 = vld [vmem:[#allocation2 + $0x139] sm:$0xff]
        %v580 = vld [vmem:[#allocation2 + $0x141] sm:$0xff]
        %v581 = vld [vmem:[#allocation2 + $0x151] sm:$0xff]
        %v582 = vld [vmem:[#allocation2 + $0x159] sm:$0xff]
        %v583 = vld [vmem:[#allocation2 + $0x169] sm:$0xff]
        %v584 = vld [vmem:[#allocation2 + $0x171] sm:$0xff]
        %617 = vrot.lane.b32.xlu0 %v553, 4
        %v618 = vpop.permute.xlu0 %617
        %619 = vrot.lane.b32.xlu0 %v554, 4
        %v620 = vpop.permute.xlu0 %619
        %621 = vrot.lane.b32.xlu0 %v555, 4
        %v622 = vpop.permute.xlu0 %621
        %623 = vrot.lane.b32.xlu0 %v556, 4
        %v624 = vpop.permute.xlu0 %623
        %625 = vrot.lane.b32.xlu0 %v557, 4
        %v626 = vpop.permute.xlu0 %625
        %627 = vrot.lane.b32.xlu0 %v558, 4
        %v628 = vpop.permute.xlu0 %627
        %629 = vrot.lane.b32.xlu0 %v559, 4
        %v630 = vpop.permute.xlu0 %629
        %631 = vrot.lane.b32.xlu0 %v560, 4
        %v632 = vpop.permute.xlu0 %631
        %633 = vrot.lane.b32.xlu0 %v561, 4
        %v634 = vpop.permute.xlu0 %633
        %635 = vrot.lane.b32.xlu0 %v562, 4
        %v636 = vpop.permute.xlu0 %635
        %637 = vrot.lane.b32.xlu0 %v563, 4
        %v638 = vpop.permute.xlu0 %637
        %639 = vrot.lane.b32.xlu0 %v564, 4
        %v640 = vpop.permute.xlu0 %639
        %641 = vrot.lane.b32.xlu0 %v565, 4
        %v642 = vpop.permute.xlu0 %641
        %643 = vrot.lane.b32.xlu0 %v566, 4
        %v644 = vpop.permute.xlu0 %643
        %645 = vrot.lane.b32.xlu0 %v567, 4
        %v646 = vpop.permute.xlu0 %645
        %647 = vrot.lane.b32.xlu0 %v568, 4
        %v648 = vpop.permute.xlu0 %647
        %649 = vrot.lane.b32.xlu0 %v569, 4
        %v650 = vpop.permute.xlu0 %649
        %651 = vrot.lane.b32.xlu0 %v570, 4
        %v652 = vpop.permute.xlu0 %651
        %653 = vrot.lane.b32.xlu0 %v571, 4
        %v654 = vpop.permute.xlu0 %653
        %655 = vrot.lane.b32.xlu0 %v572, 4
        %v656 = vpop.permute.xlu0 %655
        %657 = vrot.lane.b32.xlu0 %v573, 4
        %v658 = vpop.permute.xlu0 %657
        %659 = vrot.lane.b32.xlu0 %v574, 4
        %v660 = vpop.permute.xlu0 %659
        %661 = vrot.lane.b32.xlu0 %v575, 4
        %v662 = vpop.permute.xlu0 %661
        %663 = vrot.lane.b32.xlu0 %v576, 4
        %v664 = vpop.permute.xlu0 %663
        %665 = vrot.lane.b32.xlu0 %v577, 4
        %v666 = vpop.permute.xlu0 %665
        %667 = vrot.lane.b32.xlu0 %v578, 4
        %v668 = vpop.permute.xlu0 %667
        %669 = vrot.lane.b32.xlu0 %v579, 4
        %v670 = vpop.permute.xlu0 %669
        %671 = vrot.lane.b32.xlu0 %v580, 4
        %v672 = vpop.permute.xlu0 %671
        %673 = vrot.lane.b32.xlu0 %v581, 4
        %v674 = vpop.permute.xlu0 %673
        %675 = vrot.lane.b32.xlu0 %v582, 4
        %v676 = vpop.permute.xlu0 %675
        %677 = vrot.lane.b32.xlu0 %v583, 4
        %v678 = vpop.permute.xlu0 %677
        %679 = vrot.lane.b32.xlu0 %v584, 4
        %v680 = vpop.permute.xlu0 %679
        %vm713 = vcmask 64544
        %714 = vst.msk [vmem:[#allocation4] sm:$0xff] %vm713, %v618
        %715 = vst.msk [vmem:[#allocation4 + $0x8] sm:$0xff] %vm713, %v620
        %716 = vst.msk [vmem:[#allocation4 + $0x10] sm:$0xff] %vm713, %v622
        %717 = vst.msk [vmem:[#allocation4 + $0x18] sm:$0xff] %vm713, %v624
        %718 = vst.msk [vmem:[#allocation4 + $0x20] sm:$0xff] %vm713, %v626
        %719 = vst.msk [vmem:[#allocation4 + $0x28] sm:$0xff] %vm713, %v628
        %720 = vst.msk [vmem:[#allocation4 + $0x30] sm:$0xff] %vm713, %v630
        %721 = vst.msk [vmem:[#allocation4 + $0x38] sm:$0xff] %vm713, %v632
        %722 = vst.msk [vmem:[#allocation4 + $0x40] sm:$0xff] %vm713, %v634
        %723 = vst.msk [vmem:[#allocation4 + $0x48] sm:$0xff] %vm713, %v636
        %724 = vst.msk [vmem:[#allocation4 + $0x50] sm:$0xff] %vm713, %v638
        %725 = vst.msk [vmem:[#allocation4 + $0x58] sm:$0xff] %vm713, %v640
        %726 = vst.msk [vmem:[#allocation4 + $0x60] sm:$0xff] %vm713, %v642
        %727 = vst.msk [vmem:[#allocation4 + $0x68] sm:$0xff] %vm713, %v644
        %728 = vst.msk [vmem:[#allocation4 + $0x70] sm:$0xff] %vm713, %v646
        %729 = vst.msk [vmem:[#allocation4 + $0x78] sm:$0xff] %vm713, %v648
        %730 = vst.msk [vmem:[#allocation4 + $0x80] sm:$0xff] %vm713, %v650
        %731 = vst.msk [vmem:[#allocation4 + $0x88] sm:$0xff] %vm713, %v652
        %732 = vst.msk [vmem:[#allocation4 + $0x90] sm:$0xff] %vm713, %v654
        %733 = vst.msk [vmem:[#allocation4 + $0x98] sm:$0xff] %vm713, %v656
        %734 = vst.msk [vmem:[#allocation4 + $0xa0] sm:$0xff] %vm713, %v658
        %735 = vst.msk [vmem:[#allocation4 + $0xa8] sm:$0xff] %vm713, %v660
        %736 = vst.msk [vmem:[#allocation4 + $0xb0] sm:$0xff] %vm713, %v662
        %737 = vst.msk [vmem:[#allocation4 + $0xb8] sm:$0xff] %vm713, %v664
        %738 = vst.msk [vmem:[#allocation4 + $0xc0] sm:$0xff] %vm713, %v666
        %739 = vst.msk [vmem:[#allocation4 + $0xc8] sm:$0xff] %vm713, %v668
        %740 = vst.msk [vmem:[#allocation4 + $0xd0] sm:$0xff] %vm713, %v670
        %741 = vst.msk [vmem:[#allocation4 + $0xd8] sm:$0xff] %vm713, %v672
        %742 = vst.msk [vmem:[#allocation4 + $0xe0] sm:$0xff] %vm713, %v674
        %743 = vst.msk [vmem:[#allocation4 + $0xe8] sm:$0xff] %vm713, %v676
        %744 = vst.msk [vmem:[#allocation4 + $0xf0] sm:$0xff] %vm713, %v678
        %745 = vst.msk [vmem:[#allocation4 + $0xf8] sm:$0xff] %vm713, %v680
        %v746 = vld [vmem:[#allocation2 + $0x2] sm:$0xff]
        %v747 = vld [vmem:[#allocation2 + $0xa] sm:$0xff]
        %v748 = vld [vmem:[#allocation2 + $0x1a] sm:$0xff]
        %v749 = vld [vmem:[#allocation2 + $0x22] sm:$0xff]
        %v750 = vld [vmem:[#allocation2 + $0x32] sm:$0xff]
        %v751 = vld [vmem:[#allocation2 + $0x3a] sm:$0xff]
        %v752 = vld [vmem:[#allocation2 + $0x4a] sm:$0xff]
        %v753 = vld [vmem:[#allocation2 + $0x52] sm:$0xff]
        %v754 = vld [vmem:[#allocation2 + $0x62] sm:$0xff]
        %v755 = vld [vmem:[#allocation2 + $0x6a] sm:$0xff]
        %v756 = vld [vmem:[#allocation2 + $0x7a] sm:$0xff]
        %v757 = vld [vmem:[#allocation2 + $0x82] sm:$0xff]
        %v758 = vld [vmem:[#allocation2 + $0x92] sm:$0xff]
        %v759 = vld [vmem:[#allocation2 + $0x9a] sm:$0xff]
        %v760 = vld [vmem:[#allocation2 + $0xaa] sm:$0xff]
        %v761 = vld [vmem:[#allocation2 + $0xb2] sm:$0xff]
        %v762 = vld [vmem:[#allocation2 + $0xc2] sm:$0xff]
        %v763 = vld [vmem:[#allocation2 + $0xca] sm:$0xff]
        %v764 = vld [vmem:[#allocation2 + $0xda] sm:$0xff]
        %v765 = vld [vmem:[#allocation2 + $0xe2] sm:$0xff]
        %v766 = vld [vmem:[#allocation2 + $0xf2] sm:$0xff]
        %v767 = vld [vmem:[#allocation2 + $0xfa] sm:$0xff]
        %v768 = vld [vmem:[#allocation2 + $0x10a] sm:$0xff]
        %v769 = vld [vmem:[#allocation2 + $0x112] sm:$0xff]
        %v770 = vld [vmem:[#allocation2 + $0x122] sm:$0xff]
        %v771 = vld [vmem:[#allocation2 + $0x12a] sm:$0xff]
        %v772 = vld [vmem:[#allocation2 + $0x13a] sm:$0xff]
        %v773 = vld [vmem:[#allocation2 + $0x142] sm:$0xff]
        %v774 = vld [vmem:[#allocation2 + $0x152] sm:$0xff]
        %v775 = vld [vmem:[#allocation2 + $0x15a] sm:$0xff]
        %v776 = vld [vmem:[#allocation2 + $0x16a] sm:$0xff]
        %v777 = vld [vmem:[#allocation2 + $0x172] sm:$0xff]
        %810 = vrot.lane.b32.xlu0 %v746, 8
        %v811 = vpop.permute.xlu0 %810
        %812 = vrot.lane.b32.xlu0 %v747, 8
        %v813 = vpop.permute.xlu0 %812
        %814 = vrot.lane.b32.xlu0 %v748, 8
        %v815 = vpop.permute.xlu0 %814
        %816 = vrot.lane.b32.xlu0 %v749, 8
        %v817 = vpop.permute.xlu0 %816
        %818 = vrot.lane.b32.xlu0 %v750, 8
        %v819 = vpop.permute.xlu0 %818
        %820 = vrot.lane.b32.xlu0 %v751, 8
        %v821 = vpop.permute.xlu0 %820
        %822 = vrot.lane.b32.xlu0 %v752, 8
        %v823 = vpop.permute.xlu0 %822
        %824 = vrot.lane.b32.xlu0 %v753, 8
        %v825 = vpop.permute.xlu0 %824
        %826 = vrot.lane.b32.xlu0 %v754, 8
        %v827 = vpop.permute.xlu0 %826
        %828 = vrot.lane.b32.xlu0 %v755, 8
        %v829 = vpop.permute.xlu0 %828
        %830 = vrot.lane.b32.xlu0 %v756, 8
        %v831 = vpop.permute.xlu0 %830
        %832 = vrot.lane.b32.xlu0 %v757, 8
        %v833 = vpop.permute.xlu0 %832
        %834 = vrot.lane.b32.xlu0 %v758, 8
        %v835 = vpop.permute.xlu0 %834
        %836 = vrot.lane.b32.xlu0 %v759, 8
        %v837 = vpop.permute.xlu0 %836
        %838 = vrot.lane.b32.xlu0 %v760, 8
        %v839 = vpop.permute.xlu0 %838
        %840 = vrot.lane.b32.xlu0 %v761, 8
        %v841 = vpop.permute.xlu0 %840
        %842 = vrot.lane.b32.xlu0 %v762, 8
        %v843 = vpop.permute.xlu0 %842
        %844 = vrot.lane.b32.xlu0 %v763, 8
        %v845 = vpop.permute.xlu0 %844
        %846 = vrot.lane.b32.xlu0 %v764, 8
        %v847 = vpop.permute.xlu0 %846
        %848 = vrot.lane.b32.xlu0 %v765, 8
        %v849 = vpop.permute.xlu0 %848
        %850 = vrot.lane.b32.xlu0 %v766, 8
        %v851 = vpop.permute.xlu0 %850
        %852 = vrot.lane.b32.xlu0 %v767, 8
        %v853 = vpop.permute.xlu0 %852
        %854 = vrot.lane.b32.xlu0 %v768, 8
        %v855 = vpop.permute.xlu0 %854
        %856 = vrot.lane.b32.xlu0 %v769, 8
        %v857 = vpop.permute.xlu0 %856
        %858 = vrot.lane.b32.xlu0 %v770, 8
        %v859 = vpop.permute.xlu0 %858
        %860 = vrot.lane.b32.xlu0 %v771, 8
        %v861 = vpop.permute.xlu0 %860
        %862 = vrot.lane.b32.xlu0 %v772, 8
        %v863 = vpop.permute.xlu0 %862
        %864 = vrot.lane.b32.xlu0 %v773, 8
        %v865 = vpop.permute.xlu0 %864
        %866 = vrot.lane.b32.xlu0 %v774, 8
        %v867 = vpop.permute.xlu0 %866
        %868 = vrot.lane.b32.xlu0 %v775, 8
        %v869 = vpop.permute.xlu0 %868
        %870 = vrot.lane.b32.xlu0 %v776, 8
        %v871 = vpop.permute.xlu0 %870
        %872 = vrot.lane.b32.xlu0 %v777, 8
        %v873 = vpop.permute.xlu0 %872
        %vm906 = vcmask 97344
        %907 = vst.msk [vmem:[#allocation4] sm:$0xff] %vm906, %v811
        %908 = vst.msk [vmem:[#allocation4 + $0x8] sm:$0xff] %vm906, %v813
        %909 = vst.msk [vmem:[#allocation4 + $0x10] sm:$0xff] %vm906, %v815
        %910 = vst.msk [vmem:[#allocation4 + $0x18] sm:$0xff] %vm906, %v817
        %911 = vst.msk [vmem:[#allocation4 + $0x20] sm:$0xff] %vm906, %v819
        %912 = vst.msk [vmem:[#allocation4 + $0x28] sm:$0xff] %vm906, %v821
        %913 = vst.msk [vmem:[#allocation4 + $0x30] sm:$0xff] %vm906, %v823
        %914 = vst.msk [vmem:[#allocation4 + $0x38] sm:$0xff] %vm906, %v825
        %915 = vst.msk [vmem:[#allocation4 + $0x40] sm:$0xff] %vm906, %v827
        %916 = vst.msk [vmem:[#allocation4 + $0x48] sm:$0xff] %vm906, %v829
        %917 = vst.msk [vmem:[#allocation4 + $0x50] sm:$0xff] %vm906, %v831
        %918 = vst.msk [vmem:[#allocation4 + $0x58] sm:$0xff] %vm906, %v833
        %919 = vst.msk [vmem:[#allocation4 + $0x60] sm:$0xff] %vm906, %v835
        %920 = vst.msk [vmem:[#allocation4 + $0x68] sm:$0xff] %vm906, %v837
        %921 = vst.msk [vmem:[#allocation4 + $0x70] sm:$0xff] %vm906, %v839
        %922 = vst.msk [vmem:[#allocation4 + $0x78] sm:$0xff] %vm906, %v841
        %923 = vst.msk [vmem:[#allocation4 + $0x80] sm:$0xff] %vm906, %v843
        %924 = vst.msk [vmem:[#allocation4 + $0x88] sm:$0xff] %vm906, %v845
        %925 = vst.msk [vmem:[#allocation4 + $0x90] sm:$0xff] %vm906, %v847
        %926 = vst.msk [vmem:[#allocation4 + $0x98] sm:$0xff] %vm906, %v849
        %927 = vst.msk [vmem:[#allocation4 + $0xa0] sm:$0xff] %vm906, %v851
        %928 = vst.msk [vmem:[#allocation4 + $0xa8] sm:$0xff] %vm906, %v853
        %929 = vst.msk [vmem:[#allocation4 + $0xb0] sm:$0xff] %vm906, %v855
        %930 = vst.msk [vmem:[#allocation4 + $0xb8] sm:$0xff] %vm906, %v857
        %931 = vst.msk [vmem:[#allocation4 + $0xc0] sm:$0xff] %vm906, %v859
        %932 = vst.msk [vmem:[#allocation4 + $0xc8] sm:$0xff] %vm906, %v861
        %933 = vst.msk [vmem:[#allocation4 + $0xd0] sm:$0xff] %vm906, %v863
        %934 = vst.msk [vmem:[#allocation4 + $0xd8] sm:$0xff] %vm906, %v865
        %935 = vst.msk [vmem:[#allocation4 + $0xe0] sm:$0xff] %vm906, %v867
        %936 = vst.msk [vmem:[#allocation4 + $0xe8] sm:$0xff] %vm906, %v869
        %937 = vst.msk [vmem:[#allocation4 + $0xf0] sm:$0xff] %vm906, %v871
        %938 = vst.msk [vmem:[#allocation4 + $0xf8] sm:$0xff] %vm906, %v873
        %v939 = vld [vmem:[%s456] sm:$0xff]
        %v940 = vld [vmem:[%s456 + $0x8] sm:$0xff]
        %v941 = vld [vmem:[%s456 + $0x18] sm:$0xff]
        %v942 = vld [vmem:[%s456 + $0x20] sm:$0xff]
        %v943 = vld [vmem:[%s456 + $0x30] sm:$0xff]
        %v944 = vld [vmem:[%s456 + $0x38] sm:$0xff]
        %v945 = vld [vmem:[%s456 + $0x48] sm:$0xff]
        %v946 = vld [vmem:[%s456 + $0x50] sm:$0xff]
        %v947 = vld [vmem:[%s456 + $0x60] sm:$0xff]
        %v948 = vld [vmem:[%s456 + $0x68] sm:$0xff]
        %v949 = vld [vmem:[%s456 + $0x78] sm:$0xff]
        %v950 = vld [vmem:[%s456 + $0x80] sm:$0xff]
        %v951 = vld [vmem:[%s456 + $0x90] sm:$0xff]
        %v952 = vld [vmem:[%s456 + $0x98] sm:$0xff]
        %v953 = vld [vmem:[%s456 + $0xa8] sm:$0xff]
        %v954 = vld [vmem:[%s456 + $0xb0] sm:$0xff]
        %v955 = vld [vmem:[%s456 + $0xc0] sm:$0xff]
        %v956 = vld [vmem:[%s456 + $0xc8] sm:$0xff]
        %v957 = vld [vmem:[%s456 + $0xd8] sm:$0xff]
        %v958 = vld [vmem:[%s456 + $0xe0] sm:$0xff]
        %v959 = vld [vmem:[%s456 + $0xf0] sm:$0xff]
        %v960 = vld [vmem:[%s456 + $0xf8] sm:$0xff]
        %v961 = vld [vmem:[%s456 + $0x108] sm:$0xff]
        %v962 = vld [vmem:[%s456 + $0x110] sm:$0xff]
        %v963 = vld [vmem:[%s456 + $0x120] sm:$0xff]
        %v964 = vld [vmem:[%s456 + $0x128] sm:$0xff]
        %v965 = vld [vmem:[%s456 + $0x138] sm:$0xff]
        %v966 = vld [vmem:[%s456 + $0x140] sm:$0xff]
        %v967 = vld [vmem:[%s456 + $0x150] sm:$0xff]
        %v968 = vld [vmem:[%s456 + $0x158] sm:$0xff]
        %v969 = vld [vmem:[%s456 + $0x168] sm:$0xff]
        %v970 = vld [vmem:[%s456 + $0x170] sm:$0xff]
        %1003 = vrot.lane.b32.xlu0 %v939, 12
        %v1004 = vpop.permute.xlu0 %1003
        %1005 = vrot.lane.b32.xlu0 %v940, 12
        %v1006 = vpop.permute.xlu0 %1005
        %1007 = vrot.lane.b32.xlu0 %v941, 12
        %v1008 = vpop.permute.xlu0 %1007
        %1009 = vrot.lane.b32.xlu0 %v942, 12
        %v1010 = vpop.permute.xlu0 %1009
        %1011 = vrot.lane.b32.xlu0 %v943, 12
        %v1012 = vpop.permute.xlu0 %1011
        %1013 = vrot.lane.b32.xlu0 %v944, 12
        %v1014 = vpop.permute.xlu0 %1013
        %1015 = vrot.lane.b32.xlu0 %v945, 12
        %v1016 = vpop.permute.xlu0 %1015
        %1017 = vrot.lane.b32.xlu0 %v946, 12
        %v1018 = vpop.permute.xlu0 %1017
        %1019 = vrot.lane.b32.xlu0 %v947, 12
        %v1020 = vpop.permute.xlu0 %1019
        %1021 = vrot.lane.b32.xlu0 %v948, 12
        %v1022 = vpop.permute.xlu0 %1021
        %1023 = vrot.lane.b32.xlu0 %v949, 12
        %v1024 = vpop.permute.xlu0 %1023
        %1025 = vrot.lane.b32.xlu0 %v950, 12
        %v1026 = vpop.permute.xlu0 %1025
        %1027 = vrot.lane.b32.xlu0 %v951, 12
        %v1028 = vpop.permute.xlu0 %1027
        %1029 = vrot.lane.b32.xlu0 %v952, 12
        %v1030 = vpop.permute.xlu0 %1029
        %1031 = vrot.lane.b32.xlu0 %v953, 12
        %v1032 = vpop.permute.xlu0 %1031
        %1033 = vrot.lane.b32.xlu0 %v954, 12
        %v1034 = vpop.permute.xlu0 %1033
        %1035 = vrot.lane.b32.xlu0 %v955, 12
        %v1036 = vpop.permute.xlu0 %1035
        %1037 = vrot.lane.b32.xlu0 %v956, 12
        %v1038 = vpop.permute.xlu0 %1037
        %1039 = vrot.lane.b32.xlu0 %v957, 12
        %v1040 = vpop.permute.xlu0 %1039
        %1041 = vrot.lane.b32.xlu0 %v958, 12
        %v1042 = vpop.permute.xlu0 %1041
        %1043 = vrot.lane.b32.xlu0 %v959, 12
        %v1044 = vpop.permute.xlu0 %1043
        %1045 = vrot.lane.b32.xlu0 %v960, 12
        %v1046 = vpop.permute.xlu0 %1045
        %1047 = vrot.lane.b32.xlu0 %v961, 12
        %v1048 = vpop.permute.xlu0 %1047
        %1049 = vrot.lane.b32.xlu0 %v962, 12
        %v1050 = vpop.permute.xlu0 %1049
        %1051 = vrot.lane.b32.xlu0 %v963, 12
        %v1052 = vpop.permute.xlu0 %1051
        %1053 = vrot.lane.b32.xlu0 %v964, 12
        %v1054 = vpop.permute.xlu0 %1053
        %1055 = vrot.lane.b32.xlu0 %v965, 12
        %v1056 = vpop.permute.xlu0 %1055
        %1057 = vrot.lane.b32.xlu0 %v966, 12
        %v1058 = vpop.permute.xlu0 %1057
        %1059 = vrot.lane.b32.xlu0 %v967, 12
        %v1060 = vpop.permute.xlu0 %1059
        %1061 = vrot.lane.b32.xlu0 %v968, 12
        %v1062 = vpop.permute.xlu0 %1061
        %1063 = vrot.lane.b32.xlu0 %v969, 12
        %v1064 = vpop.permute.xlu0 %1063
        %1065 = vrot.lane.b32.xlu0 %v970, 12
        %v1066 = vpop.permute.xlu0 %1065
        %vm1099 = vcmask 130144
        %1100 = vst.msk [vmem:[#allocation4] sm:$0xff] %vm1099, %v1004
        %1101 = vst.msk [vmem:[#allocation4 + $0x8] sm:$0xff] %vm1099, %v1006
        %1102 = vst.msk [vmem:[#allocation4 + $0x10] sm:$0xff] %vm1099, %v1008
        %1103 = vst.msk [vmem:[#allocation4 + $0x18] sm:$0xff] %vm1099, %v1010
        %1104 = vst.msk [vmem:[#allocation4 + $0x20] sm:$0xff] %vm1099, %v1012
        %1105 = vst.msk [vmem:[#allocation4 + $0x28] sm:$0xff] %vm1099, %v1014
        %1106 = vst.msk [vmem:[#allocation4 + $0x30] sm:$0xff] %vm1099, %v1016
        %1107 = vst.msk [vmem:[#allocation4 + $0x38] sm:$0xff] %vm1099, %v1018
        %1108 = vst.msk [vmem:[#allocation4 + $0x40] sm:$0xff] %vm1099, %v1020
        %1109 = vst.msk [vmem:[#allocation4 + $0x48] sm:$0xff] %vm1099, %v1022
        %1110 = vst.msk [vmem:[#allocation4 + $0x50] sm:$0xff] %vm1099, %v1024
        %1111 = vst.msk [vmem:[#allocation4 + $0x58] sm:$0xff] %vm1099, %v1026
        %1112 = vst.msk [vmem:[#allocation4 + $0x60] sm:$0xff] %vm1099, %v1028
        %1113 = vst.msk [vmem:[#allocation4 + $0x68] sm:$0xff] %vm1099, %v1030
        %1114 = vst.msk [vmem:[#allocation4 + $0x70] sm:$0xff] %vm1099, %v1032
        %1115 = vst.msk [vmem:[#allocation4 + $0x78] sm:$0xff] %vm1099, %v1034
        %1116 = vst.msk [vmem:[#allocation4 + $0x80] sm:$0xff] %vm1099, %v1036
        %1117 = vst.msk [vmem:[#allocation4 + $0x88] sm:$0xff] %vm1099, %v1038
        %1118 = vst.msk [vmem:[#allocation4 + $0x90] sm:$0xff] %vm1099, %v1040
        %1119 = vst.msk [vmem:[#allocation4 + $0x98] sm:$0xff] %vm1099, %v1042
        %1120 = vst.msk [vmem:[#allocation4 + $0xa0] sm:$0xff] %vm1099, %v1044
        %1121 = vst.msk [vmem:[#allocation4 + $0xa8] sm:$0xff] %vm1099, %v1046
        %1122 = vst.msk [vmem:[#allocation4 + $0xb0] sm:$0xff] %vm1099, %v1048
        %1123 = vst.msk [vmem:[#allocation4 + $0xb8] sm:$0xff] %vm1099, %v1050
        %1124 = vst.msk [vmem:[#allocation4 + $0xc0] sm:$0xff] %vm1099, %v1052
        %1125 = vst.msk [vmem:[#allocation4 + $0xc8] sm:$0xff] %vm1099, %v1054
        %1126 = vst.msk [vmem:[#allocation4 + $0xd0] sm:$0xff] %vm1099, %v1056
        %1127 = vst.msk [vmem:[#allocation4 + $0xd8] sm:$0xff] %vm1099, %v1058
        %1128 = vst.msk [vmem:[#allocation4 + $0xe0] sm:$0xff] %vm1099, %v1060
        %1129 = vst.msk [vmem:[#allocation4 + $0xe8] sm:$0xff] %vm1099, %v1062
        %1130 = vst.msk [vmem:[#allocation4 + $0xf0] sm:$0xff] %vm1099, %v1064
        %1131 = vst.msk [vmem:[#allocation4 + $0xf8] sm:$0xff] %vm1099, %v1066
        %v1132 = vld [vmem:[%s456 + $0x1] sm:$0xff]
        %v1133 = vld [vmem:[%s456 + $0x9] sm:$0xff]
        %v1134 = vld [vmem:[%s456 + $0x19] sm:$0xff]
        %v1135 = vld [vmem:[%s456 + $0x21] sm:$0xff]
        %v1136 = vld [vmem:[%s456 + $0x31] sm:$0xff]
        %v1137 = vld [vmem:[%s456 + $0x39] sm:$0xff]
        %v1138 = vld [vmem:[%s456 + $0x49] sm:$0xff]
        %v1139 = vld [vmem:[%s456 + $0x51] sm:$0xff]
        %v1140 = vld [vmem:[%s456 + $0x61] sm:$0xff]
        %v1141 = vld [vmem:[%s456 + $0x69] sm:$0xff]
        %v1142 = vld [vmem:[%s456 + $0x79] sm:$0xff]
        %v1143 = vld [vmem:[%s456 + $0x81] sm:$0xff]
        %v1144 = vld [vmem:[%s456 + $0x91] sm:$0xff]
        %v1145 = vld [vmem:[%s456 + $0x99] sm:$0xff]
        %v1146 = vld [vmem:[%s456 + $0xa9] sm:$0xff]
        %v1147 = vld [vmem:[%s456 + $0xb1] sm:$0xff]
        %v1148 = vld [vmem:[%s456 + $0xc1] sm:$0xff]
        %v1149 = vld [vmem:[%s456 + $0xc9] sm:$0xff]
        %v1150 = vld [vmem:[%s456 + $0xd9] sm:$0xff]
        %v1151 = vld [vmem:[%s456 + $0xe1] sm:$0xff]
        %v1152 = vld [vmem:[%s456 + $0xf1] sm:$0xff]
        %v1153 = vld [vmem:[%s456 + $0xf9] sm:$0xff]
        %v1154 = vld [vmem:[%s456 + $0x109] sm:$0xff]
        %v1155 = vld [vmem:[%s456 + $0x111] sm:$0xff]
        %v1156 = vld [vmem:[%s456 + $0x121] sm:$0xff]
        %v1157 = vld [vmem:[%s456 + $0x129] sm:$0xff]
        %v1158 = vld [vmem:[%s456 + $0x139] sm:$0xff]
        %v1159 = vld [vmem:[%s456 + $0x141] sm:$0xff]
        %v1160 = vld [vmem:[%s456 + $0x151] sm:$0xff]
        %v1161 = vld [vmem:[%s456 + $0x159] sm:$0xff]
        %v1162 = vld [vmem:[%s456 + $0x169] sm:$0xff]
        %v1163 = vld [vmem:[%s456 + $0x171] sm:$0xff]
        %1196 = vrot.lane.b32.xlu0 %v1132, 16
        %v1197 = vpop.permute.xlu0 %1196
        %1198 = vrot.lane.b32.xlu0 %v1133, 16
        %v1199 = vpop.permute.xlu0 %1198
        %1200 = vrot.lane.b32.xlu0 %v1134, 16
        %v1201 = vpop.permute.xlu0 %1200
        %1202 = vrot.lane.b32.xlu0 %v1135, 16
        %v1203 = vpop.permute.xlu0 %1202
        %1204 = vrot.lane.b32.xlu0 %v1136, 16
        %v1205 = vpop.permute.xlu0 %1204
        %1206 = vrot.lane.b32.xlu0 %v1137, 16
        %v1207 = vpop.permute.xlu0 %1206
        %1208 = vrot.lane.b32.xlu0 %v1138, 16
        %v1209 = vpop.permute.xlu0 %1208
        %1210 = vrot.lane.b32.xlu0 %v1139, 16
        %v1211 = vpop.permute.xlu0 %1210
        %1212 = vrot.lane.b32.xlu0 %v1140, 16
        %v1213 = vpop.permute.xlu0 %1212
        %1214 = vrot.lane.b32.xlu0 %v1141, 16
        %v1215 = vpop.permute.xlu0 %1214
        %1216 = vrot.lane.b32.xlu0 %v1142, 16
        %v1217 = vpop.permute.xlu0 %1216
        %1218 = vrot.lane.b32.xlu0 %v1143, 16
        %v1219 = vpop.permute.xlu0 %1218
        %1220 = vrot.lane.b32.xlu0 %v1144, 16
        %v1221 = vpop.permute.xlu0 %1220
        %1222 = vrot.lane.b32.xlu0 %v1145, 16
        %v1223 = vpop.permute.xlu0 %1222
        %1224 = vrot.lane.b32.xlu0 %v1146, 16
        %v1225 = vpop.permute.xlu0 %1224
        %1226 = vrot.lane.b32.xlu0 %v1147, 16
        %v1227 = vpop.permute.xlu0 %1226
        %1228 = vrot.lane.b32.xlu0 %v1148, 16
        %v1229 = vpop.permute.xlu0 %1228
        %1230 = vrot.lane.b32.xlu0 %v1149, 16
        %v1231 = vpop.permute.xlu0 %1230
        %1232 = vrot.lane.b32.xlu0 %v1150, 16
        %v1233 = vpop.permute.xlu0 %1232
        %1234 = vrot.lane.b32.xlu0 %v1151, 16
        %v1235 = vpop.permute.xlu0 %1234
        %1236 = vrot.lane.b32.xlu0 %v1152, 16
        %v1237 = vpop.permute.xlu0 %1236
        %1238 = vrot.lane.b32.xlu0 %v1153, 16
        %v1239 = vpop.permute.xlu0 %1238
        %1240 = vrot.lane.b32.xlu0 %v1154, 16
        %v1241 = vpop.permute.xlu0 %1240
        %1242 = vrot.lane.b32.xlu0 %v1155, 16
        %v1243 = vpop.permute.xlu0 %1242
        %1244 = vrot.lane.b32.xlu0 %v1156, 16
        %v1245 = vpop.permute.xlu0 %1244
        %1246 = vrot.lane.b32.xlu0 %v1157, 16
        %v1247 = vpop.permute.xlu0 %1246
        %1248 = vrot.lane.b32.xlu0 %v1158, 16
        %v1249 = vpop.permute.xlu0 %1248
        %1250 = vrot.lane.b32.xlu0 %v1159, 16
        %v1251 = vpop.permute.xlu0 %1250
        %1252 = vrot.lane.b32.xlu0 %v1160, 16
        %v1253 = vpop.permute.xlu0 %1252
        %1254 = vrot.lane.b32.xlu0 %v1161, 16
        %v1255 = vpop.permute.xlu0 %1254
        %1256 = vrot.lane.b32.xlu0 %v1162, 16
        %v1257 = vpop.permute.xlu0 %1256
        %1258 = vrot.lane.b32.xlu0 %v1163, 16
        %v1259 = vpop.permute.xlu0 %1258
        %vm1292 = vcmask 162944
        %1293 = vst.msk [vmem:[#allocation4] sm:$0xff] %vm1292, %v1197
        %1294 = vst.msk [vmem:[#allocation4 + $0x8] sm:$0xff] %vm1292, %v1199
        %1295 = vst.msk [vmem:[#allocation4 + $0x10] sm:$0xff] %vm1292, %v1201
        %1296 = vst.msk [vmem:[#allocation4 + $0x18] sm:$0xff] %vm1292, %v1203
        %1297 = vst.msk [vmem:[#allocation4 + $0x20] sm:$0xff] %vm1292, %v1205
        %1298 = vst.msk [vmem:[#allocation4 + $0x28] sm:$0xff] %vm1292, %v1207
        %1299 = vst.msk [vmem:[#allocation4 + $0x30] sm:$0xff] %vm1292, %v1209
        %1300 = vst.msk [vmem:[#allocation4 + $0x38] sm:$0xff] %vm1292, %v1211
        %1301 = vst.msk [vmem:[#allocation4 + $0x40] sm:$0xff] %vm1292, %v1213
        %1302 = vst.msk [vmem:[#allocation4 + $0x48] sm:$0xff] %vm1292, %v1215
        %1303 = vst.msk [vmem:[#allocation4 + $0x50] sm:$0xff] %vm1292, %v1217
        %1304 = vst.msk [vmem:[#allocation4 + $0x58] sm:$0xff] %vm1292, %v1219
        %1305 = vst.msk [vmem:[#allocation4 + $0x60] sm:$0xff] %vm1292, %v1221
        %1306 = vst.msk [vmem:[#allocation4 + $0x68] sm:$0xff] %vm1292, %v1223
        %1307 = vst.msk [vmem:[#allocation4 + $0x70] sm:$0xff] %vm1292, %v1225
        %1308 = vst.msk [vmem:[#allocation4 + $0x78] sm:$0xff] %vm1292, %v1227
        %1309 = vst.msk [vmem:[#allocation4 + $0x80] sm:$0xff] %vm1292, %v1229
        %1310 = vst.msk [vmem:[#allocation4 + $0x88] sm:$0xff] %vm1292, %v1231
        %1311 = vst.msk [vmem:[#allocation4 + $0x90] sm:$0xff] %vm1292, %v1233
        %1312 = vst.msk [vmem:[#allocation4 + $0x98] sm:$0xff] %vm1292, %v1235
        %1313 = vst.msk [vmem:[#allocation4 + $0xa0] sm:$0xff] %vm1292, %v1237
        %1314 = vst.msk [vmem:[#allocation4 + $0xa8] sm:$0xff] %vm1292, %v1239
        %1315 = vst.msk [vmem:[#allocation4 + $0xb0] sm:$0xff] %vm1292, %v1241
        %1316 = vst.msk [vmem:[#allocation4 + $0xb8] sm:$0xff] %vm1292, %v1243
        %1317 = vst.msk [vmem:[#allocation4 + $0xc0] sm:$0xff] %vm1292, %v1245
        %1318 = vst.msk [vmem:[#allocation4 + $0xc8] sm:$0xff] %vm1292, %v1247
        %1319 = vst.msk [vmem:[#allocation4 + $0xd0] sm:$0xff] %vm1292, %v1249
        %1320 = vst.msk [vmem:[#allocation4 + $0xd8] sm:$0xff] %vm1292, %v1251
        %1321 = vst.msk [vmem:[#allocation4 + $0xe0] sm:$0xff] %vm1292, %v1253
        %1322 = vst.msk [vmem:[#allocation4 + $0xe8] sm:$0xff] %vm1292, %v1255
        %1323 = vst.msk [vmem:[#allocation4 + $0xf0] sm:$0xff] %vm1292, %v1257
        %1324 = vst.msk [vmem:[#allocation4 + $0xf8] sm:$0xff] %vm1292, %v1259
        %v1325 = vld [vmem:[%s456 + $0x2] sm:$0xff]
        %v1326 = vld [vmem:[%s456 + $0xa] sm:$0xff]
        %v1327 = vld [vmem:[%s456 + $0x1a] sm:$0xff]
        %v1328 = vld [vmem:[%s456 + $0x22] sm:$0xff]
        %v1329 = vld [vmem:[%s456 + $0x32] sm:$0xff]
        %v1330 = vld [vmem:[%s456 + $0x3a] sm:$0xff]
        %v1331 = vld [vmem:[%s456 + $0x4a] sm:$0xff]
        %v1332 = vld [vmem:[%s456 + $0x52] sm:$0xff]
        %v1333 = vld [vmem:[%s456 + $0x62] sm:$0xff]
        %v1334 = vld [vmem:[%s456 + $0x6a] sm:$0xff]
        %v1335 = vld [vmem:[%s456 + $0x7a] sm:$0xff]
        %v1336 = vld [vmem:[%s456 + $0x82] sm:$0xff]
        %v1337 = vld [vmem:[%s456 + $0x92] sm:$0xff]
        %v1338 = vld [vmem:[%s456 + $0x9a] sm:$0xff]
        %v1339 = vld [vmem:[%s456 + $0xaa] sm:$0xff]
        %v1340 = vld [vmem:[%s456 + $0xb2] sm:$0xff]
        %v1341 = vld [vmem:[%s456 + $0xc2] sm:$0xff]
        %v1342 = vld [vmem:[%s456 + $0xca] sm:$0xff]
        %v1343 = vld [vmem:[%s456 + $0xda] sm:$0xff]
        %v1344 = vld [vmem:[%s456 + $0xe2] sm:$0xff]
        %v1345 = vld [vmem:[%s456 + $0xf2] sm:$0xff]
        %v1346 = vld [vmem:[%s456 + $0xfa] sm:$0xff]
        %v1347 = vld [vmem:[%s456 + $0x10a] sm:$0xff]
        %v1348 = vld [vmem:[%s456 + $0x112] sm:$0xff]
        %v1349 = vld [vmem:[%s456 + $0x122] sm:$0xff]
        %v1350 = vld [vmem:[%s456 + $0x12a] sm:$0xff]
        %v1351 = vld [vmem:[%s456 + $0x13a] sm:$0xff]
        %v1352 = vld [vmem:[%s456 + $0x142] sm:$0xff]
        %v1353 = vld [vmem:[%s456 + $0x152] sm:$0xff]
        %v1354 = vld [vmem:[%s456 + $0x15a] sm:$0xff]
        %v1355 = vld [vmem:[%s456 + $0x16a] sm:$0xff]
        %v1356 = vld [vmem:[%s456 + $0x172] sm:$0xff]
        %1389 = vrot.lane.b32.xlu0 %v1325, 20
        %v1390 = vpop.permute.xlu0 %1389
        %1391 = vrot.lane.b32.xlu0 %v1326, 20
        %v1392 = vpop.permute.xlu0 %1391
        %1393 = vrot.lane.b32.xlu0 %v1327, 20
        %v1394 = vpop.permute.xlu0 %1393
        %1395 = vrot.lane.b32.xlu0 %v1328, 20
        %v1396 = vpop.permute.xlu0 %1395
        %1397 = vrot.lane.b32.xlu0 %v1329, 20
        %v1398 = vpop.permute.xlu0 %1397
        %1399 = vrot.lane.b32.xlu0 %v1330, 20
        %v1400 = vpop.permute.xlu0 %1399
        %1401 = vrot.lane.b32.xlu0 %v1331, 20
        %v1402 = vpop.permute.xlu0 %1401
        %1403 = vrot.lane.b32.xlu0 %v1332, 20
        %v1404 = vpop.permute.xlu0 %1403
        %1405 = vrot.lane.b32.xlu0 %v1333, 20
        %v1406 = vpop.permute.xlu0 %1405
        %1407 = vrot.lane.b32.xlu0 %v1334, 20
        %v1408 = vpop.permute.xlu0 %1407
        %1409 = vrot.lane.b32.xlu0 %v1335, 20
        %v1410 = vpop.permute.xlu0 %1409
        %1411 = vrot.lane.b32.xlu0 %v1336, 20
        %v1412 = vpop.permute.xlu0 %1411
        %1413 = vrot.lane.b32.xlu0 %v1337, 20
        %v1414 = vpop.permute.xlu0 %1413
        %1415 = vrot.lane.b32.xlu0 %v1338, 20
        %v1416 = vpop.permute.xlu0 %1415
        %1417 = vrot.lane.b32.xlu0 %v1339, 20
        %v1418 = vpop.permute.xlu0 %1417
        %1419 = vrot.lane.b32.xlu0 %v1340, 20
        %v1420 = vpop.permute.xlu0 %1419
        %1421 = vrot.lane.b32.xlu0 %v1341, 20
        %v1422 = vpop.permute.xlu0 %1421
        %1423 = vrot.lane.b32.xlu0 %v1342, 20
        %v1424 = vpop.permute.xlu0 %1423
        %1425 = vrot.lane.b32.xlu0 %v1343, 20
        %v1426 = vpop.permute.xlu0 %1425
        %1427 = vrot.lane.b32.xlu0 %v1344, 20
        %v1428 = vpop.permute.xlu0 %1427
        %1429 = vrot.lane.b32.xlu0 %v1345, 20
        %v1430 = vpop.permute.xlu0 %1429
        %1431 = vrot.lane.b32.xlu0 %v1346, 20
        %v1432 = vpop.permute.xlu0 %1431
        %1433 = vrot.lane.b32.xlu0 %v1347, 20
        %v1434 = vpop.permute.xlu0 %1433
        %1435 = vrot.lane.b32.xlu0 %v1348, 20
        %v1436 = vpop.permute.xlu0 %1435
        %1437 = vrot.lane.b32.xlu0 %v1349, 20
        %v1438 = vpop.permute.xlu0 %1437
        %1439 = vrot.lane.b32.xlu0 %v1350, 20
        %v1440 = vpop.permute.xlu0 %1439
        %1441 = vrot.lane.b32.xlu0 %v1351, 20
        %v1442 = vpop.permute.xlu0 %1441
        %1443 = vrot.lane.b32.xlu0 %v1352, 20
        %v1444 = vpop.permute.xlu0 %1443
        %1445 = vrot.lane.b32.xlu0 %v1353, 20
        %v1446 = vpop.permute.xlu0 %1445
        %1447 = vrot.lane.b32.xlu0 %v1354, 20
        %v1448 = vpop.permute.xlu0 %1447
        %1449 = vrot.lane.b32.xlu0 %v1355, 20
        %v1450 = vpop.permute.xlu0 %1449
        %1451 = vrot.lane.b32.xlu0 %v1356, 20
        %v1452 = vpop.permute.xlu0 %1451
        %vm1485 = vcmask 195744
        %1486 = vst.msk [vmem:[#allocation4] sm:$0xff] %vm1485, %v1390
        %1487 = vst.msk [vmem:[#allocation4 + $0x8] sm:$0xff] %vm1485, %v1392
        %1488 = vst.msk [vmem:[#allocation4 + $0x10] sm:$0xff] %vm1485, %v1394
        %1489 = vst.msk [vmem:[#allocation4 + $0x18] sm:$0xff] %vm1485, %v1396
        %1490 = vst.msk [vmem:[#allocation4 + $0x20] sm:$0xff] %vm1485, %v1398
        %1491 = vst.msk [vmem:[#allocation4 + $0x28] sm:$0xff] %vm1485, %v1400
        %1492 = vst.msk [vmem:[#allocation4 + $0x30] sm:$0xff] %vm1485, %v1402
        %1493 = vst.msk [vmem:[#allocation4 + $0x38] sm:$0xff] %vm1485, %v1404
        %1494 = vst.msk [vmem:[#allocation4 + $0x40] sm:$0xff] %vm1485, %v1406
        %1495 = vst.msk [vmem:[#allocation4 + $0x48] sm:$0xff] %vm1485, %v1408
        %1496 = vst.msk [vmem:[#allocation4 + $0x50] sm:$0xff] %vm1485, %v1410
        %1497 = vst.msk [vmem:[#allocation4 + $0x58] sm:$0xff] %vm1485, %v1412
        %1498 = vst.msk [vmem:[#allocation4 + $0x60] sm:$0xff] %vm1485, %v1414
        %1499 = vst.msk [vmem:[#allocation4 + $0x68] sm:$0xff] %vm1485, %v1416
        %1500 = vst.msk [vmem:[#allocation4 + $0x70] sm:$0xff] %vm1485, %v1418
        %1501 = vst.msk [vmem:[#allocation4 + $0x78] sm:$0xff] %vm1485, %v1420
        %1502 = vst.msk [vmem:[#allocation4 + $0x80] sm:$0xff] %vm1485, %v1422
        %1503 = vst.msk [vmem:[#allocation4 + $0x88] sm:$0xff] %vm1485, %v1424
        %1504 = vst.msk [vmem:[#allocation4 + $0x90] sm:$0xff] %vm1485, %v1426
        %1505 = vst.msk [vmem:[#allocation4 + $0x98] sm:$0xff] %vm1485, %v1428
        %1506 = vst.msk [vmem:[#allocation4 + $0xa0] sm:$0xff] %vm1485, %v1430
        %1507 = vst.msk [vmem:[#allocation4 + $0xa8] sm:$0xff] %vm1485, %v1432
        %1508 = vst.msk [vmem:[#allocation4 + $0xb0] sm:$0xff] %vm1485, %v1434
        %1509 = vst.msk [vmem:[#allocation4 + $0xb8] sm:$0xff] %vm1485, %v1436
        %1510 = vst.msk [vmem:[#allocation4 + $0xc0] sm:$0xff] %vm1485, %v1438
        %1511 = vst.msk [vmem:[#allocation4 + $0xc8] sm:$0xff] %vm1485, %v1440
        %1512 = vst.msk [vmem:[#allocation4 + $0xd0] sm:$0xff] %vm1485, %v1442
        %1513 = vst.msk [vmem:[#allocation4 + $0xd8] sm:$0xff] %vm1485, %v1444
        %1514 = vst.msk [vmem:[#allocation4 + $0xe0] sm:$0xff] %vm1485, %v1446
        %1515 = vst.msk [vmem:[#allocation4 + $0xe8] sm:$0xff] %vm1485, %v1448
        %1516 = vst.msk [vmem:[#allocation4 + $0xf0] sm:$0xff] %vm1485, %v1450
        %1517 = vst.msk [vmem:[#allocation4 + $0xf8] sm:$0xff] %vm1485, %v1452
        %s1518 = scalar_lea.vmem [#allocation2], 48
        %v1519 = vld [vmem:[%s1518] sm:$0xff]
        %v1520 = vld [vmem:[%s1518 + $0x8] sm:$0xff]
        %v1521 = vld [vmem:[%s1518 + $0x18] sm:$0xff]
        %v1522 = vld [vmem:[%s1518 + $0x20] sm:$0xff]
        %v1523 = vld [vmem:[%s1518 + $0x30] sm:$0xff]
        %v1524 = vld [vmem:[%s1518 + $0x38] sm:$0xff]
        %v1525 = vld [vmem:[%s1518 + $0x48] sm:$0xff]
        %v1526 = vld [vmem:[%s1518 + $0x50] sm:$0xff]
        %v1527 = vld [vmem:[%s1518 + $0x60] sm:$0xff]
        %v1528 = vld [vmem:[%s1518 + $0x68] sm:$0xff]
        %v1529 = vld [vmem:[%s1518 + $0x78] sm:$0xff]
        %v1530 = vld [vmem:[%s1518 + $0x80] sm:$0xff]
        %v1531 = vld [vmem:[%s1518 + $0x90] sm:$0xff]
        %v1532 = vld [vmem:[%s1518 + $0x98] sm:$0xff]
        %v1533 = vld [vmem:[%s1518 + $0xa8] sm:$0xff]
        %v1534 = vld [vmem:[%s1518 + $0xb0] sm:$0xff]
        %v1535 = vld [vmem:[%s1518 + $0xc0] sm:$0xff]
        %v1536 = vld [vmem:[%s1518 + $0xc8] sm:$0xff]
        %v1537 = vld [vmem:[%s1518 + $0xd8] sm:$0xff]
        %v1538 = vld [vmem:[%s1518 + $0xe0] sm:$0xff]
        %v1539 = vld [vmem:[%s1518 + $0xf0] sm:$0xff]
        %v1540 = vld [vmem:[%s1518 + $0xf8] sm:$0xff]
        %v1541 = vld [vmem:[%s1518 + $0x108] sm:$0xff]
        %v1542 = vld [vmem:[%s1518 + $0x110] sm:$0xff]
        %v1543 = vld [vmem:[%s1518 + $0x120] sm:$0xff]
        %v1544 = vld [vmem:[%s1518 + $0x128] sm:$0xff]
        %v1545 = vld [vmem:[%s1518 + $0x138] sm:$0xff]
        %v1546 = vld [vmem:[%s1518 + $0x140] sm:$0xff]
        %v1547 = vld [vmem:[%s1518 + $0x150] sm:$0xff]
        %v1548 = vld [vmem:[%s1518 + $0x158] sm:$0xff]
        %v1549 = vld [vmem:[%s1518 + $0x168] sm:$0xff]
        %v1550 = vld [vmem:[%s1518 + $0x170] sm:$0xff]
        %1583 = vrot.lane.b32.xlu0 %v1519, 24
        %v1584 = vpop.permute.xlu0 %1583
        %1585 = vrot.lane.b32.xlu0 %v1520, 24
        %v1586 = vpop.permute.xlu0 %1585
        %1587 = vrot.lane.b32.xlu0 %v1521, 24
        %v1588 = vpop.permute.xlu0 %1587
        %1589 = vrot.lane.b32.xlu0 %v1522, 24
        %v1590 = vpop.permute.xlu0 %1589
        %1591 = vrot.lane.b32.xlu0 %v1523, 24
        %v1592 = vpop.permute.xlu0 %1591
        %1593 = vrot.lane.b32.xlu0 %v1524, 24
        %v1594 = vpop.permute.xlu0 %1593
        %1595 = vrot.lane.b32.xlu0 %v1525, 24
        %v1596 = vpop.permute.xlu0 %1595
        %1597 = vrot.lane.b32.xlu0 %v1526, 24
        %v1598 = vpop.permute.xlu0 %1597
        %1599 = vrot.lane.b32.xlu0 %v1527, 24
        %v1600 = vpop.permute.xlu0 %1599
        %1601 = vrot.lane.b32.xlu0 %v1528, 24
        %v1602 = vpop.permute.xlu0 %1601
        %1603 = vrot.lane.b32.xlu0 %v1529, 24
        %v1604 = vpop.permute.xlu0 %1603
        %1605 = vrot.lane.b32.xlu0 %v1530, 24
        %v1606 = vpop.permute.xlu0 %1605
        %1607 = vrot.lane.b32.xlu0 %v1531, 24
        %v1608 = vpop.permute.xlu0 %1607
        %1609 = vrot.lane.b32.xlu0 %v1532, 24
        %v1610 = vpop.permute.xlu0 %1609
        %1611 = vrot.lane.b32.xlu0 %v1533, 24
        %v1612 = vpop.permute.xlu0 %1611
        %1613 = vrot.lane.b32.xlu0 %v1534, 24
        %v1614 = vpop.permute.xlu0 %1613
        %1615 = vrot.lane.b32.xlu0 %v1535, 24
        %v1616 = vpop.permute.xlu0 %1615
        %1617 = vrot.lane.b32.xlu0 %v1536, 24
        %v1618 = vpop.permute.xlu0 %1617
        %1619 = vrot.lane.b32.xlu0 %v1537, 24
        %v1620 = vpop.permute.xlu0 %1619
        %1621 = vrot.lane.b32.xlu0 %v1538, 24
        %v1622 = vpop.permute.xlu0 %1621
        %1623 = vrot.lane.b32.xlu0 %v1539, 24
        %v1624 = vpop.permute.xlu0 %1623
        %1625 = vrot.lane.b32.xlu0 %v1540, 24
        %v1626 = vpop.permute.xlu0 %1625
        %1627 = vrot.lane.b32.xlu0 %v1541, 24
        %v1628 = vpop.permute.xlu0 %1627
        %1629 = vrot.lane.b32.xlu0 %v1542, 24
        %v1630 = vpop.permute.xlu0 %1629
        %1631 = vrot.lane.b32.xlu0 %v1543, 24
        %v1632 = vpop.permute.xlu0 %1631
        %1633 = vrot.lane.b32.xlu0 %v1544, 24
        %v1634 = vpop.permute.xlu0 %1633
        %1635 = vrot.lane.b32.xlu0 %v1545, 24
        %v1636 = vpop.permute.xlu0 %1635
        %1637 = vrot.lane.b32.xlu0 %v1546, 24
        %v1638 = vpop.permute.xlu0 %1637
        %1639 = vrot.lane.b32.xlu0 %v1547, 24
        %v1640 = vpop.permute.xlu0 %1639
        %1641 = vrot.lane.b32.xlu0 %v1548, 24
        %v1642 = vpop.permute.xlu0 %1641
        %1643 = vrot.lane.b32.xlu0 %v1549, 24
        %v1644 = vpop.permute.xlu0 %1643
        %1645 = vrot.lane.b32.xlu0 %v1550, 24
        %v1646 = vpop.permute.xlu0 %1645
        %vm1679 = vcmask 228544
        %1680 = vst.msk [vmem:[#allocation4] sm:$0xff] %vm1679, %v1584
        %1681 = vst.msk [vmem:[#allocation4 + $0x8] sm:$0xff] %vm1679, %v1586
        %1682 = vst.msk [vmem:[#allocation4 + $0x10] sm:$0xff] %vm1679, %v1588
        %1683 = vst.msk [vmem:[#allocation4 + $0x18] sm:$0xff] %vm1679, %v1590
        %1684 = vst.msk [vmem:[#allocation4 + $0x20] sm:$0xff] %vm1679, %v1592
        %1685 = vst.msk [vmem:[#allocation4 + $0x28] sm:$0xff] %vm1679, %v1594
        %1686 = vst.msk [vmem:[#allocation4 + $0x30] sm:$0xff] %vm1679, %v1596
        %1687 = vst.msk [vmem:[#allocation4 + $0x38] sm:$0xff] %vm1679, %v1598
        %1688 = vst.msk [vmem:[#allocation4 + $0x40] sm:$0xff] %vm1679, %v1600
        %1689 = vst.msk [vmem:[#allocation4 + $0x48] sm:$0xff] %vm1679, %v1602
        %1690 = vst.msk [vmem:[#allocation4 + $0x50] sm:$0xff] %vm1679, %v1604
        %1691 = vst.msk [vmem:[#allocation4 + $0x58] sm:$0xff] %vm1679, %v1606
        %1692 = vst.msk [vmem:[#allocation4 + $0x60] sm:$0xff] %vm1679, %v1608
        %1693 = vst.msk [vmem:[#allocation4 + $0x68] sm:$0xff] %vm1679, %v1610
        %1694 = vst.msk [vmem:[#allocation4 + $0x70] sm:$0xff] %vm1679, %v1612
        %1695 = vst.msk [vmem:[#allocation4 + $0x78] sm:$0xff] %vm1679, %v1614
        %1696 = vst.msk [vmem:[#allocation4 + $0x80] sm:$0xff] %vm1679, %v1616
        %1697 = vst.msk [vmem:[#allocation4 + $0x88] sm:$0xff] %vm1679, %v1618
        %1698 = vst.msk [vmem:[#allocation4 + $0x90] sm:$0xff] %vm1679, %v1620
        %1699 = vst.msk [vmem:[#allocation4 + $0x98] sm:$0xff] %vm1679, %v1622
        %1700 = vst.msk [vmem:[#allocation4 + $0xa0] sm:$0xff] %vm1679, %v1624
        %1701 = vst.msk [vmem:[#allocation4 + $0xa8] sm:$0xff] %vm1679, %v1626
        %1702 = vst.msk [vmem:[#allocation4 + $0xb0] sm:$0xff] %vm1679, %v1628
        %1703 = vst.msk [vmem:[#allocation4 + $0xb8] sm:$0xff] %vm1679, %v1630
        %1704 = vst.msk [vmem:[#allocation4 + $0xc0] sm:$0xff] %vm1679, %v1632
        %1705 = vst.msk [vmem:[#allocation4 + $0xc8] sm:$0xff] %vm1679, %v1634
        %1706 = vst.msk [vmem:[#allocation4 + $0xd0] sm:$0xff] %vm1679, %v1636
        %1707 = vst.msk [vmem:[#allocation4 + $0xd8] sm:$0xff] %vm1679, %v1638
        %1708 = vst.msk [vmem:[#allocation4 + $0xe0] sm:$0xff] %vm1679, %v1640
        %1709 = vst.msk [vmem:[#allocation4 + $0xe8] sm:$0xff] %vm1679, %v1642
        %1710 = vst.msk [vmem:[#allocation4 + $0xf0] sm:$0xff] %vm1679, %v1644
        %1711 = vst.msk [vmem:[#allocation4 + $0xf8] sm:$0xff] %vm1679, %v1646
        %v1712 = vld [vmem:[%s1518 + $0x1] sm:$0xff]
        %v1713 = vld [vmem:[%s1518 + $0x9] sm:$0xff]
        %v1714 = vld [vmem:[%s1518 + $0x19] sm:$0xff]
        %v1715 = vld [vmem:[%s1518 + $0x21] sm:$0xff]
        %v1716 = vld [vmem:[%s1518 + $0x31] sm:$0xff]
        %v1717 = vld [vmem:[%s1518 + $0x39] sm:$0xff]
        %v1718 = vld [vmem:[%s1518 + $0x49] sm:$0xff]
        %v1719 = vld [vmem:[%s1518 + $0x51] sm:$0xff]
        %v1720 = vld [vmem:[%s1518 + $0x61] sm:$0xff]
        %v1721 = vld [vmem:[%s1518 + $0x69] sm:$0xff]
        %v1722 = vld [vmem:[%s1518 + $0x79] sm:$0xff]
        %v1723 = vld [vmem:[%s1518 + $0x81] sm:$0xff]
        %v1724 = vld [vmem:[%s1518 + $0x91] sm:$0xff]
        %v1725 = vld [vmem:[%s1518 + $0x99] sm:$0xff]
        %v1726 = vld [vmem:[%s1518 + $0xa9] sm:$0xff]
        %v1727 = vld [vmem:[%s1518 + $0xb1] sm:$0xff]
        %v1728 = vld [vmem:[%s1518 + $0xc1] sm:$0xff]
        %v1729 = vld [vmem:[%s1518 + $0xc9] sm:$0xff]
        %v1730 = vld [vmem:[%s1518 + $0xd9] sm:$0xff]
        %v1731 = vld [vmem:[%s1518 + $0xe1] sm:$0xff]
        %v1732 = vld [vmem:[%s1518 + $0xf1] sm:$0xff]
        %v1733 = vld [vmem:[%s1518 + $0xf9] sm:$0xff]
        %v1734 = vld [vmem:[%s1518 + $0x109] sm:$0xff]
        %v1735 = vld [vmem:[%s1518 + $0x111] sm:$0xff]
        %v1736 = vld [vmem:[%s1518 + $0x121] sm:$0xff]
        %v1737 = vld [vmem:[%s1518 + $0x129] sm:$0xff]
        %v1738 = vld [vmem:[%s1518 + $0x139] sm:$0xff]
        %v1739 = vld [vmem:[%s1518 + $0x141] sm:$0xff]
        %v1740 = vld [vmem:[%s1518 + $0x151] sm:$0xff]
        %v1741 = vld [vmem:[%s1518 + $0x159] sm:$0xff]
        %v1742 = vld [vmem:[%s1518 + $0x169] sm:$0xff]
        %v1743 = vld [vmem:[%s1518 + $0x171] sm:$0xff]
        %1776 = vrot.lane.b32.xlu0 %v1712, 28
        %v1777 = vpop.permute.xlu0 %1776
        %1778 = vrot.lane.b32.xlu0 %v1713, 28
        %v1779 = vpop.permute.xlu0 %1778
        %1780 = vrot.lane.b32.xlu0 %v1714, 28
        %v1781 = vpop.permute.xlu0 %1780
        %1782 = vrot.lane.b32.xlu0 %v1715, 28
        %v1783 = vpop.permute.xlu0 %1782
        %1784 = vrot.lane.b32.xlu0 %v1716, 28
        %v1785 = vpop.permute.xlu0 %1784
        %1786 = vrot.lane.b32.xlu0 %v1717, 28
        %v1787 = vpop.permute.xlu0 %1786
        %1788 = vrot.lane.b32.xlu0 %v1718, 28
        %v1789 = vpop.permute.xlu0 %1788
        %1790 = vrot.lane.b32.xlu0 %v1719, 28
        %v1791 = vpop.permute.xlu0 %1790
        %1792 = vrot.lane.b32.xlu0 %v1720, 28
        %v1793 = vpop.permute.xlu0 %1792
        %1794 = vrot.lane.b32.xlu0 %v1721, 28
        %v1795 = vpop.permute.xlu0 %1794
        %1796 = vrot.lane.b32.xlu0 %v1722, 28
        %v1797 = vpop.permute.xlu0 %1796
        %1798 = vrot.lane.b32.xlu0 %v1723, 28
        %v1799 = vpop.permute.xlu0 %1798
        %1800 = vrot.lane.b32.xlu0 %v1724, 28
        %v1801 = vpop.permute.xlu0 %1800
        %1802 = vrot.lane.b32.xlu0 %v1725, 28
        %v1803 = vpop.permute.xlu0 %1802
        %1804 = vrot.lane.b32.xlu0 %v1726, 28
        %v1805 = vpop.permute.xlu0 %1804
        %1806 = vrot.lane.b32.xlu0 %v1727, 28
        %v1807 = vpop.permute.xlu0 %1806
        %1808 = vrot.lane.b32.xlu0 %v1728, 28
        %v1809 = vpop.permute.xlu0 %1808
        %1810 = vrot.lane.b32.xlu0 %v1729, 28
        %v1811 = vpop.permute.xlu0 %1810
        %1812 = vrot.lane.b32.xlu0 %v1730, 28
        %v1813 = vpop.permute.xlu0 %1812
        %1814 = vrot.lane.b32.xlu0 %v1731, 28
        %v1815 = vpop.permute.xlu0 %1814
        %1816 = vrot.lane.b32.xlu0 %v1732, 28
        %v1817 = vpop.permute.xlu0 %1816
        %1818 = vrot.lane.b32.xlu0 %v1733, 28
        %v1819 = vpop.permute.xlu0 %1818
        %1820 = vrot.lane.b32.xlu0 %v1734, 28
        %v1821 = vpop.permute.xlu0 %1820
        %1822 = vrot.lane.b32.xlu0 %v1735, 28
        %v1823 = vpop.permute.xlu0 %1822
        %1824 = vrot.lane.b32.xlu0 %v1736, 28
        %v1825 = vpop.permute.xlu0 %1824
        %1826 = vrot.lane.b32.xlu0 %v1737, 28
        %v1827 = vpop.permute.xlu0 %1826
        %1828 = vrot.lane.b32.xlu0 %v1738, 28
        %v1829 = vpop.permute.xlu0 %1828
        %1830 = vrot.lane.b32.xlu0 %v1739, 28
        %v1831 = vpop.permute.xlu0 %1830
        %1832 = vrot.lane.b32.xlu0 %v1740, 28
        %v1833 = vpop.permute.xlu0 %1832
        %1834 = vrot.lane.b32.xlu0 %v1741, 28
        %v1835 = vpop.permute.xlu0 %1834
        %1836 = vrot.lane.b32.xlu0 %v1742, 28
        %v1837 = vpop.permute.xlu0 %1836
        %1838 = vrot.lane.b32.xlu0 %v1743, 28
        %v1839 = vpop.permute.xlu0 %1838
        %vm1872 = vcmask 261344
        %1873 = vst.msk [vmem:[#allocation4] sm:$0xff] %vm1872, %v1777
        %1874 = vst.msk [vmem:[#allocation4 + $0x8] sm:$0xff] %vm1872, %v1779
        %1875 = vst.msk [vmem:[#allocation4 + $0x10] sm:$0xff] %vm1872, %v1781
        %1876 = vst.msk [vmem:[#allocation4 + $0x18] sm:$0xff] %vm1872, %v1783
        %1877 = vst.msk [vmem:[#allocation4 + $0x20] sm:$0xff] %vm1872, %v1785
        %1878 = vst.msk [vmem:[#allocation4 + $0x28] sm:$0xff] %vm1872, %v1787
        %1879 = vst.msk [vmem:[#allocation4 + $0x30] sm:$0xff] %vm1872, %v1789
        %1880 = vst.msk [vmem:[#allocation4 + $0x38] sm:$0xff] %vm1872, %v1791
        %1881 = vst.msk [vmem:[#allocation4 + $0x40] sm:$0xff] %vm1872, %v1793
        %1882 = vst.msk [vmem:[#allocation4 + $0x48] sm:$0xff] %vm1872, %v1795
        %1883 = vst.msk [vmem:[#allocation4 + $0x50] sm:$0xff] %vm1872, %v1797
        %1884 = vst.msk [vmem:[#allocation4 + $0x58] sm:$0xff] %vm1872, %v1799
        %1885 = vst.msk [vmem:[#allocation4 + $0x60] sm:$0xff] %vm1872, %v1801
        %1886 = vst.msk [vmem:[#allocation4 + $0x68] sm:$0xff] %vm1872, %v1803
        %1887 = vst.msk [vmem:[#allocation4 + $0x70] sm:$0xff] %vm1872, %v1805
        %1888 = vst.msk [vmem:[#allocation4 + $0x78] sm:$0xff] %vm1872, %v1807
        %1889 = vst.msk [vmem:[#allocation4 + $0x80] sm:$0xff] %vm1872, %v1809
        %1890 = vst.msk [vmem:[#allocation4 + $0x88] sm:$0xff] %vm1872, %v1811
        %1891 = vst.msk [vmem:[#allocation4 + $0x90] sm:$0xff] %vm1872, %v1813
        %1892 = vst.msk [vmem:[#allocation4 + $0x98] sm:$0xff] %vm1872, %v1815
        %1893 = vst.msk [vmem:[#allocation4 + $0xa0] sm:$0xff] %vm1872, %v1817
        %1894 = vst.msk [vmem:[#allocation4 + $0xa8] sm:$0xff] %vm1872, %v1819
        %1895 = vst.msk [vmem:[#allocation4 + $0xb0] sm:$0xff] %vm1872, %v1821
        %1896 = vst.msk [vmem:[#allocation4 + $0xb8] sm:$0xff] %vm1872, %v1823
        %1897 = vst.msk [vmem:[#allocation4 + $0xc0] sm:$0xff] %vm1872, %v1825
        %1898 = vst.msk [vmem:[#allocation4 + $0xc8] sm:$0xff] %vm1872, %v1827
        %1899 = vst.msk [vmem:[#allocation4 + $0xd0] sm:$0xff] %vm1872, %v1829
        %1900 = vst.msk [vmem:[#allocation4 + $0xd8] sm:$0xff] %vm1872, %v1831
        %1901 = vst.msk [vmem:[#allocation4 + $0xe0] sm:$0xff] %vm1872, %v1833
        %1902 = vst.msk [vmem:[#allocation4 + $0xe8] sm:$0xff] %vm1872, %v1835
        %1903 = vst.msk [vmem:[#allocation4 + $0xf0] sm:$0xff] %vm1872, %v1837
        %1904 = vst.msk [vmem:[#allocation4 + $0xf8] sm:$0xff] %vm1872, %v1839
        %v1905 = vld [vmem:[%s1518 + $0x2] sm:$0xff]
        %v1906 = vld [vmem:[%s1518 + $0xa] sm:$0xff]
        %v1907 = vld [vmem:[%s1518 + $0x1a] sm:$0xff]
        %v1908 = vld [vmem:[%s1518 + $0x22] sm:$0xff]
        %v1909 = vld [vmem:[%s1518 + $0x32] sm:$0xff]
        %v1910 = vld [vmem:[%s1518 + $0x3a] sm:$0xff]
        %v1911 = vld [vmem:[%s1518 + $0x4a] sm:$0xff]
        %v1912 = vld [vmem:[%s1518 + $0x52] sm:$0xff]
        %v1913 = vld [vmem:[%s1518 + $0x62] sm:$0xff]
        %v1914 = vld [vmem:[%s1518 + $0x6a] sm:$0xff]
        %v1915 = vld [vmem:[%s1518 + $0x7a] sm:$0xff]
        %v1916 = vld [vmem:[%s1518 + $0x82] sm:$0xff]
        %v1917 = vld [vmem:[%s1518 + $0x92] sm:$0xff]
        %v1918 = vld [vmem:[%s1518 + $0x9a] sm:$0xff]
        %v1919 = vld [vmem:[%s1518 + $0xaa] sm:$0xff]
        %v1920 = vld [vmem:[%s1518 + $0xb2] sm:$0xff]
        %v1921 = vld [vmem:[%s1518 + $0xc2] sm:$0xff]
        %v1922 = vld [vmem:[%s1518 + $0xca] sm:$0xff]
        %v1923 = vld [vmem:[%s1518 + $0xda] sm:$0xff]
        %v1924 = vld [vmem:[%s1518 + $0xe2] sm:$0xff]
        %v1925 = vld [vmem:[%s1518 + $0xf2] sm:$0xff]
        %v1926 = vld [vmem:[%s1518 + $0xfa] sm:$0xff]
        %v1927 = vld [vmem:[%s1518 + $0x10a] sm:$0xff]
        %v1928 = vld [vmem:[%s1518 + $0x112] sm:$0xff]
        %v1929 = vld [vmem:[%s1518 + $0x122] sm:$0xff]
        %v1930 = vld [vmem:[%s1518 + $0x12a] sm:$0xff]
        %v1931 = vld [vmem:[%s1518 + $0x13a] sm:$0xff]
        %v1932 = vld [vmem:[%s1518 + $0x142] sm:$0xff]
        %v1933 = vld [vmem:[%s1518 + $0x152] sm:$0xff]
        %v1934 = vld [vmem:[%s1518 + $0x15a] sm:$0xff]
        %v1935 = vld [vmem:[%s1518 + $0x16a] sm:$0xff]
        %v1936 = vld [vmem:[%s1518 + $0x172] sm:$0xff]
        %1969 = vrot.lane.b32.xlu0 %v1905, 32
        %v1970 = vpop.permute.xlu0 %1969
        %1971 = vrot.lane.b32.xlu0 %v1906, 32
        %v1972 = vpop.permute.xlu0 %1971
        %1973 = vrot.lane.b32.xlu0 %v1907, 32
        %v1974 = vpop.permute.xlu0 %1973
        %1975 = vrot.lane.b32.xlu0 %v1908, 32
        %v1976 = vpop.permute.xlu0 %1975
        %1977 = vrot.lane.b32.xlu0 %v1909, 32
        %v1978 = vpop.permute.xlu0 %1977
        %1979 = vrot.lane.b32.xlu0 %v1910, 32
        %v1980 = vpop.permute.xlu0 %1979
        %1981 = vrot.lane.b32.xlu0 %v1911, 32
        %v1982 = vpop.permute.xlu0 %1981
        %1983 = vrot.lane.b32.xlu0 %v1912, 32
        %v1984 = vpop.permute.xlu0 %1983
        %1985 = vrot.lane.b32.xlu0 %v1913, 32
        %v1986 = vpop.permute.xlu0 %1985
        %1987 = vrot.lane.b32.xlu0 %v1914, 32
        %v1988 = vpop.permute.xlu0 %1987
        %1989 = vrot.lane.b32.xlu0 %v1915, 32
        %v1990 = vpop.permute.xlu0 %1989
        %1991 = vrot.lane.b32.xlu0 %v1916, 32
        %v1992 = vpop.permute.xlu0 %1991
        %1993 = vrot.lane.b32.xlu0 %v1917, 32
        %v1994 = vpop.permute.xlu0 %1993
        %1995 = vrot.lane.b32.xlu0 %v1918, 32
        %v1996 = vpop.permute.xlu0 %1995
        %1997 = vrot.lane.b32.xlu0 %v1919, 32
        %v1998 = vpop.permute.xlu0 %1997
        %1999 = vrot.lane.b32.xlu0 %v1920, 32
        %v2000 = vpop.permute.xlu0 %1999
        %2001 = vrot.lane.b32.xlu0 %v1921, 32
        %v2002 = vpop.permute.xlu0 %2001
        %2003 = vrot.lane.b32.xlu0 %v1922, 32
        %v2004 = vpop.permute.xlu0 %2003
        %2005 = vrot.lane.b32.xlu0 %v1923, 32
        %v2006 = vpop.permute.xlu0 %2005
        %2007 = vrot.lane.b32.xlu0 %v1924, 32
        %v2008 = vpop.permute.xlu0 %2007
        %2009 = vrot.lane.b32.xlu0 %v1925, 32
        %v2010 = vpop.permute.xlu0 %2009
        %2011 = vrot.lane.b32.xlu0 %v1926, 32
        %v2012 = vpop.permute.xlu0 %2011
        %2013 = vrot.lane.b32.xlu0 %v1927, 32
        %v2014 = vpop.permute.xlu0 %2013
        %2015 = vrot.lane.b32.xlu0 %v1928, 32
        %v2016 = vpop.permute.xlu0 %2015
        %2017 = vrot.lane.b32.xlu0 %v1929, 32
        %v2018 = vpop.permute.xlu0 %2017
        %2019 = vrot.lane.b32.xlu0 %v1930, 32
        %v2020 = vpop.permute.xlu0 %2019
        %2021 = vrot.lane.b32.xlu0 %v1931, 32
        %v2022 = vpop.permute.xlu0 %2021
        %2023 = vrot.lane.b32.xlu0 %v1932, 32
        %v2024 = vpop.permute.xlu0 %2023
        %2025 = vrot.lane.b32.xlu0 %v1933, 32
        %v2026 = vpop.permute.xlu0 %2025
        %2027 = vrot.lane.b32.xlu0 %v1934, 32
        %v2028 = vpop.permute.xlu0 %2027
        %2029 = vrot.lane.b32.xlu0 %v1935, 32
        %v2030 = vpop.permute.xlu0 %2029
        %2031 = vrot.lane.b32.xlu0 %v1936, 32
        %v2032 = vpop.permute.xlu0 %2031
        %vm2065 = vcmask 294144
        %2066 = vst.msk [vmem:[#allocation4] sm:$0xff] %vm2065, %v1970
        %2067 = vst.msk [vmem:[#allocation4 + $0x8] sm:$0xff] %vm2065, %v1972
        %2068 = vst.msk [vmem:[#allocation4 + $0x10] sm:$0xff] %vm2065, %v1974
        %2069 = vst.msk [vmem:[#allocation4 + $0x18] sm:$0xff] %vm2065, %v1976
        %2070 = vst.msk [vmem:[#allocation4 + $0x20] sm:$0xff] %vm2065, %v1978
        %2071 = vst.msk [vmem:[#allocation4 + $0x28] sm:$0xff] %vm2065, %v1980
        %2072 = vst.msk [vmem:[#allocation4 + $0x30] sm:$0xff] %vm2065, %v1982
        %2073 = vst.msk [vmem:[#allocation4 + $0x38] sm:$0xff] %vm2065, %v1984
        %2074 = vst.msk [vmem:[#allocation4 + $0x40] sm:$0xff] %vm2065, %v1986
        %2075 = vst.msk [vmem:[#allocation4 + $0x48] sm:$0xff] %vm2065, %v1988
        %2076 = vst.msk [vmem:[#allocation4 + $0x50] sm:$0xff] %vm2065, %v1990
        %2077 = vst.msk [vmem:[#allocation4 + $0x58] sm:$0xff] %vm2065, %v1992
        %2078 = vst.msk [vmem:[#allocation4 + $0x60] sm:$0xff] %vm2065, %v1994
        %2079 = vst.msk [vmem:[#allocation4 + $0x68] sm:$0xff] %vm2065, %v1996
        %2080 = vst.msk [vmem:[#allocation4 + $0x70] sm:$0xff] %vm2065, %v1998
        %2081 = vst.msk [vmem:[#allocation4 + $0x78] sm:$0xff] %vm2065, %v2000
        %2082 = vst.msk [vmem:[#allocation4 + $0x80] sm:$0xff] %vm2065, %v2002
        %2083 = vst.msk [vmem:[#allocation4 + $0x88] sm:$0xff] %vm2065, %v2004
        %2084 = vst.msk [vmem:[#allocation4 + $0x90] sm:$0xff] %vm2065, %v2006
        %2085 = vst.msk [vmem:[#allocation4 + $0x98] sm:$0xff] %vm2065, %v2008
        %2086 = vst.msk [vmem:[#allocation4 + $0xa0] sm:$0xff] %vm2065, %v2010
        %2087 = vst.msk [vmem:[#allocation4 + $0xa8] sm:$0xff] %vm2065, %v2012
        %2088 = vst.msk [vmem:[#allocation4 + $0xb0] sm:$0xff] %vm2065, %v2014
        %2089 = vst.msk [vmem:[#allocation4 + $0xb8] sm:$0xff] %vm2065, %v2016
        %2090 = vst.msk [vmem:[#allocation4 + $0xc0] sm:$0xff] %vm2065, %v2018
        %2091 = vst.msk [vmem:[#allocation4 + $0xc8] sm:$0xff] %vm2065, %v2020
        %2092 = vst.msk [vmem:[#allocation4 + $0xd0] sm:$0xff] %vm2065, %v2022
        %2093 = vst.msk [vmem:[#allocation4 + $0xd8] sm:$0xff] %vm2065, %v2024
        %2094 = vst.msk [vmem:[#allocation4 + $0xe0] sm:$0xff] %vm2065, %v2026
        %2095 = vst.msk [vmem:[#allocation4 + $0xe8] sm:$0xff] %vm2065, %v2028
        %2096 = vst.msk [vmem:[#allocation4 + $0xf0] sm:$0xff] %vm2065, %v2030
        %2097 = vst.msk [vmem:[#allocation4 + $0xf8] sm:$0xff] %vm2065, %v2032
        %v2098 = vld [vmem:[#allocation4] sm:$0xff]
        %v2099 = vld [vmem:[#allocation4 + $0x8] sm:$0xff]
        %v2100 = vld [vmem:[#allocation4 + $0x10] sm:$0xff]
        %v2101 = vld [vmem:[#allocation4 + $0x18] sm:$0xff]
        %v2102 = vld [vmem:[#allocation4 + $0x20] sm:$0xff]
        %v2103 = vld [vmem:[#allocation4 + $0x28] sm:$0xff]
        %v2104 = vld [vmem:[#allocation4 + $0x30] sm:$0xff]
        %v2105 = vld [vmem:[#allocation4 + $0x38] sm:$0xff]
        %v2106 = vld [vmem:[#allocation4 + $0x40] sm:$0xff]
        %v2107 = vld [vmem:[#allocation4 + $0x48] sm:$0xff]
        %v2108 = vld [vmem:[#allocation4 + $0x50] sm:$0xff]
        %v2109 = vld [vmem:[#allocation4 + $0x58] sm:$0xff]
        %v2110 = vld [vmem:[#allocation4 + $0x60] sm:$0xff]
        %v2111 = vld [vmem:[#allocation4 + $0x68] sm:$0xff]
        %v2112 = vld [vmem:[#allocation4 + $0x70] sm:$0xff]
        %v2113 = vld [vmem:[#allocation4 + $0x78] sm:$0xff]
        %v2114 = vld [vmem:[#allocation4 + $0x80] sm:$0xff]
        %v2115 = vld [vmem:[#allocation4 + $0x88] sm:$0xff]
        %v2116 = vld [vmem:[#allocation4 + $0x90] sm:$0xff]
        %v2117 = vld [vmem:[#allocation4 + $0x98] sm:$0xff]
        %v2118 = vld [vmem:[#allocation4 + $0xa0] sm:$0xff]
        %v2119 = vld [vmem:[#allocation4 + $0xa8] sm:$0xff]
        %v2120 = vld [vmem:[#allocation4 + $0xb0] sm:$0xff]
        %v2121 = vld [vmem:[#allocation4 + $0xb8] sm:$0xff]
        %v2122 = vld [vmem:[#allocation4 + $0xc0] sm:$0xff]
        %v2123 = vld [vmem:[#allocation4 + $0xc8] sm:$0xff]
        %v2124 = vld [vmem:[#allocation4 + $0xd0] sm:$0xff]
        %v2125 = vld [vmem:[#allocation4 + $0xd8] sm:$0xff]
        %v2126 = vld [vmem:[#allocation4 + $0xe0] sm:$0xff]
        %v2127 = vld [vmem:[#allocation4 + $0xe8] sm:$0xff]
        %v2128 = vld [vmem:[#allocation4 + $0xf0] sm:$0xff]
        %v2129 = vld [vmem:[#allocation4 + $0xf8] sm:$0xff]
        %v2130 = vpack.c.bf16 %v2099, %v2098
        %v2131 = vpack.c.bf16 %v2101, %v2100
        %v2132 = vpack.c.bf16 %v2103, %v2102
        %v2133 = vpack.c.bf16 %v2105, %v2104
        %v2134 = vpack.c.bf16 %v2107, %v2106
        %v2135 = vpack.c.bf16 %v2109, %v2108
        %v2136 = vpack.c.bf16 %v2111, %v2110
        %v2137 = vpack.c.bf16 %v2113, %v2112
        %v2138 = vpack.c.bf16 %v2115, %v2114
        %v2139 = vpack.c.bf16 %v2117, %v2116
        %v2140 = vpack.c.bf16 %v2119, %v2118
        %v2141 = vpack.c.bf16 %v2121, %v2120
        %v2142 = vpack.c.bf16 %v2123, %v2122
        %v2143 = vpack.c.bf16 %v2125, %v2124
        %v2144 = vpack.c.bf16 %v2127, %v2126
        %v2145 = vpack.c.bf16 %v2129, %v2128
        %v2146 = vld [vmem:[%s1] sm:$0xff]
        %v2147 = vld [vmem:[%s1 + $0x8] sm:$0xff]
        %v2148 = vld [vmem:[%s1 + $0x10] sm:$0xff]
        %v2149 = vld [vmem:[%s1 + $0x18] sm:$0xff]
        %v2150 = vld [vmem:[%s1 + $0x20] sm:$0xf]
        %v2151 = vpack.c.bf16 %v2147, %v2146
        %v2152 = vpack.c.bf16 %v2149, %v2148
        %v2153 = vpack.c.bf16 %v2150, %v2150
        %v2154 = vld [vmem:[%s2] sm:$0x1]
        %v2156 = vlaneseq
        %v2157 = vshrl.u32 %v2156, 7
        %v2158 = vsub.s32 0, %v2157
        %v2159 = vrot.slane %v2154, %v2158
        %vm2161 = vcmask 293888
        %v2163 = vsel %vm2161, %v2130, 0
        %v2166 = vsel %vm2161, %v2131, 0
        %v2169 = vsel %vm2161, %v2132, 0
        %v2172 = vsel %vm2161, %v2133, 0
        %v2175 = vsel %vm2161, %v2134, 0
        %v2178 = vsel %vm2161, %v2135, 0
        %v2181 = vsel %vm2161, %v2136, 0
        %v2184 = vsel %vm2161, %v2137, 0
        %v2187 = vsel %vm2161, %v2138, 0
        %v2190 = vsel %vm2161, %v2139, 0
        %v2193 = vsel %vm2161, %v2140, 0
        %v2196 = vsel %vm2161, %v2141, 0
        %v2199 = vsel %vm2161, %v2142, 0
        %v2202 = vsel %vm2161, %v2143, 0
        %v2205 = vsel %vm2161, %v2144, 0
        %v2208 = vsel %vm2161, %v2145, 0
        %vm2210 = vcmask 1041408
        %v2212 = vsel %vm2210, %v2153, 0
        %2214 = vmatprep.subr.bf16.mxu0 0
        %2215 = vmatpush1.bf16.msra.mxu0 %v2151
        %2216 = vmatprep.subr.bf16.mxu0 0
        %2217 = vmatpush1.bf16.msra.mxu0 %v2152
        %2218 = vmatprep.subr.bf16.mxu0 0
        %2219 = vmatpush1.bf16.msra.mxu0 %v2212
        %2220 = vmatprep.subr.bf16.mxu0 0
        %2221 = vmatpush1.bf16.msra.mxu0 0
        %2222 = vmatprep.subr.bf16.mxu0 0
        %2223 = vmatpush1.bf16.msra.mxu0 0
        %2224 = vmatprep.subr.bf16.mxu0 0
        %2225 = vmatpush1.bf16.msra.mxu0 0
        %2226 = vmatprep.subr.bf16.mxu0 0
        %2227 = vmatpush1.bf16.msra.mxu0 0
        %2228 = vmatprep.subr.bf16.mxu0 0
        %2229 = vmatpush1.bf16.msra.mxu0 0
        %2230 = vmatprep.subr.bf16.mxu0 0
        %2231 = vmatpush1.bf16.msra.mxu0 0
        %2232 = vmatprep.subr.bf16.mxu0 0
        %2233 = vmatpush1.bf16.msra.mxu0 0
        %2234 = vmatprep.subr.bf16.mxu0 0
        %2235 = vmatpush1.bf16.msra.mxu0 0
        %2236 = vmatprep.subr.bf16.mxu0 0
        %2237 = vmatpush1.bf16.msra.mxu0 0
        %2238 = vmatprep.subr.bf16.mxu0 0
        %2239 = vmatpush1.bf16.msra.mxu0 0
        %2240 = vmatprep.subr.bf16.mxu0 0
        %2241 = vmatpush1.bf16.msra.mxu0 0
        %2242 = vmatprep.subr.bf16.mxu0 0
        %2243 = vmatpush1.bf16.msra.mxu0 0
        %2244 = vmatprep.subr.bf16.mxu0 0
        %2245 = vmatpush1.bf16.msra.mxu0 0
        %2246 = vmatprep.mubr.bf16.mxu0 0
        %2247 = vmatmul.mubr.bf16.gmra.mrb[0].mxu0 %v2163
        %v2248 = vpop.f32.mrb[0].mxu0
        %v2249 = vadd.f32 %v2159, %v2248
        %v2250 = vpop.f32.mrb[0].mxu0
        %v2251 = vpop.f32.mrb[0].mxu0
        %v2252 = vadd.f32 %v2159, %v2251
        %v2253 = vpop.f32.mrb[0].mxu0
        %2254 = vmatprep.mubr.bf16.mxu0 0
        %2255 = vmatmul.mubr.bf16.gmra.mrb[0].mxu0 %v2166
        %v2256 = vpop.f32.mrb[0].mxu0
        %v2257 = vadd.f32 %v2159, %v2256
        %v2258 = vpop.f32.mrb[0].mxu0
        %v2259 = vpop.f32.mrb[0].mxu0
        %v2260 = vadd.f32 %v2159, %v2259
        %v2261 = vpop.f32.mrb[0].mxu0
        %2262 = vmatprep.mubr.bf16.mxu0 0
        %2263 = vmatmul.mubr.bf16.gmra.mrb[0].mxu0 %v2169
        %v2264 = vpop.f32.mrb[0].mxu0
        %v2265 = vadd.f32 %v2159, %v2264
        %v2266 = vpop.f32.mrb[0].mxu0
        %v2267 = vpop.f32.mrb[0].mxu0
        %v2268 = vadd.f32 %v2159, %v2267
        %v2269 = vpop.f32.mrb[0].mxu0
        %2270 = vmatprep.mubr.bf16.mxu0 0
        %2271 = vmatmul.mubr.bf16.gmra.mrb[0].mxu0 %v2172
        %v2272 = vpop.f32.mrb[0].mxu0
        %v2273 = vadd.f32 %v2159, %v2272
        %v2274 = vpop.f32.mrb[0].mxu0
        %v2275 = vpop.f32.mrb[0].mxu0
        %v2276 = vadd.f32 %v2159, %v2275
        %v2277 = vpop.f32.mrb[0].mxu0
        %2278 = vmatprep.mubr.bf16.mxu0 0
        %2279 = vmatmul.mubr.bf16.gmra.mrb[0].mxu0 %v2175
        %v2280 = vpop.f32.mrb[0].mxu0
        %v2281 = vadd.f32 %v2159, %v2280
        %v2282 = vpop.f32.mrb[0].mxu0
        %v2283 = vpop.f32.mrb[0].mxu0
        %v2284 = vadd.f32 %v2159, %v2283
        %v2285 = vpop.f32.mrb[0].mxu0
        %2286 = vmatprep.mubr.bf16.mxu0 0
        %2287 = vmatmul.mubr.bf16.gmra.mrb[0].mxu0 %v2178
        %v2288 = vpop.f32.mrb[0].mxu0
        %v2289 = vadd.f32 %v2159, %v2288
        %v2290 = vpop.f32.mrb[0].mxu0
        %v2291 = vpop.f32.mrb[0].mxu0
        %v2292 = vadd.f32 %v2159, %v2291
        %v2293 = vpop.f32.mrb[0].mxu0
        %2294 = vmatprep.mubr.bf16.mxu0 0
        %2295 = vmatmul.mubr.bf16.gmra.mrb[0].mxu0 %v2181
        %v2296 = vpop.f32.mrb[0].mxu0
        %v2297 = vadd.f32 %v2159, %v2296
        %v2298 = vpop.f32.mrb[0].mxu0
        %v2299 = vpop.f32.mrb[0].mxu0
        %v2300 = vadd.f32 %v2159, %v2299
        %v2301 = vpop.f32.mrb[0].mxu0
        %2302 = vmatprep.mubr.bf16.mxu0 0
        %2303 = vmatmul.mubr.bf16.gmra.mrb[0].mxu0 %v2184
        %v2304 = vpop.f32.mrb[0].mxu0
        %v2305 = vadd.f32 %v2159, %v2304
        %v2306 = vpop.f32.mrb[0].mxu0
        %v2307 = vpop.f32.mrb[0].mxu0
        %v2308 = vadd.f32 %v2159, %v2307
        %v2309 = vpop.f32.mrb[0].mxu0
        %2310 = vmatprep.mubr.bf16.mxu0 0
        %2311 = vmatmul.mubr.bf16.gmra.mrb[0].mxu0 %v2187
        %v2312 = vpop.f32.mrb[0].mxu0
        %v2313 = vadd.f32 %v2159, %v2312
        %v2314 = vpop.f32.mrb[0].mxu0
        %v2315 = vpop.f32.mrb[0].mxu0
        %v2316 = vadd.f32 %v2159, %v2315
        %v2317 = vpop.f32.mrb[0].mxu0
        %2318 = vmatprep.mubr.bf16.mxu0 0
        %2319 = vmatmul.mubr.bf16.gmra.mrb[0].mxu0 %v2190
        %v2320 = vpop.f32.mrb[0].mxu0
        %v2321 = vadd.f32 %v2159, %v2320
        %v2322 = vpop.f32.mrb[0].mxu0
        %v2323 = vpop.f32.mrb[0].mxu0
        %v2324 = vadd.f32 %v2159, %v2323
        %v2325 = vpop.f32.mrb[0].mxu0
        %2326 = vmatprep.mubr.bf16.mxu0 0
        %2327 = vmatmul.mubr.bf16.gmra.mrb[0].mxu0 %v2193
        %v2328 = vpop.f32.mrb[0].mxu0
        %v2329 = vadd.f32 %v2159, %v2328
        %v2330 = vpop.f32.mrb[0].mxu0
        %v2331 = vpop.f32.mrb[0].mxu0
        %v2332 = vadd.f32 %v2159, %v2331
        %v2333 = vpop.f32.mrb[0].mxu0
        %2334 = vmatprep.mubr.bf16.mxu0 0
        %2335 = vmatmul.mubr.bf16.gmra.mrb[0].mxu0 %v2196
        %v2336 = vpop.f32.mrb[0].mxu0
        %v2337 = vadd.f32 %v2159, %v2336
        %v2338 = vpop.f32.mrb[0].mxu0
        %v2339 = vpop.f32.mrb[0].mxu0
        %v2340 = vadd.f32 %v2159, %v2339
        %v2341 = vpop.f32.mrb[0].mxu0
        %2342 = vmatprep.mubr.bf16.mxu0 0
        %2343 = vmatmul.mubr.bf16.gmra.mrb[0].mxu0 %v2199
        %v2344 = vpop.f32.mrb[0].mxu0
        %v2345 = vadd.f32 %v2159, %v2344
        %v2346 = vpop.f32.mrb[0].mxu0
        %v2347 = vpop.f32.mrb[0].mxu0
        %v2348 = vadd.f32 %v2159, %v2347
        %v2349 = vpop.f32.mrb[0].mxu0
        %2350 = vmatprep.mubr.bf16.mxu0 0
        %2351 = vmatmul.mubr.bf16.gmra.mrb[0].mxu0 %v2202
        %v2352 = vpop.f32.mrb[0].mxu0
        %v2353 = vadd.f32 %v2159, %v2352
        %v2354 = vpop.f32.mrb[0].mxu0
        %v2355 = vpop.f32.mrb[0].mxu0
        %v2356 = vadd.f32 %v2159, %v2355
        %v2357 = vpop.f32.mrb[0].mxu0
        %2358 = vmatprep.mubr.bf16.mxu0 0
        %2359 = vmatmul.mubr.bf16.gmra.mrb[0].mxu0 %v2205
        %v2360 = vpop.f32.mrb[0].mxu0
        %v2361 = vadd.f32 %v2159, %v2360
        %v2362 = vpop.f32.mrb[0].mxu0
        %v2363 = vpop.f32.mrb[0].mxu0
        %v2364 = vadd.f32 %v2159, %v2363
        %v2365 = vpop.f32.mrb[0].mxu0
        %2366 = vmatprep.mubr.bf16.mxu0 0
        %2367 = vmatmul.mubr.bf16.gmra.mrb[0].mxu0 %v2208
        %v2368 = vpop.f32.mrb[0].mxu0
        %v2369 = vadd.f32 %v2159, %v2368
        %v2370 = vpop.f32.mrb[0].mxu0
        %v2371 = vpop.f32.mrb[0].mxu0
        %v2372 = vadd.f32 %v2159, %v2371
        %v2373 = vpop.f32.mrb[0].mxu0
        %2374 = vdwg.mxu0
        %v2375 = vmax.f32 %v2249, 0.0
        %v2376 = vmax.f32 %v2252, 0.0
        %v2377 = vmax.f32 %v2257, 0.0
        %v2378 = vmax.f32 %v2260, 0.0
        %v2379 = vmax.f32 %v2265, 0.0
        %v2380 = vmax.f32 %v2268, 0.0
        %v2381 = vmax.f32 %v2273, 0.0
        %v2382 = vmax.f32 %v2276, 0.0
        %v2383 = vmax.f32 %v2281, 0.0
        %v2384 = vmax.f32 %v2284, 0.0
        %v2385 = vmax.f32 %v2289, 0.0
        %v2386 = vmax.f32 %v2292, 0.0
        %v2387 = vmax.f32 %v2297, 0.0
        %v2388 = vmax.f32 %v2300, 0.0
        %v2389 = vmax.f32 %v2305, 0.0
        %v2390 = vmax.f32 %v2308, 0.0
        %v2391 = vmax.f32 %v2313, 0.0
        %v2392 = vmax.f32 %v2316, 0.0
        %v2393 = vmax.f32 %v2321, 0.0
        %v2394 = vmax.f32 %v2324, 0.0
        %v2395 = vmax.f32 %v2329, 0.0
        %v2396 = vmax.f32 %v2332, 0.0
        %v2397 = vmax.f32 %v2337, 0.0
        %v2398 = vmax.f32 %v2340, 0.0
        %v2399 = vmax.f32 %v2345, 0.0
        %v2400 = vmax.f32 %v2348, 0.0
        %v2401 = vmax.f32 %v2353, 0.0
        %v2402 = vmax.f32 %v2356, 0.0
        %v2403 = vmax.f32 %v2361, 0.0
        %v2404 = vmax.f32 %v2364, 0.0
        %v2405 = vmax.f32 %v2369, 0.0
        %v2406 = vmax.f32 %v2372, 0.0
        %v2439 = vcombine.high %v2375, %v2375
        %v2441 = vunpack.c.l.s4 1983009808
        %v2442 = vunpack.c.0.s8 %v2441
        %v2443 = vlaneseq
        %v2444 = vshrl.u32 %v2443, 7
        %v2445 = vsub.s32 %v2442, %v2444
        %v2446 = vrot.slane %v2375, %v2445
        %v2448 = vunpack.c.l.s4 1983009808
        %v2449 = vunpack.c.0.s8 %v2448
        %v2450 = vlaneseq
        %v2451 = vshrl.u32 %v2450, 7
        %v2452 = vsub.s32 %v2449, %v2451
        %v2453 = vrot.slane %v2439, %v2452
        %v2454 = vcombine.high %v2446, %v2446
        %v2455 = vcombine.high %v2453, %v2453
        %v2456 = vcombine.high %v2376, %v2376
        %v2458 = vunpack.c.l.s4 1983009808
        %v2459 = vunpack.c.0.s8 %v2458
        %v2460 = vlaneseq
        %v2461 = vshrl.u32 %v2460, 7
        %v2462 = vsub.s32 %v2459, %v2461
        %v2463 = vrot.slane %v2376, %v2462
        %v2465 = vunpack.c.l.s4 1983009808
        %v2466 = vunpack.c.0.s8 %v2465
        %v2467 = vlaneseq
        %v2468 = vshrl.u32 %v2467, 7
        %v2469 = vsub.s32 %v2466, %v2468
        %v2470 = vrot.slane %v2456, %v2469
        %v2471 = vcombine.high %v2463, %v2463
        %v2472 = vcombine.high %v2470, %v2470
        %v2473 = vcombine.high %v2377, %v2377
        %v2475 = vunpack.c.l.s4 1983009808
        %v2476 = vunpack.c.0.s8 %v2475
        %v2477 = vlaneseq
        %v2478 = vshrl.u32 %v2477, 7
        %v2479 = vsub.s32 %v2476, %v2478
        %v2480 = vrot.slane %v2377, %v2479
        %v2482 = vunpack.c.l.s4 1983009808
        %v2483 = vunpack.c.0.s8 %v2482
        %v2484 = vlaneseq
        %v2485 = vshrl.u32 %v2484, 7
        %v2486 = vsub.s32 %v2483, %v2485
        %v2487 = vrot.slane %v2473, %v2486
        %v2488 = vcombine.high %v2480, %v2480
        %v2489 = vcombine.high %v2487, %v2487
        %v2490 = vcombine.high %v2378, %v2378
        %v2492 = vunpack.c.l.s4 1983009808
        %v2493 = vunpack.c.0.s8 %v2492
        %v2494 = vlaneseq
        %v2495 = vshrl.u32 %v2494, 7
        %v2496 = vsub.s32 %v2493, %v2495
        %v2497 = vrot.slane %v2378, %v2496
        %v2499 = vunpack.c.l.s4 1983009808
        %v2500 = vunpack.c.0.s8 %v2499
        %v2501 = vlaneseq
        %v2502 = vshrl.u32 %v2501, 7
        %v2503 = vsub.s32 %v2500, %v2502
        %v2504 = vrot.slane %v2490, %v2503
        %v2505 = vcombine.high %v2497, %v2497
        %v2506 = vcombine.high %v2504, %v2504
        %v2507 = vcombine.high %v2379, %v2379
        %v2509 = vunpack.c.l.s4 1983009808
        %v2510 = vunpack.c.0.s8 %v2509
        %v2511 = vlaneseq
        %v2512 = vshrl.u32 %v2511, 7
        %v2513 = vsub.s32 %v2510, %v2512
        %v2514 = vrot.slane %v2379, %v2513
        %v2516 = vunpack.c.l.s4 1983009808
        %v2517 = vunpack.c.0.s8 %v2516
        %v2518 = vlaneseq
        %v2519 = vshrl.u32 %v2518, 7
        %v2520 = vsub.s32 %v2517, %v2519
        %v2521 = vrot.slane %v2507, %v2520
        %v2522 = vcombine.high %v2514, %v2514
        %v2523 = vcombine.high %v2521, %v2521
        %v2524 = vcombine.high %v2380, %v2380
        %v2526 = vunpack.c.l.s4 1983009808
        %v2527 = vunpack.c.0.s8 %v2526
        %v2528 = vlaneseq
        %v2529 = vshrl.u32 %v2528, 7
        %v2530 = vsub.s32 %v2527, %v2529
        %v2531 = vrot.slane %v2380, %v2530
        %v2533 = vunpack.c.l.s4 1983009808
        %v2534 = vunpack.c.0.s8 %v2533
        %v2535 = vlaneseq
        %v2536 = vshrl.u32 %v2535, 7
        %v2537 = vsub.s32 %v2534, %v2536
        %v2538 = vrot.slane %v2524, %v2537
        %v2539 = vcombine.high %v2531, %v2531
        %v2540 = vcombine.high %v2538, %v2538
        %v2541 = vcombine.high %v2381, %v2381
        %v2543 = vunpack.c.l.s4 1983009808
        %v2544 = vunpack.c.0.s8 %v2543
        %v2545 = vlaneseq
        %v2546 = vshrl.u32 %v2545, 7
        %v2547 = vsub.s32 %v2544, %v2546
        %v2548 = vrot.slane %v2381, %v2547
        %v2550 = vunpack.c.l.s4 1983009808
        %v2551 = vunpack.c.0.s8 %v2550
        %v2552 = vlaneseq
        %v2553 = vshrl.u32 %v2552, 7
        %v2554 = vsub.s32 %v2551, %v2553
        %v2555 = vrot.slane %v2541, %v2554
        %v2556 = vcombine.high %v2548, %v2548
        %v2557 = vcombine.high %v2555, %v2555
        %v2558 = vcombine.high %v2382, %v2382
        %v2560 = vunpack.c.l.s4 1983009808
        %v2561 = vunpack.c.0.s8 %v2560
        %v2562 = vlaneseq
        %v2563 = vshrl.u32 %v2562, 7
        %v2564 = vsub.s32 %v2561, %v2563
        %v2565 = vrot.slane %v2382, %v2564
        %v2567 = vunpack.c.l.s4 1983009808
        %v2568 = vunpack.c.0.s8 %v2567
        %v2569 = vlaneseq
        %v2570 = vshrl.u32 %v2569, 7
        %v2571 = vsub.s32 %v2568, %v2570
        %v2572 = vrot.slane %v2558, %v2571
        %v2573 = vcombine.high %v2565, %v2565
        %v2574 = vcombine.high %v2572, %v2572
        %v2575 = vcombine.high %v2383, %v2383
        %v2577 = vunpack.c.l.s4 1983009808
        %v2578 = vunpack.c.0.s8 %v2577
        %v2579 = vlaneseq
        %v2580 = vshrl.u32 %v2579, 7
        %v2581 = vsub.s32 %v2578, %v2580
        %v2582 = vrot.slane %v2383, %v2581
        %v2584 = vunpack.c.l.s4 1983009808
        %v2585 = vunpack.c.0.s8 %v2584
        %v2586 = vlaneseq
        %v2587 = vshrl.u32 %v2586, 7
        %v2588 = vsub.s32 %v2585, %v2587
        %v2589 = vrot.slane %v2575, %v2588
        %v2590 = vcombine.high %v2582, %v2582
        %v2591 = vcombine.high %v2589, %v2589
        %v2592 = vcombine.high %v2384, %v2384
        %v2594 = vunpack.c.l.s4 1983009808
        %v2595 = vunpack.c.0.s8 %v2594
        %v2596 = vlaneseq
        %v2597 = vshrl.u32 %v2596, 7
        %v2598 = vsub.s32 %v2595, %v2597
        %v2599 = vrot.slane %v2384, %v2598
        %v2601 = vunpack.c.l.s4 1983009808
        %v2602 = vunpack.c.0.s8 %v2601
        %v2603 = vlaneseq
        %v2604 = vshrl.u32 %v2603, 7
        %v2605 = vsub.s32 %v2602, %v2604
        %v2606 = vrot.slane %v2592, %v2605
        %v2607 = vcombine.high %v2599, %v2599
        %v2608 = vcombine.high %v2606, %v2606
        %v2609 = vcombine.high %v2385, %v2385
        %v2611 = vunpack.c.l.s4 1983009808
        %v2612 = vunpack.c.0.s8 %v2611
        %v2613 = vlaneseq
        %v2614 = vshrl.u32 %v2613, 7
        %v2615 = vsub.s32 %v2612, %v2614
        %v2616 = vrot.slane %v2385, %v2615
        %v2618 = vunpack.c.l.s4 1983009808
        %v2619 = vunpack.c.0.s8 %v2618
        %v2620 = vlaneseq
        %v2621 = vshrl.u32 %v2620, 7
        %v2622 = vsub.s32 %v2619, %v2621
        %v2623 = vrot.slane %v2609, %v2622
        %v2624 = vcombine.high %v2616, %v2616
        %v2625 = vcombine.high %v2623, %v2623
        %v2626 = vcombine.high %v2386, %v2386
        %v2628 = vunpack.c.l.s4 1983009808
        %v2629 = vunpack.c.0.s8 %v2628
        %v2630 = vlaneseq
        %v2631 = vshrl.u32 %v2630, 7
        %v2632 = vsub.s32 %v2629, %v2631
        %v2633 = vrot.slane %v2386, %v2632
        %v2635 = vunpack.c.l.s4 1983009808
        %v2636 = vunpack.c.0.s8 %v2635
        %v2637 = vlaneseq
        %v2638 = vshrl.u32 %v2637, 7
        %v2639 = vsub.s32 %v2636, %v2638
        %v2640 = vrot.slane %v2626, %v2639
        %v2641 = vcombine.high %v2633, %v2633
        %v2642 = vcombine.high %v2640, %v2640
        %v2643 = vcombine.high %v2387, %v2387
        %v2645 = vunpack.c.l.s4 1983009808
        %v2646 = vunpack.c.0.s8 %v2645
        %v2647 = vlaneseq
        %v2648 = vshrl.u32 %v2647, 7
        %v2649 = vsub.s32 %v2646, %v2648
        %v2650 = vrot.slane %v2387, %v2649
        %v2652 = vunpack.c.l.s4 1983009808
        %v2653 = vunpack.c.0.s8 %v2652
        %v2654 = vlaneseq
        %v2655 = vshrl.u32 %v2654, 7
        %v2656 = vsub.s32 %v2653, %v2655
        %v2657 = vrot.slane %v2643, %v2656
        %v2658 = vcombine.high %v2650, %v2650
        %v2659 = vcombine.high %v2657, %v2657
        %v2660 = vcombine.high %v2388, %v2388
        %v2662 = vunpack.c.l.s4 1983009808
        %v2663 = vunpack.c.0.s8 %v2662
        %v2664 = vlaneseq
        %v2665 = vshrl.u32 %v2664, 7
        %v2666 = vsub.s32 %v2663, %v2665
        %v2667 = vrot.slane %v2388, %v2666
        %v2669 = vunpack.c.l.s4 1983009808
        %v2670 = vunpack.c.0.s8 %v2669
        %v2671 = vlaneseq
        %v2672 = vshrl.u32 %v2671, 7
        %v2673 = vsub.s32 %v2670, %v2672
        %v2674 = vrot.slane %v2660, %v2673
        %v2675 = vcombine.high %v2667, %v2667
        %v2676 = vcombine.high %v2674, %v2674
        %v2677 = vcombine.high %v2389, %v2389
        %v2679 = vunpack.c.l.s4 1983009808
        %v2680 = vunpack.c.0.s8 %v2679
        %v2681 = vlaneseq
        %v2682 = vshrl.u32 %v2681, 7
        %v2683 = vsub.s32 %v2680, %v2682
        %v2684 = vrot.slane %v2389, %v2683
        %v2686 = vunpack.c.l.s4 1983009808
        %v2687 = vunpack.c.0.s8 %v2686
        %v2688 = vlaneseq
        %v2689 = vshrl.u32 %v2688, 7
        %v2690 = vsub.s32 %v2687, %v2689
        %v2691 = vrot.slane %v2677, %v2690
        %v2692 = vcombine.high %v2684, %v2684
        %v2693 = vcombine.high %v2691, %v2691
        %v2694 = vcombine.high %v2390, %v2390
        %v2696 = vunpack.c.l.s4 1983009808
        %v2697 = vunpack.c.0.s8 %v2696
        %v2698 = vlaneseq
        %v2699 = vshrl.u32 %v2698, 7
        %v2700 = vsub.s32 %v2697, %v2699
        %v2701 = vrot.slane %v2390, %v2700
        %v2703 = vunpack.c.l.s4 1983009808
        %v2704 = vunpack.c.0.s8 %v2703
        %v2705 = vlaneseq
        %v2706 = vshrl.u32 %v2705, 7
        %v2707 = vsub.s32 %v2704, %v2706
        %v2708 = vrot.slane %v2694, %v2707
        %v2709 = vcombine.high %v2701, %v2701
        %v2710 = vcombine.high %v2708, %v2708
        %v2711 = vcombine.high %v2391, %v2391
        %v2713 = vunpack.c.l.s4 1983009808
        %v2714 = vunpack.c.0.s8 %v2713
        %v2715 = vlaneseq
        %v2716 = vshrl.u32 %v2715, 7
        %v2717 = vsub.s32 %v2714, %v2716
        %v2718 = vrot.slane %v2391, %v2717
        %v2720 = vunpack.c.l.s4 1983009808
        %v2721 = vunpack.c.0.s8 %v2720
        %v2722 = vlaneseq
        %v2723 = vshrl.u32 %v2722, 7
        %v2724 = vsub.s32 %v2721, %v2723
        %v2725 = vrot.slane %v2711, %v2724
        %v2726 = vcombine.high %v2718, %v2718
        %v2727 = vcombine.high %v2725, %v2725
        %v2728 = vcombine.high %v2392, %v2392
        %v2730 = vunpack.c.l.s4 1983009808
        %v2731 = vunpack.c.0.s8 %v2730
        %v2732 = vlaneseq
        %v2733 = vshrl.u32 %v2732, 7
        %v2734 = vsub.s32 %v2731, %v2733
        %v2735 = vrot.slane %v2392, %v2734
        %v2737 = vunpack.c.l.s4 1983009808
        %v2738 = vunpack.c.0.s8 %v2737
        %v2739 = vlaneseq
        %v2740 = vshrl.u32 %v2739, 7
        %v2741 = vsub.s32 %v2738, %v2740
        %v2742 = vrot.slane %v2728, %v2741
        %v2743 = vcombine.high %v2735, %v2735
        %v2744 = vcombine.high %v2742, %v2742
        %v2745 = vcombine.high %v2393, %v2393
        %v2747 = vunpack.c.l.s4 1983009808
        %v2748 = vunpack.c.0.s8 %v2747
        %v2749 = vlaneseq
        %v2750 = vshrl.u32 %v2749, 7
        %v2751 = vsub.s32 %v2748, %v2750
        %v2752 = vrot.slane %v2393, %v2751
        %v2754 = vunpack.c.l.s4 1983009808
        %v2755 = vunpack.c.0.s8 %v2754
        %v2756 = vlaneseq
        %v2757 = vshrl.u32 %v2756, 7
        %v2758 = vsub.s32 %v2755, %v2757
        %v2759 = vrot.slane %v2745, %v2758
        %v2760 = vcombine.high %v2752, %v2752
        %v2761 = vcombine.high %v2759, %v2759
        %v2762 = vcombine.high %v2394, %v2394
        %v2764 = vunpack.c.l.s4 1983009808
        %v2765 = vunpack.c.0.s8 %v2764
        %v2766 = vlaneseq
        %v2767 = vshrl.u32 %v2766, 7
        %v2768 = vsub.s32 %v2765, %v2767
        %v2769 = vrot.slane %v2394, %v2768
        %v2771 = vunpack.c.l.s4 1983009808
        %v2772 = vunpack.c.0.s8 %v2771
        %v2773 = vlaneseq
        %v2774 = vshrl.u32 %v2773, 7
        %v2775 = vsub.s32 %v2772, %v2774
        %v2776 = vrot.slane %v2762, %v2775
        %v2777 = vcombine.high %v2769, %v2769
        %v2778 = vcombine.high %v2776, %v2776
        %v2779 = vcombine.high %v2395, %v2395
        %v2781 = vunpack.c.l.s4 1983009808
        %v2782 = vunpack.c.0.s8 %v2781
        %v2783 = vlaneseq
        %v2784 = vshrl.u32 %v2783, 7
        %v2785 = vsub.s32 %v2782, %v2784
        %v2786 = vrot.slane %v2395, %v2785
        %v2788 = vunpack.c.l.s4 1983009808
        %v2789 = vunpack.c.0.s8 %v2788
        %v2790 = vlaneseq
        %v2791 = vshrl.u32 %v2790, 7
        %v2792 = vsub.s32 %v2789, %v2791
        %v2793 = vrot.slane %v2779, %v2792
        %v2794 = vcombine.high %v2786, %v2786
        %v2795 = vcombine.high %v2793, %v2793
        %v2796 = vcombine.high %v2396, %v2396
        %v2798 = vunpack.c.l.s4 1983009808
        %v2799 = vunpack.c.0.s8 %v2798
        %v2800 = vlaneseq
        %v2801 = vshrl.u32 %v2800, 7
        %v2802 = vsub.s32 %v2799, %v2801
        %v2803 = vrot.slane %v2396, %v2802
        %v2805 = vunpack.c.l.s4 1983009808
        %v2806 = vunpack.c.0.s8 %v2805
        %v2807 = vlaneseq
        %v2808 = vshrl.u32 %v2807, 7
        %v2809 = vsub.s32 %v2806, %v2808
        %v2810 = vrot.slane %v2796, %v2809
        %v2811 = vcombine.high %v2803, %v2803
        %v2812 = vcombine.high %v2810, %v2810
        %v2813 = vcombine.high %v2397, %v2397
        %v2815 = vunpack.c.l.s4 1983009808
        %v2816 = vunpack.c.0.s8 %v2815
        %v2817 = vlaneseq
        %v2818 = vshrl.u32 %v2817, 7
        %v2819 = vsub.s32 %v2816, %v2818
        %v2820 = vrot.slane %v2397, %v2819
        %v2822 = vunpack.c.l.s4 1983009808
        %v2823 = vunpack.c.0.s8 %v2822
        %v2824 = vlaneseq
        %v2825 = vshrl.u32 %v2824, 7
        %v2826 = vsub.s32 %v2823, %v2825
        %v2827 = vrot.slane %v2813, %v2826
        %v2828 = vcombine.high %v2820, %v2820
        %v2829 = vcombine.high %v2827, %v2827
        %v2830 = vcombine.high %v2398, %v2398
        %v2832 = vunpack.c.l.s4 1983009808
        %v2833 = vunpack.c.0.s8 %v2832
        %v2834 = vlaneseq
        %v2835 = vshrl.u32 %v2834, 7
        %v2836 = vsub.s32 %v2833, %v2835
        %v2837 = vrot.slane %v2398, %v2836
        %v2839 = vunpack.c.l.s4 1983009808
        %v2840 = vunpack.c.0.s8 %v2839
        %v2841 = vlaneseq
        %v2842 = vshrl.u32 %v2841, 7
        %v2843 = vsub.s32 %v2840, %v2842
        %v2844 = vrot.slane %v2830, %v2843
        %v2845 = vcombine.high %v2837, %v2837
        %v2846 = vcombine.high %v2844, %v2844
        %v2847 = vcombine.high %v2399, %v2399
        %v2849 = vunpack.c.l.s4 1983009808
        %v2850 = vunpack.c.0.s8 %v2849
        %v2851 = vlaneseq
        %v2852 = vshrl.u32 %v2851, 7
        %v2853 = vsub.s32 %v2850, %v2852
        %v2854 = vrot.slane %v2399, %v2853
        %v2856 = vunpack.c.l.s4 1983009808
        %v2857 = vunpack.c.0.s8 %v2856
        %v2858 = vlaneseq
        %v2859 = vshrl.u32 %v2858, 7
        %v2860 = vsub.s32 %v2857, %v2859
        %v2861 = vrot.slane %v2847, %v2860
        %v2862 = vcombine.high %v2854, %v2854
        %v2863 = vcombine.high %v2861, %v2861
        %v2864 = vcombine.high %v2400, %v2400
        %v2866 = vunpack.c.l.s4 1983009808
        %v2867 = vunpack.c.0.s8 %v2866
        %v2868 = vlaneseq
        %v2869 = vshrl.u32 %v2868, 7
        %v2870 = vsub.s32 %v2867, %v2869
        %v2871 = vrot.slane %v2400, %v2870
        %v2873 = vunpack.c.l.s4 1983009808
        %v2874 = vunpack.c.0.s8 %v2873
        %v2875 = vlaneseq
        %v2876 = vshrl.u32 %v2875, 7
        %v2877 = vsub.s32 %v2874, %v2876
        %v2878 = vrot.slane %v2864, %v2877
        %v2879 = vcombine.high %v2871, %v2871
        %v2880 = vcombine.high %v2878, %v2878
        %v2881 = vcombine.high %v2401, %v2401
        %v2883 = vunpack.c.l.s4 1983009808
        %v2884 = vunpack.c.0.s8 %v2883
        %v2885 = vlaneseq
        %v2886 = vshrl.u32 %v2885, 7
        %v2887 = vsub.s32 %v2884, %v2886
        %v2888 = vrot.slane %v2401, %v2887
        %v2890 = vunpack.c.l.s4 1983009808
        %v2891 = vunpack.c.0.s8 %v2890
        %v2892 = vlaneseq
        %v2893 = vshrl.u32 %v2892, 7
        %v2894 = vsub.s32 %v2891, %v2893
        %v2895 = vrot.slane %v2881, %v2894
        %v2896 = vcombine.high %v2888, %v2888
        %v2897 = vcombine.high %v2895, %v2895
        %v2898 = vcombine.high %v2402, %v2402
        %v2900 = vunpack.c.l.s4 1983009808
        %v2901 = vunpack.c.0.s8 %v2900
        %v2902 = vlaneseq
        %v2903 = vshrl.u32 %v2902, 7
        %v2904 = vsub.s32 %v2901, %v2903
        %v2905 = vrot.slane %v2402, %v2904
        %v2907 = vunpack.c.l.s4 1983009808
        %v2908 = vunpack.c.0.s8 %v2907
        %v2909 = vlaneseq
        %v2910 = vshrl.u32 %v2909, 7
        %v2911 = vsub.s32 %v2908, %v2910
        %v2912 = vrot.slane %v2898, %v2911
        %v2913 = vcombine.high %v2905, %v2905
        %v2914 = vcombine.high %v2912, %v2912
        %v2915 = vcombine.high %v2403, %v2403
        %v2917 = vunpack.c.l.s4 1983009808
        %v2918 = vunpack.c.0.s8 %v2917
        %v2919 = vlaneseq
        %v2920 = vshrl.u32 %v2919, 7
        %v2921 = vsub.s32 %v2918, %v2920
        %v2922 = vrot.slane %v2403, %v2921
        %v2924 = vunpack.c.l.s4 1983009808
        %v2925 = vunpack.c.0.s8 %v2924
        %v2926 = vlaneseq
        %v2927 = vshrl.u32 %v2926, 7
        %v2928 = vsub.s32 %v2925, %v2927
        %v2929 = vrot.slane %v2915, %v2928
        %v2930 = vcombine.high %v2922, %v2922
        %v2931 = vcombine.high %v2929, %v2929
        %v2932 = vcombine.high %v2404, %v2404
        %v2934 = vunpack.c.l.s4 1983009808
        %v2935 = vunpack.c.0.s8 %v2934
        %v2936 = vlaneseq
        %v2937 = vshrl.u32 %v2936, 7
        %v2938 = vsub.s32 %v2935, %v2937
        %v2939 = vrot.slane %v2404, %v2938
        %v2941 = vunpack.c.l.s4 1983009808
        %v2942 = vunpack.c.0.s8 %v2941
        %v2943 = vlaneseq
        %v2944 = vshrl.u32 %v2943, 7
        %v2945 = vsub.s32 %v2942, %v2944
        %v2946 = vrot.slane %v2932, %v2945
        %v2947 = vcombine.high %v2939, %v2939
        %v2948 = vcombine.high %v2946, %v2946
        %v2949 = vcombine.high %v2405, %v2405
        %v2951 = vunpack.c.l.s4 1983009808
        %v2952 = vunpack.c.0.s8 %v2951
        %v2953 = vlaneseq
        %v2954 = vshrl.u32 %v2953, 7
        %v2955 = vsub.s32 %v2952, %v2954
        %v2956 = vrot.slane %v2405, %v2955
        %v2958 = vunpack.c.l.s4 1983009808
        %v2959 = vunpack.c.0.s8 %v2958
        %v2960 = vlaneseq
        %v2961 = vshrl.u32 %v2960, 7
        %v2962 = vsub.s32 %v2959, %v2961
        %v2963 = vrot.slane %v2949, %v2962
        %v2964 = vcombine.high %v2956, %v2956
        %v2965 = vcombine.high %v2963, %v2963
        %v2966 = vcombine.high %v2406, %v2406
        %v2968 = vunpack.c.l.s4 1983009808
        %v2969 = vunpack.c.0.s8 %v2968
        %v2970 = vlaneseq
        %v2971 = vshrl.u32 %v2970, 7
        %v2972 = vsub.s32 %v2969, %v2971
        %v2973 = vrot.slane %v2406, %v2972
        %v2975 = vunpack.c.l.s4 1983009808
        %v2976 = vunpack.c.0.s8 %v2975
        %v2977 = vlaneseq
        %v2978 = vshrl.u32 %v2977, 7
        %v2979 = vsub.s32 %v2976, %v2978
        %v2980 = vrot.slane %v2966, %v2979
        %v2981 = vcombine.high %v2973, %v2973
        %v2982 = vcombine.high %v2980, %v2980
        %vm3111 = vcmask 58368
        %v3112 = vsel %vm3111, %v2446, -inf
        %v3113 = vrot.slane %v3112, 4
        %v3114 = vmax.f32 %v3112, %v3113
        %v3115 = vrot.slane %v3114, 2
        %v3116 = vmax.f32 %v3114, %v3115
        %v3117 = vrot.slane %v3116, 1
        %v3118 = vmax.f32 %v3116, %v3117
        %v3119 = vsel %vm3111, %v2454, -inf
        %v3120 = vrot.slane %v3119, 4
        %v3121 = vmax.f32 %v3119, %v3120
        %v3122 = vrot.slane %v3121, 2
        %v3123 = vmax.f32 %v3121, %v3122
        %v3124 = vrot.slane %v3123, 1
        %v3125 = vmax.f32 %v3123, %v3124
        %v3126 = vsel %vm3111, %v2453, -inf
        %v3127 = vrot.slane %v3126, 4
        %v3128 = vmax.f32 %v3126, %v3127
        %v3129 = vrot.slane %v3128, 2
        %v3130 = vmax.f32 %v3128, %v3129
        %v3131 = vrot.slane %v3130, 1
        %v3132 = vmax.f32 %v3130, %v3131
        %v3133 = vsel %vm3111, %v2455, -inf
        %v3134 = vrot.slane %v3133, 4
        %v3135 = vmax.f32 %v3133, %v3134
        %v3136 = vrot.slane %v3135, 2
        %v3137 = vmax.f32 %v3135, %v3136
        %v3138 = vrot.slane %v3137, 1
        %v3139 = vmax.f32 %v3137, %v3138
        %v3140 = vsel %vm3111, %v2463, -inf
        %v3141 = vrot.slane %v3140, 4
        %v3142 = vmax.f32 %v3140, %v3141
        %v3143 = vrot.slane %v3142, 2
        %v3144 = vmax.f32 %v3142, %v3143
        %v3145 = vrot.slane %v3144, 1
        %v3146 = vmax.f32 %v3144, %v3145
        %v3147 = vsel %vm3111, %v2471, -inf
        %v3148 = vrot.slane %v3147, 4
        %v3149 = vmax.f32 %v3147, %v3148
        %v3150 = vrot.slane %v3149, 2
        %v3151 = vmax.f32 %v3149, %v3150
        %v3152 = vrot.slane %v3151, 1
        %v3153 = vmax.f32 %v3151, %v3152
        %v3154 = vsel %vm3111, %v2470, -inf
        %v3155 = vrot.slane %v3154, 4
        %v3156 = vmax.f32 %v3154, %v3155
        %v3157 = vrot.slane %v3156, 2
        %v3158 = vmax.f32 %v3156, %v3157
        %v3159 = vrot.slane %v3158, 1
        %v3160 = vmax.f32 %v3158, %v3159
        %v3161 = vsel %vm3111, %v2472, -inf
        %v3162 = vrot.slane %v3161, 4
        %v3163 = vmax.f32 %v3161, %v3162
        %v3164 = vrot.slane %v3163, 2
        %v3165 = vmax.f32 %v3163, %v3164
        %v3166 = vrot.slane %v3165, 1
        %v3167 = vmax.f32 %v3165, %v3166
        %v3168 = vsel %vm3111, %v2480, -inf
        %v3169 = vrot.slane %v3168, 4
        %v3170 = vmax.f32 %v3168, %v3169
        %v3171 = vrot.slane %v3170, 2
        %v3172 = vmax.f32 %v3170, %v3171
        %v3173 = vrot.slane %v3172, 1
        %v3174 = vmax.f32 %v3172, %v3173
        %v3175 = vsel %vm3111, %v2488, -inf
        %v3176 = vrot.slane %v3175, 4
        %v3177 = vmax.f32 %v3175, %v3176
        %v3178 = vrot.slane %v3177, 2
        %v3179 = vmax.f32 %v3177, %v3178
        %v3180 = vrot.slane %v3179, 1
        %v3181 = vmax.f32 %v3179, %v3180
        %v3182 = vsel %vm3111, %v2487, -inf
        %v3183 = vrot.slane %v3182, 4
        %v3184 = vmax.f32 %v3182, %v3183
        %v3185 = vrot.slane %v3184, 2
        %v3186 = vmax.f32 %v3184, %v3185
        %v3187 = vrot.slane %v3186, 1
        %v3188 = vmax.f32 %v3186, %v3187
        %v3189 = vsel %vm3111, %v2489, -inf
        %v3190 = vrot.slane %v3189, 4
        %v3191 = vmax.f32 %v3189, %v3190
        %v3192 = vrot.slane %v3191, 2
        %v3193 = vmax.f32 %v3191, %v3192
        %v3194 = vrot.slane %v3193, 1
        %v3195 = vmax.f32 %v3193, %v3194
        %v3196 = vsel %vm3111, %v2497, -inf
        %v3197 = vrot.slane %v3196, 4
        %v3198 = vmax.f32 %v3196, %v3197
        %v3199 = vrot.slane %v3198, 2
        %v3200 = vmax.f32 %v3198, %v3199
        %v3201 = vrot.slane %v3200, 1
        %v3202 = vmax.f32 %v3200, %v3201
        %v3203 = vsel %vm3111, %v2505, -inf
        %v3204 = vrot.slane %v3203, 4
        %v3205 = vmax.f32 %v3203, %v3204
        %v3206 = vrot.slane %v3205, 2
        %v3207 = vmax.f32 %v3205, %v3206
        %v3208 = vrot.slane %v3207, 1
        %v3209 = vmax.f32 %v3207, %v3208
        %v3210 = vsel %vm3111, %v2504, -inf
        %v3211 = vrot.slane %v3210, 4
        %v3212 = vmax.f32 %v3210, %v3211
        %v3213 = vrot.slane %v3212, 2
        %v3214 = vmax.f32 %v3212, %v3213
        %v3215 = vrot.slane %v3214, 1
        %v3216 = vmax.f32 %v3214, %v3215
        %v3217 = vsel %vm3111, %v2506, -inf
        %v3218 = vrot.slane %v3217, 4
        %v3219 = vmax.f32 %v3217, %v3218
        %v3220 = vrot.slane %v3219, 2
        %v3221 = vmax.f32 %v3219, %v3220
        %v3222 = vrot.slane %v3221, 1
        %v3223 = vmax.f32 %v3221, %v3222
        %v3224 = vsel %vm3111, %v2514, -inf
        %v3225 = vrot.slane %v3224, 4
        %v3226 = vmax.f32 %v3224, %v3225
        %v3227 = vrot.slane %v3226, 2
        %v3228 = vmax.f32 %v3226, %v3227
        %v3229 = vrot.slane %v3228, 1
        %v3230 = vmax.f32 %v3228, %v3229
        %v3231 = vsel %vm3111, %v2522, -inf
        %v3232 = vrot.slane %v3231, 4
        %v3233 = vmax.f32 %v3231, %v3232
        %v3234 = vrot.slane %v3233, 2
        %v3235 = vmax.f32 %v3233, %v3234
        %v3236 = vrot.slane %v3235, 1
        %v3237 = vmax.f32 %v3235, %v3236
        %v3238 = vsel %vm3111, %v2521, -inf
        %v3239 = vrot.slane %v3238, 4
        %v3240 = vmax.f32 %v3238, %v3239
        %v3241 = vrot.slane %v3240, 2
        %v3242 = vmax.f32 %v3240, %v3241
        %v3243 = vrot.slane %v3242, 1
        %v3244 = vmax.f32 %v3242, %v3243
        %v3245 = vsel %vm3111, %v2523, -inf
        %v3246 = vrot.slane %v3245, 4
        %v3247 = vmax.f32 %v3245, %v3246
        %v3248 = vrot.slane %v3247, 2
        %v3249 = vmax.f32 %v3247, %v3248
        %v3250 = vrot.slane %v3249, 1
        %v3251 = vmax.f32 %v3249, %v3250
        %v3252 = vsel %vm3111, %v2531, -inf
        %v3253 = vrot.slane %v3252, 4
        %v3254 = vmax.f32 %v3252, %v3253
        %v3255 = vrot.slane %v3254, 2
        %v3256 = vmax.f32 %v3254, %v3255
        %v3257 = vrot.slane %v3256, 1
        %v3258 = vmax.f32 %v3256, %v3257
        %v3259 = vsel %vm3111, %v2539, -inf
        %v3260 = vrot.slane %v3259, 4
        %v3261 = vmax.f32 %v3259, %v3260
        %v3262 = vrot.slane %v3261, 2
        %v3263 = vmax.f32 %v3261, %v3262
        %v3264 = vrot.slane %v3263, 1
        %v3265 = vmax.f32 %v3263, %v3264
        %v3266 = vsel %vm3111, %v2538, -inf
        %v3267 = vrot.slane %v3266, 4
        %v3268 = vmax.f32 %v3266, %v3267
        %v3269 = vrot.slane %v3268, 2
        %v3270 = vmax.f32 %v3268, %v3269
        %v3271 = vrot.slane %v3270, 1
        %v3272 = vmax.f32 %v3270, %v3271
        %v3273 = vsel %vm3111, %v2540, -inf
        %v3274 = vrot.slane %v3273, 4
        %v3275 = vmax.f32 %v3273, %v3274
        %v3276 = vrot.slane %v3275, 2
        %v3277 = vmax.f32 %v3275, %v3276
        %v3278 = vrot.slane %v3277, 1
        %v3279 = vmax.f32 %v3277, %v3278
        %v3280 = vsel %vm3111, %v2548, -inf
        %v3281 = vrot.slane %v3280, 4
        %v3282 = vmax.f32 %v3280, %v3281
        %v3283 = vrot.slane %v3282, 2
        %v3284 = vmax.f32 %v3282, %v3283
        %v3285 = vrot.slane %v3284, 1
        %v3286 = vmax.f32 %v3284, %v3285
        %v3287 = vsel %vm3111, %v2556, -inf
        %v3288 = vrot.slane %v3287, 4
        %v3289 = vmax.f32 %v3287, %v3288
        %v3290 = vrot.slane %v3289, 2
        %v3291 = vmax.f32 %v3289, %v3290
        %v3292 = vrot.slane %v3291, 1
        %v3293 = vmax.f32 %v3291, %v3292
        %v3294 = vsel %vm3111, %v2555, -inf
        %v3295 = vrot.slane %v3294, 4
        %v3296 = vmax.f32 %v3294, %v3295
        %v3297 = vrot.slane %v3296, 2
        %v3298 = vmax.f32 %v3296, %v3297
        %v3299 = vrot.slane %v3298, 1
        %v3300 = vmax.f32 %v3298, %v3299
        %v3301 = vsel %vm3111, %v2557, -inf
        %v3302 = vrot.slane %v3301, 4
        %v3303 = vmax.f32 %v3301, %v3302
        %v3304 = vrot.slane %v3303, 2
        %v3305 = vmax.f32 %v3303, %v3304
        %v3306 = vrot.slane %v3305, 1
        %v3307 = vmax.f32 %v3305, %v3306
        %v3308 = vsel %vm3111, %v2565, -inf
        %v3309 = vrot.slane %v3308, 4
        %v3310 = vmax.f32 %v3308, %v3309
        %v3311 = vrot.slane %v3310, 2
        %v3312 = vmax.f32 %v3310, %v3311
        %v3313 = vrot.slane %v3312, 1
        %v3314 = vmax.f32 %v3312, %v3313
        %v3315 = vsel %vm3111, %v2573, -inf
        %v3316 = vrot.slane %v3315, 4
        %v3317 = vmax.f32 %v3315, %v3316
        %v3318 = vrot.slane %v3317, 2
        %v3319 = vmax.f32 %v3317, %v3318
        %v3320 = vrot.slane %v3319, 1
        %v3321 = vmax.f32 %v3319, %v3320
        %v3322 = vsel %vm3111, %v2572, -inf
        %v3323 = vrot.slane %v3322, 4
        %v3324 = vmax.f32 %v3322, %v3323
        %v3325 = vrot.slane %v3324, 2
        %v3326 = vmax.f32 %v3324, %v3325
        %v3327 = vrot.slane %v3326, 1
        %v3328 = vmax.f32 %v3326, %v3327
        %v3329 = vsel %vm3111, %v2574, -inf
        %v3330 = vrot.slane %v3329, 4
        %v3331 = vmax.f32 %v3329, %v3330
        %v3332 = vrot.slane %v3331, 2
        %v3333 = vmax.f32 %v3331, %v3332
        %v3334 = vrot.slane %v3333, 1
        %v3335 = vmax.f32 %v3333, %v3334
        %v3336 = vsel %vm3111, %v2582, -inf
        %v3337 = vrot.slane %v3336, 4
        %v3338 = vmax.f32 %v3336, %v3337
        %v3339 = vrot.slane %v3338, 2
        %v3340 = vmax.f32 %v3338, %v3339
        %v3341 = vrot.slane %v3340, 1
        %v3342 = vmax.f32 %v3340, %v3341
        %v3343 = vsel %vm3111, %v2590, -inf
        %v3344 = vrot.slane %v3343, 4
        %v3345 = vmax.f32 %v3343, %v3344
        %v3346 = vrot.slane %v3345, 2
        %v3347 = vmax.f32 %v3345, %v3346
        %v3348 = vrot.slane %v3347, 1
        %v3349 = vmax.f32 %v3347, %v3348
        %v3350 = vsel %vm3111, %v2589, -inf
        %v3351 = vrot.slane %v3350, 4
        %v3352 = vmax.f32 %v3350, %v3351
        %v3353 = vrot.slane %v3352, 2
        %v3354 = vmax.f32 %v3352, %v3353
        %v3355 = vrot.slane %v3354, 1
        %v3356 = vmax.f32 %v3354, %v3355
        %v3357 = vsel %vm3111, %v2591, -inf
        %v3358 = vrot.slane %v3357, 4
        %v3359 = vmax.f32 %v3357, %v3358
        %v3360 = vrot.slane %v3359, 2
        %v3361 = vmax.f32 %v3359, %v3360
        %v3362 = vrot.slane %v3361, 1
        %v3363 = vmax.f32 %v3361, %v3362
        %v3364 = vsel %vm3111, %v2599, -inf
        %v3365 = vrot.slane %v3364, 4
        %v3366 = vmax.f32 %v3364, %v3365
        %v3367 = vrot.slane %v3366, 2
        %v3368 = vmax.f32 %v3366, %v3367
        %v3369 = vrot.slane %v3368, 1
        %v3370 = vmax.f32 %v3368, %v3369
        %v3371 = vsel %vm3111, %v2607, -inf
        %v3372 = vrot.slane %v3371, 4
        %v3373 = vmax.f32 %v3371, %v3372
        %v3374 = vrot.slane %v3373, 2
        %v3375 = vmax.f32 %v3373, %v3374
        %v3376 = vrot.slane %v3375, 1
        %v3377 = vmax.f32 %v3375, %v3376
        %v3378 = vsel %vm3111, %v2606, -inf
        %v3379 = vrot.slane %v3378, 4
        %v3380 = vmax.f32 %v3378, %v3379
        %v3381 = vrot.slane %v3380, 2
        %v3382 = vmax.f32 %v3380, %v3381
        %v3383 = vrot.slane %v3382, 1
        %v3384 = vmax.f32 %v3382, %v3383
        %v3385 = vsel %vm3111, %v2608, -inf
        %v3386 = vrot.slane %v3385, 4
        %v3387 = vmax.f32 %v3385, %v3386
        %v3388 = vrot.slane %v3387, 2
        %v3389 = vmax.f32 %v3387, %v3388
        %v3390 = vrot.slane %v3389, 1
        %v3391 = vmax.f32 %v3389, %v3390
        %v3392 = vsel %vm3111, %v2616, -inf
        %v3393 = vrot.slane %v3392, 4
        %v3394 = vmax.f32 %v3392, %v3393
        %v3395 = vrot.slane %v3394, 2
        %v3396 = vmax.f32 %v3394, %v3395
        %v3397 = vrot.slane %v3396, 1
        %v3398 = vmax.f32 %v3396, %v3397
        %v3399 = vsel %vm3111, %v2624, -inf
        %v3400 = vrot.slane %v3399, 4
        %v3401 = vmax.f32 %v3399, %v3400
        %v3402 = vrot.slane %v3401, 2
        %v3403 = vmax.f32 %v3401, %v3402
        %v3404 = vrot.slane %v3403, 1
        %v3405 = vmax.f32 %v3403, %v3404
        %v3406 = vsel %vm3111, %v2623, -inf
        %v3407 = vrot.slane %v3406, 4
        %v3408 = vmax.f32 %v3406, %v3407
        %v3409 = vrot.slane %v3408, 2
        %v3410 = vmax.f32 %v3408, %v3409
        %v3411 = vrot.slane %v3410, 1
        %v3412 = vmax.f32 %v3410, %v3411
        %v3413 = vsel %vm3111, %v2625, -inf
        %v3414 = vrot.slane %v3413, 4
        %v3415 = vmax.f32 %v3413, %v3414
        %v3416 = vrot.slane %v3415, 2
        %v3417 = vmax.f32 %v3415, %v3416
        %v3418 = vrot.slane %v3417, 1
        %v3419 = vmax.f32 %v3417, %v3418
        %v3420 = vsel %vm3111, %v2633, -inf
        %v3421 = vrot.slane %v3420, 4
        %v3422 = vmax.f32 %v3420, %v3421
        %v3423 = vrot.slane %v3422, 2
        %v3424 = vmax.f32 %v3422, %v3423
        %v3425 = vrot.slane %v3424, 1
        %v3426 = vmax.f32 %v3424, %v3425
        %v3427 = vsel %vm3111, %v2641, -inf
        %v3428 = vrot.slane %v3427, 4
        %v3429 = vmax.f32 %v3427, %v3428
        %v3430 = vrot.slane %v3429, 2
        %v3431 = vmax.f32 %v3429, %v3430
        %v3432 = vrot.slane %v3431, 1
        %v3433 = vmax.f32 %v3431, %v3432
        %v3434 = vsel %vm3111, %v2640, -inf
        %v3435 = vrot.slane %v3434, 4
        %v3436 = vmax.f32 %v3434, %v3435
        %v3437 = vrot.slane %v3436, 2
        %v3438 = vmax.f32 %v3436, %v3437
        %v3439 = vrot.slane %v3438, 1
        %v3440 = vmax.f32 %v3438, %v3439
        %v3441 = vsel %vm3111, %v2642, -inf
        %v3442 = vrot.slane %v3441, 4
        %v3443 = vmax.f32 %v3441, %v3442
        %v3444 = vrot.slane %v3443, 2
        %v3445 = vmax.f32 %v3443, %v3444
        %v3446 = vrot.slane %v3445, 1
        %v3447 = vmax.f32 %v3445, %v3446
        %v3448 = vsel %vm3111, %v2650, -inf
        %v3449 = vrot.slane %v3448, 4
        %v3450 = vmax.f32 %v3448, %v3449
        %v3451 = vrot.slane %v3450, 2
        %v3452 = vmax.f32 %v3450, %v3451
        %v3453 = vrot.slane %v3452, 1
        %v3454 = vmax.f32 %v3452, %v3453
        %v3455 = vsel %vm3111, %v2658, -inf
        %v3456 = vrot.slane %v3455, 4
        %v3457 = vmax.f32 %v3455, %v3456
        %v3458 = vrot.slane %v3457, 2
        %v3459 = vmax.f32 %v3457, %v3458
        %v3460 = vrot.slane %v3459, 1
        %v3461 = vmax.f32 %v3459, %v3460
        %v3462 = vsel %vm3111, %v2657, -inf
        %v3463 = vrot.slane %v3462, 4
        %v3464 = vmax.f32 %v3462, %v3463
        %v3465 = vrot.slane %v3464, 2
        %v3466 = vmax.f32 %v3464, %v3465
        %v3467 = vrot.slane %v3466, 1
        %v3468 = vmax.f32 %v3466, %v3467
        %v3469 = vsel %vm3111, %v2659, -inf
        %v3470 = vrot.slane %v3469, 4
        %v3471 = vmax.f32 %v3469, %v3470
        %v3472 = vrot.slane %v3471, 2
        %v3473 = vmax.f32 %v3471, %v3472
        %v3474 = vrot.slane %v3473, 1
        %v3475 = vmax.f32 %v3473, %v3474
        %v3476 = vsel %vm3111, %v2667, -inf
        %v3477 = vrot.slane %v3476, 4
        %v3478 = vmax.f32 %v3476, %v3477
        %v3479 = vrot.slane %v3478, 2
        %v3480 = vmax.f32 %v3478, %v3479
        %v3481 = vrot.slane %v3480, 1
        %v3482 = vmax.f32 %v3480, %v3481
        %v3483 = vsel %vm3111, %v2675, -inf
        %v3484 = vrot.slane %v3483, 4
        %v3485 = vmax.f32 %v3483, %v3484
        %v3486 = vrot.slane %v3485, 2
        %v3487 = vmax.f32 %v3485, %v3486
        %v3488 = vrot.slane %v3487, 1
        %v3489 = vmax.f32 %v3487, %v3488
        %v3490 = vsel %vm3111, %v2674, -inf
        %v3491 = vrot.slane %v3490, 4
        %v3492 = vmax.f32 %v3490, %v3491
        %v3493 = vrot.slane %v3492, 2
        %v3494 = vmax.f32 %v3492, %v3493
        %v3495 = vrot.slane %v3494, 1
        %v3496 = vmax.f32 %v3494, %v3495
        %v3497 = vsel %vm3111, %v2676, -inf
        %v3498 = vrot.slane %v3497, 4
        %v3499 = vmax.f32 %v3497, %v3498
        %v3500 = vrot.slane %v3499, 2
        %v3501 = vmax.f32 %v3499, %v3500
        %v3502 = vrot.slane %v3501, 1
        %v3503 = vmax.f32 %v3501, %v3502
        %v3504 = vsel %vm3111, %v2684, -inf
        %v3505 = vrot.slane %v3504, 4
        %v3506 = vmax.f32 %v3504, %v3505
        %v3507 = vrot.slane %v3506, 2
        %v3508 = vmax.f32 %v3506, %v3507
        %v3509 = vrot.slane %v3508, 1
        %v3510 = vmax.f32 %v3508, %v3509
        %v3511 = vsel %vm3111, %v2692, -inf
        %v3512 = vrot.slane %v3511, 4
        %v3513 = vmax.f32 %v3511, %v3512
        %v3514 = vrot.slane %v3513, 2
        %v3515 = vmax.f32 %v3513, %v3514
        %v3516 = vrot.slane %v3515, 1
        %v3517 = vmax.f32 %v3515, %v3516
        %v3518 = vsel %vm3111, %v2691, -inf
        %v3519 = vrot.slane %v3518, 4
        %v3520 = vmax.f32 %v3518, %v3519
        %v3521 = vrot.slane %v3520, 2
        %v3522 = vmax.f32 %v3520, %v3521
        %v3523 = vrot.slane %v3522, 1
        %v3524 = vmax.f32 %v3522, %v3523
        %v3525 = vsel %vm3111, %v2693, -inf
        %v3526 = vrot.slane %v3525, 4
        %v3527 = vmax.f32 %v3525, %v3526
        %v3528 = vrot.slane %v3527, 2
        %v3529 = vmax.f32 %v3527, %v3528
        %v3530 = vrot.slane %v3529, 1
        %v3531 = vmax.f32 %v3529, %v3530
        %v3532 = vsel %vm3111, %v2701, -inf
        %v3533 = vrot.slane %v3532, 4
        %v3534 = vmax.f32 %v3532, %v3533
        %v3535 = vrot.slane %v3534, 2
        %v3536 = vmax.f32 %v3534, %v3535
        %v3537 = vrot.slane %v3536, 1
        %v3538 = vmax.f32 %v3536, %v3537
        %v3539 = vsel %vm3111, %v2709, -inf
        %v3540 = vrot.slane %v3539, 4
        %v3541 = vmax.f32 %v3539, %v3540
        %v3542 = vrot.slane %v3541, 2
        %v3543 = vmax.f32 %v3541, %v3542
        %v3544 = vrot.slane %v3543, 1
        %v3545 = vmax.f32 %v3543, %v3544
        %v3546 = vsel %vm3111, %v2708, -inf
        %v3547 = vrot.slane %v3546, 4
        %v3548 = vmax.f32 %v3546, %v3547
        %v3549 = vrot.slane %v3548, 2
        %v3550 = vmax.f32 %v3548, %v3549
        %v3551 = vrot.slane %v3550, 1
        %v3552 = vmax.f32 %v3550, %v3551
        %v3553 = vsel %vm3111, %v2710, -inf
        %v3554 = vrot.slane %v3553, 4
        %v3555 = vmax.f32 %v3553, %v3554
        %v3556 = vrot.slane %v3555, 2
        %v3557 = vmax.f32 %v3555, %v3556
        %v3558 = vrot.slane %v3557, 1
        %v3559 = vmax.f32 %v3557, %v3558
        %v3560 = vsel %vm3111, %v2718, -inf
        %v3561 = vrot.slane %v3560, 4
        %v3562 = vmax.f32 %v3560, %v3561
        %v3563 = vrot.slane %v3562, 2
        %v3564 = vmax.f32 %v3562, %v3563
        %v3565 = vrot.slane %v3564, 1
        %v3566 = vmax.f32 %v3564, %v3565
        %v3567 = vsel %vm3111, %v2726, -inf
        %v3568 = vrot.slane %v3567, 4
        %v3569 = vmax.f32 %v3567, %v3568
        %v3570 = vrot.slane %v3569, 2
        %v3571 = vmax.f32 %v3569, %v3570
        %v3572 = vrot.slane %v3571, 1
        %v3573 = vmax.f32 %v3571, %v3572
        %v3574 = vsel %vm3111, %v2725, -inf
        %v3575 = vrot.slane %v3574, 4
        %v3576 = vmax.f32 %v3574, %v3575
        %v3577 = vrot.slane %v3576, 2
        %v3578 = vmax.f32 %v3576, %v3577
        %v3579 = vrot.slane %v3578, 1
        %v3580 = vmax.f32 %v3578, %v3579
        %v3581 = vsel %vm3111, %v2727, -inf
        %v3582 = vrot.slane %v3581, 4
        %v3583 = vmax.f32 %v3581, %v3582
        %v3584 = vrot.slane %v3583, 2
        %v3585 = vmax.f32 %v3583, %v3584
        %v3586 = vrot.slane %v3585, 1
        %v3587 = vmax.f32 %v3585, %v3586
        %v3588 = vsel %vm3111, %v2735, -inf
        %v3589 = vrot.slane %v3588, 4
        %v3590 = vmax.f32 %v3588, %v3589
        %v3591 = vrot.slane %v3590, 2
        %v3592 = vmax.f32 %v3590, %v3591
        %v3593 = vrot.slane %v3592, 1
        %v3594 = vmax.f32 %v3592, %v3593
        %v3595 = vsel %vm3111, %v2743, -inf
        %v3596 = vrot.slane %v3595, 4
        %v3597 = vmax.f32 %v3595, %v3596
        %v3598 = vrot.slane %v3597, 2
        %v3599 = vmax.f32 %v3597, %v3598
        %v3600 = vrot.slane %v3599, 1
        %v3601 = vmax.f32 %v3599, %v3600
        %v3602 = vsel %vm3111, %v2742, -inf
        %v3603 = vrot.slane %v3602, 4
        %v3604 = vmax.f32 %v3602, %v3603
        %v3605 = vrot.slane %v3604, 2
        %v3606 = vmax.f32 %v3604, %v3605
        %v3607 = vrot.slane %v3606, 1
        %v3608 = vmax.f32 %v3606, %v3607
        %v3609 = vsel %vm3111, %v2744, -inf
        %v3610 = vrot.slane %v3609, 4
        %v3611 = vmax.f32 %v3609, %v3610
        %v3612 = vrot.slane %v3611, 2
        %v3613 = vmax.f32 %v3611, %v3612
        %v3614 = vrot.slane %v3613, 1
        %v3615 = vmax.f32 %v3613, %v3614
        %v3616 = vsel %vm3111, %v2752, -inf
        %v3617 = vrot.slane %v3616, 4
        %v3618 = vmax.f32 %v3616, %v3617
        %v3619 = vrot.slane %v3618, 2
        %v3620 = vmax.f32 %v3618, %v3619
        %v3621 = vrot.slane %v3620, 1
        %v3622 = vmax.f32 %v3620, %v3621
        %v3623 = vsel %vm3111, %v2760, -inf
        %v3624 = vrot.slane %v3623, 4
        %v3625 = vmax.f32 %v3623, %v3624
        %v3626 = vrot.slane %v3625, 2
        %v3627 = vmax.f32 %v3625, %v3626
        %v3628 = vrot.slane %v3627, 1
        %v3629 = vmax.f32 %v3627, %v3628
        %v3630 = vsel %vm3111, %v2759, -inf
        %v3631 = vrot.slane %v3630, 4
        %v3632 = vmax.f32 %v3630, %v3631
        %v3633 = vrot.slane %v3632, 2
        %v3634 = vmax.f32 %v3632, %v3633
        %v3635 = vrot.slane %v3634, 1
        %v3636 = vmax.f32 %v3634, %v3635
        %v3637 = vsel %vm3111, %v2761, -inf
        %v3638 = vrot.slane %v3637, 4
        %v3639 = vmax.f32 %v3637, %v3638
        %v3640 = vrot.slane %v3639, 2
        %v3641 = vmax.f32 %v3639, %v3640
        %v3642 = vrot.slane %v3641, 1
        %v3643 = vmax.f32 %v3641, %v3642
        %v3644 = vsel %vm3111, %v2769, -inf
        %v3645 = vrot.slane %v3644, 4
        %v3646 = vmax.f32 %v3644, %v3645
        %v3647 = vrot.slane %v3646, 2
        %v3648 = vmax.f32 %v3646, %v3647
        %v3649 = vrot.slane %v3648, 1
        %v3650 = vmax.f32 %v3648, %v3649
        %v3651 = vsel %vm3111, %v2777, -inf
        %v3652 = vrot.slane %v3651, 4
        %v3653 = vmax.f32 %v3651, %v3652
        %v3654 = vrot.slane %v3653, 2
        %v3655 = vmax.f32 %v3653, %v3654
        %v3656 = vrot.slane %v3655, 1
        %v3657 = vmax.f32 %v3655, %v3656
        %v3658 = vsel %vm3111, %v2776, -inf
        %v3659 = vrot.slane %v3658, 4
        %v3660 = vmax.f32 %v3658, %v3659
        %v3661 = vrot.slane %v3660, 2
        %v3662 = vmax.f32 %v3660, %v3661
        %v3663 = vrot.slane %v3662, 1
        %v3664 = vmax.f32 %v3662, %v3663
        %v3665 = vsel %vm3111, %v2778, -inf
        %v3666 = vrot.slane %v3665, 4
        %v3667 = vmax.f32 %v3665, %v3666
        %v3668 = vrot.slane %v3667, 2
        %v3669 = vmax.f32 %v3667, %v3668
        %v3670 = vrot.slane %v3669, 1
        %v3671 = vmax.f32 %v3669, %v3670
        %v3672 = vsel %vm3111, %v2786, -inf
        %v3673 = vrot.slane %v3672, 4
        %v3674 = vmax.f32 %v3672, %v3673
        %v3675 = vrot.slane %v3674, 2
        %v3676 = vmax.f32 %v3674, %v3675
        %v3677 = vrot.slane %v3676, 1
        %v3678 = vmax.f32 %v3676, %v3677
        %v3679 = vsel %vm3111, %v2794, -inf
        %v3680 = vrot.slane %v3679, 4
        %v3681 = vmax.f32 %v3679, %v3680
        %v3682 = vrot.slane %v3681, 2
        %v3683 = vmax.f32 %v3681, %v3682
        %v3684 = vrot.slane %v3683, 1
        %v3685 = vmax.f32 %v3683, %v3684
        %v3686 = vsel %vm3111, %v2793, -inf
        %v3687 = vrot.slane %v3686, 4
        %v3688 = vmax.f32 %v3686, %v3687
        %v3689 = vrot.slane %v3688, 2
        %v3690 = vmax.f32 %v3688, %v3689
        %v3691 = vrot.slane %v3690, 1
        %v3692 = vmax.f32 %v3690, %v3691
        %v3693 = vsel %vm3111, %v2795, -inf
        %v3694 = vrot.slane %v3693, 4
        %v3695 = vmax.f32 %v3693, %v3694
        %v3696 = vrot.slane %v3695, 2
        %v3697 = vmax.f32 %v3695, %v3696
        %v3698 = vrot.slane %v3697, 1
        %v3699 = vmax.f32 %v3697, %v3698
        %v3700 = vsel %vm3111, %v2803, -inf
        %v3701 = vrot.slane %v3700, 4
        %v3702 = vmax.f32 %v3700, %v3701
        %v3703 = vrot.slane %v3702, 2
        %v3704 = vmax.f32 %v3702, %v3703
        %v3705 = vrot.slane %v3704, 1
        %v3706 = vmax.f32 %v3704, %v3705
        %v3707 = vsel %vm3111, %v2811, -inf
        %v3708 = vrot.slane %v3707, 4
        %v3709 = vmax.f32 %v3707, %v3708
        %v3710 = vrot.slane %v3709, 2
        %v3711 = vmax.f32 %v3709, %v3710
        %v3712 = vrot.slane %v3711, 1
        %v3713 = vmax.f32 %v3711, %v3712
        %v3714 = vsel %vm3111, %v2810, -inf
        %v3715 = vrot.slane %v3714, 4
        %v3716 = vmax.f32 %v3714, %v3715
        %v3717 = vrot.slane %v3716, 2
        %v3718 = vmax.f32 %v3716, %v3717
        %v3719 = vrot.slane %v3718, 1
        %v3720 = vmax.f32 %v3718, %v3719
        %v3721 = vsel %vm3111, %v2812, -inf
        %v3722 = vrot.slane %v3721, 4
        %v3723 = vmax.f32 %v3721, %v3722
        %v3724 = vrot.slane %v3723, 2
        %v3725 = vmax.f32 %v3723, %v3724
        %v3726 = vrot.slane %v3725, 1
        %v3727 = vmax.f32 %v3725, %v3726
        %v3728 = vsel %vm3111, %v2820, -inf
        %v3729 = vrot.slane %v3728, 4
        %v3730 = vmax.f32 %v3728, %v3729
        %v3731 = vrot.slane %v3730, 2
        %v3732 = vmax.f32 %v3730, %v3731
        %v3733 = vrot.slane %v3732, 1
        %v3734 = vmax.f32 %v3732, %v3733
        %v3735 = vsel %vm3111, %v2828, -inf
        %v3736 = vrot.slane %v3735, 4
        %v3737 = vmax.f32 %v3735, %v3736
        %v3738 = vrot.slane %v3737, 2
        %v3739 = vmax.f32 %v3737, %v3738
        %v3740 = vrot.slane %v3739, 1
        %v3741 = vmax.f32 %v3739, %v3740
        %v3742 = vsel %vm3111, %v2827, -inf
        %v3743 = vrot.slane %v3742, 4
        %v3744 = vmax.f32 %v3742, %v3743
        %v3745 = vrot.slane %v3744, 2
        %v3746 = vmax.f32 %v3744, %v3745
        %v3747 = vrot.slane %v3746, 1
        %v3748 = vmax.f32 %v3746, %v3747
        %v3749 = vsel %vm3111, %v2829, -inf
        %v3750 = vrot.slane %v3749, 4
        %v3751 = vmax.f32 %v3749, %v3750
        %v3752 = vrot.slane %v3751, 2
        %v3753 = vmax.f32 %v3751, %v3752
        %v3754 = vrot.slane %v3753, 1
        %v3755 = vmax.f32 %v3753, %v3754
        %v3756 = vsel %vm3111, %v2837, -inf
        %v3757 = vrot.slane %v3756, 4
        %v3758 = vmax.f32 %v3756, %v3757
        %v3759 = vrot.slane %v3758, 2
        %v3760 = vmax.f32 %v3758, %v3759
        %v3761 = vrot.slane %v3760, 1
        %v3762 = vmax.f32 %v3760, %v3761
        %v3763 = vsel %vm3111, %v2845, -inf
        %v3764 = vrot.slane %v3763, 4
        %v3765 = vmax.f32 %v3763, %v3764
        %v3766 = vrot.slane %v3765, 2
        %v3767 = vmax.f32 %v3765, %v3766
        %v3768 = vrot.slane %v3767, 1
        %v3769 = vmax.f32 %v3767, %v3768
        %v3770 = vsel %vm3111, %v2844, -inf
        %v3771 = vrot.slane %v3770, 4
        %v3772 = vmax.f32 %v3770, %v3771
        %v3773 = vrot.slane %v3772, 2
        %v3774 = vmax.f32 %v3772, %v3773
        %v3775 = vrot.slane %v3774, 1
        %v3776 = vmax.f32 %v3774, %v3775
        %v3777 = vsel %vm3111, %v2846, -inf
        %v3778 = vrot.slane %v3777, 4
        %v3779 = vmax.f32 %v3777, %v3778
        %v3780 = vrot.slane %v3779, 2
        %v3781 = vmax.f32 %v3779, %v3780
        %v3782 = vrot.slane %v3781, 1
        %v3783 = vmax.f32 %v3781, %v3782
        %v3784 = vsel %vm3111, %v2854, -inf
        %v3785 = vrot.slane %v3784, 4
        %v3786 = vmax.f32 %v3784, %v3785
        %v3787 = vrot.slane %v3786, 2
        %v3788 = vmax.f32 %v3786, %v3787
        %v3789 = vrot.slane %v3788, 1
        %v3790 = vmax.f32 %v3788, %v3789
        %v3791 = vsel %vm3111, %v2862, -inf
        %v3792 = vrot.slane %v3791, 4
        %v3793 = vmax.f32 %v3791, %v3792
        %v3794 = vrot.slane %v3793, 2
        %v3795 = vmax.f32 %v3793, %v3794
        %v3796 = vrot.slane %v3795, 1
        %v3797 = vmax.f32 %v3795, %v3796
        %v3798 = vsel %vm3111, %v2861, -inf
        %v3799 = vrot.slane %v3798, 4
        %v3800 = vmax.f32 %v3798, %v3799
        %v3801 = vrot.slane %v3800, 2
        %v3802 = vmax.f32 %v3800, %v3801
        %v3803 = vrot.slane %v3802, 1
        %v3804 = vmax.f32 %v3802, %v3803
        %v3805 = vsel %vm3111, %v2863, -inf
        %v3806 = vrot.slane %v3805, 4
        %v3807 = vmax.f32 %v3805, %v3806
        %v3808 = vrot.slane %v3807, 2
        %v3809 = vmax.f32 %v3807, %v3808
        %v3810 = vrot.slane %v3809, 1
        %v3811 = vmax.f32 %v3809, %v3810
        %v3812 = vsel %vm3111, %v2871, -inf
        %v3813 = vrot.slane %v3812, 4
        %v3814 = vmax.f32 %v3812, %v3813
        %v3815 = vrot.slane %v3814, 2
        %v3816 = vmax.f32 %v3814, %v3815
        %v3817 = vrot.slane %v3816, 1
        %v3818 = vmax.f32 %v3816, %v3817
        %v3819 = vsel %vm3111, %v2879, -inf
        %v3820 = vrot.slane %v3819, 4
        %v3821 = vmax.f32 %v3819, %v3820
        %v3822 = vrot.slane %v3821, 2
        %v3823 = vmax.f32 %v3821, %v3822
        %v3824 = vrot.slane %v3823, 1
        %v3825 = vmax.f32 %v3823, %v3824
        %v3826 = vsel %vm3111, %v2878, -inf
        %v3827 = vrot.slane %v3826, 4
        %v3828 = vmax.f32 %v3826, %v3827
        %v3829 = vrot.slane %v3828, 2
        %v3830 = vmax.f32 %v3828, %v3829
        %v3831 = vrot.slane %v3830, 1
        %v3832 = vmax.f32 %v3830, %v3831
        %v3833 = vsel %vm3111, %v2880, -inf
        %v3834 = vrot.slane %v3833, 4
        %v3835 = vmax.f32 %v3833, %v3834
        %v3836 = vrot.slane %v3835, 2
        %v3837 = vmax.f32 %v3835, %v3836
        %v3838 = vrot.slane %v3837, 1
        %v3839 = vmax.f32 %v3837, %v3838
        %v3840 = vsel %vm3111, %v2888, -inf
        %v3841 = vrot.slane %v3840, 4
        %v3842 = vmax.f32 %v3840, %v3841
        %v3843 = vrot.slane %v3842, 2
        %v3844 = vmax.f32 %v3842, %v3843
        %v3845 = vrot.slane %v3844, 1
        %v3846 = vmax.f32 %v3844, %v3845
        %v3847 = vsel %vm3111, %v2896, -inf
        %v3848 = vrot.slane %v3847, 4
        %v3849 = vmax.f32 %v3847, %v3848
        %v3850 = vrot.slane %v3849, 2
        %v3851 = vmax.f32 %v3849, %v3850
        %v3852 = vrot.slane %v3851, 1
        %v3853 = vmax.f32 %v3851, %v3852
        %v3854 = vsel %vm3111, %v2895, -inf
        %v3855 = vrot.slane %v3854, 4
        %v3856 = vmax.f32 %v3854, %v3855
        %v3857 = vrot.slane %v3856, 2
        %v3858 = vmax.f32 %v3856, %v3857
        %v3859 = vrot.slane %v3858, 1
        %v3860 = vmax.f32 %v3858, %v3859
        %v3861 = vsel %vm3111, %v2897, -inf
        %v3862 = vrot.slane %v3861, 4
        %v3863 = vmax.f32 %v3861, %v3862
        %v3864 = vrot.slane %v3863, 2
        %v3865 = vmax.f32 %v3863, %v3864
        %v3866 = vrot.slane %v3865, 1
        %v3867 = vmax.f32 %v3865, %v3866
        %v3868 = vsel %vm3111, %v2905, -inf
        %v3869 = vrot.slane %v3868, 4
        %v3870 = vmax.f32 %v3868, %v3869
        %v3871 = vrot.slane %v3870, 2
        %v3872 = vmax.f32 %v3870, %v3871
        %v3873 = vrot.slane %v3872, 1
        %v3874 = vmax.f32 %v3872, %v3873
        %v3875 = vsel %vm3111, %v2913, -inf
        %v3876 = vrot.slane %v3875, 4
        %v3877 = vmax.f32 %v3875, %v3876
        %v3878 = vrot.slane %v3877, 2
        %v3879 = vmax.f32 %v3877, %v3878
        %v3880 = vrot.slane %v3879, 1
        %v3881 = vmax.f32 %v3879, %v3880
        %v3882 = vsel %vm3111, %v2912, -inf
        %v3883 = vrot.slane %v3882, 4
        %v3884 = vmax.f32 %v3882, %v3883
        %v3885 = vrot.slane %v3884, 2
        %v3886 = vmax.f32 %v3884, %v3885
        %v3887 = vrot.slane %v3886, 1
        %v3888 = vmax.f32 %v3886, %v3887
        %v3889 = vsel %vm3111, %v2914, -inf
        %v3890 = vrot.slane %v3889, 4
        %v3891 = vmax.f32 %v3889, %v3890
        %v3892 = vrot.slane %v3891, 2
        %v3893 = vmax.f32 %v3891, %v3892
        %v3894 = vrot.slane %v3893, 1
        %v3895 = vmax.f32 %v3893, %v3894
        %v3896 = vsel %vm3111, %v2922, -inf
        %v3897 = vrot.slane %v3896, 4
        %v3898 = vmax.f32 %v3896, %v3897
        %v3899 = vrot.slane %v3898, 2
        %v3900 = vmax.f32 %v3898, %v3899
        %v3901 = vrot.slane %v3900, 1
        %v3902 = vmax.f32 %v3900, %v3901
        %v3903 = vsel %vm3111, %v2930, -inf
        %v3904 = vrot.slane %v3903, 4
        %v3905 = vmax.f32 %v3903, %v3904
        %v3906 = vrot.slane %v3905, 2
        %v3907 = vmax.f32 %v3905, %v3906
        %v3908 = vrot.slane %v3907, 1
        %v3909 = vmax.f32 %v3907, %v3908
        %v3910 = vsel %vm3111, %v2929, -inf
        %v3911 = vrot.slane %v3910, 4
        %v3912 = vmax.f32 %v3910, %v3911
        %v3913 = vrot.slane %v3912, 2
        %v3914 = vmax.f32 %v3912, %v3913
        %v3915 = vrot.slane %v3914, 1
        %v3916 = vmax.f32 %v3914, %v3915
        %v3917 = vsel %vm3111, %v2931, -inf
        %v3918 = vrot.slane %v3917, 4
        %v3919 = vmax.f32 %v3917, %v3918
        %v3920 = vrot.slane %v3919, 2
        %v3921 = vmax.f32 %v3919, %v3920
        %v3922 = vrot.slane %v3921, 1
        %v3923 = vmax.f32 %v3921, %v3922
        %v3924 = vsel %vm3111, %v2939, -inf
        %v3925 = vrot.slane %v3924, 4
        %v3926 = vmax.f32 %v3924, %v3925
        %v3927 = vrot.slane %v3926, 2
        %v3928 = vmax.f32 %v3926, %v3927
        %v3929 = vrot.slane %v3928, 1
        %v3930 = vmax.f32 %v3928, %v3929
        %v3931 = vsel %vm3111, %v2947, -inf
        %v3932 = vrot.slane %v3931, 4
        %v3933 = vmax.f32 %v3931, %v3932
        %v3934 = vrot.slane %v3933, 2
        %v3935 = vmax.f32 %v3933, %v3934
        %v3936 = vrot.slane %v3935, 1
        %v3937 = vmax.f32 %v3935, %v3936
        %v3938 = vsel %vm3111, %v2946, -inf
        %v3939 = vrot.slane %v3938, 4
        %v3940 = vmax.f32 %v3938, %v3939
        %v3941 = vrot.slane %v3940, 2
        %v3942 = vmax.f32 %v3940, %v3941
        %v3943 = vrot.slane %v3942, 1
        %v3944 = vmax.f32 %v3942, %v3943
        %v3945 = vsel %vm3111, %v2948, -inf
        %v3946 = vrot.slane %v3945, 4
        %v3947 = vmax.f32 %v3945, %v3946
        %v3948 = vrot.slane %v3947, 2
        %v3949 = vmax.f32 %v3947, %v3948
        %v3950 = vrot.slane %v3949, 1
        %v3951 = vmax.f32 %v3949, %v3950
        %v3952 = vsel %vm3111, %v2956, -inf
        %v3953 = vrot.slane %v3952, 4
        %v3954 = vmax.f32 %v3952, %v3953
        %v3955 = vrot.slane %v3954, 2
        %v3956 = vmax.f32 %v3954, %v3955
        %v3957 = vrot.slane %v3956, 1
        %v3958 = vmax.f32 %v3956, %v3957
        %v3959 = vsel %vm3111, %v2964, -inf
        %v3960 = vrot.slane %v3959, 4
        %v3961 = vmax.f32 %v3959, %v3960
        %v3962 = vrot.slane %v3961, 2
        %v3963 = vmax.f32 %v3961, %v3962
        %v3964 = vrot.slane %v3963, 1
        %v3965 = vmax.f32 %v3963, %v3964
        %v3966 = vsel %vm3111, %v2963, -inf
        %v3967 = vrot.slane %v3966, 4
        %v3968 = vmax.f32 %v3966, %v3967
        %v3969 = vrot.slane %v3968, 2
        %v3970 = vmax.f32 %v3968, %v3969
        %v3971 = vrot.slane %v3970, 1
        %v3972 = vmax.f32 %v3970, %v3971
        %v3973 = vsel %vm3111, %v2965, -inf
        %v3974 = vrot.slane %v3973, 4
        %v3975 = vmax.f32 %v3973, %v3974
        %v3976 = vrot.slane %v3975, 2
        %v3977 = vmax.f32 %v3975, %v3976
        %v3978 = vrot.slane %v3977, 1
        %v3979 = vmax.f32 %v3977, %v3978
        %v3980 = vsel %vm3111, %v2973, -inf
        %v3981 = vrot.slane %v3980, 4
        %v3982 = vmax.f32 %v3980, %v3981
        %v3983 = vrot.slane %v3982, 2
        %v3984 = vmax.f32 %v3982, %v3983
        %v3985 = vrot.slane %v3984, 1
        %v3986 = vmax.f32 %v3984, %v3985
        %v3987 = vsel %vm3111, %v2981, -inf
        %v3988 = vrot.slane %v3987, 4
        %v3989 = vmax.f32 %v3987, %v3988
        %v3990 = vrot.slane %v3989, 2
        %v3991 = vmax.f32 %v3989, %v3990
        %v3992 = vrot.slane %v3991, 1
        %v3993 = vmax.f32 %v3991, %v3992
        %v3994 = vsel %vm3111, %v2980, -inf
        %v3995 = vrot.slane %v3994, 4
        %v3996 = vmax.f32 %v3994, %v3995
        %v3997 = vrot.slane %v3996, 2
        %v3998 = vmax.f32 %v3996, %v3997
        %v3999 = vrot.slane %v3998, 1
        %v4000 = vmax.f32 %v3998, %v3999
        %v4001 = vsel %vm3111, %v2982, -inf
        %v4002 = vrot.slane %v4001, 4
        %v4003 = vmax.f32 %v4001, %v4002
        %v4004 = vrot.slane %v4003, 2
        %v4005 = vmax.f32 %v4003, %v4004
        %v4006 = vrot.slane %v4005, 1
        %v4007 = vmax.f32 %v4005, %v4006
        %v4008 = vmax.f32 %v3118, %v3174
        %v4009 = vmax.f32 %v3125, %v3181
        %v4010 = vmax.f32 %v3132, %v3188
        %v4011 = vmax.f32 %v3139, %v3195
        %v4012 = vmax.f32 %v3146, %v3202
        %v4013 = vmax.f32 %v3153, %v3209
        %v4014 = vmax.f32 %v3160, %v3216
        %v4015 = vmax.f32 %v3167, %v3223
        %v4016 = vmax.f32 %v3230, %v3286
        %v4017 = vmax.f32 %v3237, %v3293
        %v4018 = vmax.f32 %v3244, %v3300
        %v4019 = vmax.f32 %v3251, %v3307
        %v4020 = vmax.f32 %v3258, %v3314
        %v4021 = vmax.f32 %v3265, %v3321
        %v4022 = vmax.f32 %v3272, %v3328
        %v4023 = vmax.f32 %v3279, %v3335
        %v4024 = vmax.f32 %v3342, %v3398
        %v4025 = vmax.f32 %v3349, %v3405
        %v4026 = vmax.f32 %v3356, %v3412
        %v4027 = vmax.f32 %v3363, %v3419
        %v4028 = vmax.f32 %v3370, %v3426
        %v4029 = vmax.f32 %v3377, %v3433
        %v4030 = vmax.f32 %v3384, %v3440
        %v4031 = vmax.f32 %v3391, %v3447
        %v4032 = vmax.f32 %v3454, %v3510
        %v4033 = vmax.f32 %v3461, %v3517
        %v4034 = vmax.f32 %v3468, %v3524
        %v4035 = vmax.f32 %v3475, %v3531
        %v4036 = vmax.f32 %v3482, %v3538
        %v4037 = vmax.f32 %v3489, %v3545
        %v4038 = vmax.f32 %v3496, %v3552
        %v4039 = vmax.f32 %v3503, %v3559
        %v4040 = vmax.f32 %v3566, %v3622
        %v4041 = vmax.f32 %v3573, %v3629
        %v4042 = vmax.f32 %v3580, %v3636
        %v4043 = vmax.f32 %v3587, %v3643
        %v4044 = vmax.f32 %v3594, %v3650
        %v4045 = vmax.f32 %v3601, %v3657
        %v4046 = vmax.f32 %v3608, %v3664
        %v4047 = vmax.f32 %v3615, %v3671
        %v4048 = vmax.f32 %v3678, %v3734
        %v4049 = vmax.f32 %v3685, %v3741
        %v4050 = vmax.f32 %v3692, %v3748
        %v4051 = vmax.f32 %v3699, %v3755
        %v4052 = vmax.f32 %v3706, %v3762
        %v4053 = vmax.f32 %v3713, %v3769
        %v4054 = vmax.f32 %v3720, %v3776
        %v4055 = vmax.f32 %v3727, %v3783
        %v4056 = vmax.f32 %v3790, %v3846
        %v4057 = vmax.f32 %v3797, %v3853
        %v4058 = vmax.f32 %v3804, %v3860
        %v4059 = vmax.f32 %v3811, %v3867
        %v4060 = vmax.f32 %v3818, %v3874
        %v4061 = vmax.f32 %v3825, %v3881
        %v4062 = vmax.f32 %v3832, %v3888
        %v4063 = vmax.f32 %v3839, %v3895
        %v4064 = vmax.f32 %v3902, %v3958
        %v4065 = vmax.f32 %v3909, %v3965
        %v4066 = vmax.f32 %v3916, %v3972
        %v4067 = vmax.f32 %v3923, %v3979
        %v4068 = vmax.f32 %v3930, %v3986
        %v4069 = vmax.f32 %v3937, %v3993
        %v4070 = vmax.f32 %v3944, %v4000
        %v4071 = vmax.f32 %v3951, %v4007
        %vm4072 = vcmask 64512
        %4073 = vst.msk [vmem:[#allocation3] sm:$0xff] %vm4072, 0.0
        %4074 = vst.msk [vmem:[#allocation3 + $0x8] sm:$0x3] %vm3111, 0.0
        %4075 = vst.msk [vmem:[#allocation3 + $0x10] sm:$0xff] %vm4072, 0.0
        %4076 = vst.msk [vmem:[#allocation3 + $0x18] sm:$0x3] %vm3111, 0.0
        %4077 = vst.msk [vmem:[#allocation3 + $0x20] sm:$0xff] %vm4072, 0.0
        %4078 = vst.msk [vmem:[#allocation3 + $0x28] sm:$0x3] %vm3111, 0.0
        %4079 = vst.msk [vmem:[#allocation3 + $0x30] sm:$0xff] %vm4072, 0.0
        %4080 = vst.msk [vmem:[#allocation3 + $0x38] sm:$0x3] %vm3111, 0.0
        %4081 = vst.msk [vmem:[#allocation3 + $0x40] sm:$0xff] %vm4072, 0.0
        %4082 = vst.msk [vmem:[#allocation3 + $0x48] sm:$0x3] %vm3111, 0.0
        %4083 = vst.msk [vmem:[#allocation3 + $0x50] sm:$0xff] %vm4072, 0.0
        %4084 = vst.msk [vmem:[#allocation3 + $0x58] sm:$0x3] %vm3111, 0.0
        %4085 = vst.msk [vmem:[#allocation3 + $0x60] sm:$0xff] %vm4072, 0.0
        %4086 = vst.msk [vmem:[#allocation3 + $0x68] sm:$0x3] %vm3111, 0.0
        %4087 = vst.msk [vmem:[#allocation3 + $0x70] sm:$0xff] %vm4072, 0.0
        %4088 = vst.msk [vmem:[#allocation3 + $0x78] sm:$0x3] %vm3111, 0.0
        %4089 = vst.msk [vmem:[#allocation3 + $0x80] sm:$0xff] %vm4072, 0.0
        %4090 = vst.msk [vmem:[#allocation3 + $0x88] sm:$0x3] %vm3111, 0.0
        %4091 = vst.msk [vmem:[#allocation3 + $0x90] sm:$0xff] %vm4072, 0.0
        %4092 = vst.msk [vmem:[#allocation3 + $0x98] sm:$0x3] %vm3111, 0.0
        %vm4157 = vcmask 1041409
        %v4158 = vsel %vm4157, %v4009, %v4008
        %vm4159 = vcmask 1042434
        %v4160 = vsel %vm4159, %v4010, %v4158
        %vm4161 = vcmask 1043459
        %v4162 = vsel %vm4161, %v4011, %v4160
        %vm4163 = vcmask 1044484
        %v4164 = vsel %vm4163, %v4012, %v4162
        %vm4165 = vcmask 1045509
        %v4166 = vsel %vm4165, %v4013, %v4164
        %vm4167 = vcmask 1046534
        %v4168 = vsel %vm4167, %v4014, %v4166
        %vm4169 = vcmask 1047559
        %v4170 = vsel %vm4169, %v4015, %v4168
        %v4171 = vsel %vm4157, %v4017, %v4016
        %v4172 = vsel %vm4159, %v4018, %v4171
        %v4173 = vsel %vm4161, %v4019, %v4172
        %v4174 = vsel %vm4163, %v4020, %v4173
        %v4175 = vsel %vm4165, %v4021, %v4174
        %v4176 = vsel %vm4167, %v4022, %v4175
        %v4177 = vsel %vm4169, %v4023, %v4176
        %v4178 = vsel %vm4157, %v4025, %v4024
        %v4179 = vsel %vm4159, %v4026, %v4178
        %v4180 = vsel %vm4161, %v4027, %v4179
        %v4181 = vsel %vm4163, %v4028, %v4180
        %v4182 = vsel %vm4165, %v4029, %v4181
        %v4183 = vsel %vm4167, %v4030, %v4182
        %v4184 = vsel %vm4169, %v4031, %v4183
        %v4185 = vsel %vm4157, %v4033, %v4032
        %v4186 = vsel %vm4159, %v4034, %v4185
        %v4187 = vsel %vm4161, %v4035, %v4186
        %v4188 = vsel %vm4163, %v4036, %v4187
        %v4189 = vsel %vm4165, %v4037, %v4188
        %v4190 = vsel %vm4167, %v4038, %v4189
        %v4191 = vsel %vm4169, %v4039, %v4190
        %v4192 = vsel %vm4157, %v4041, %v4040
        %v4193 = vsel %vm4159, %v4042, %v4192
        %v4194 = vsel %vm4161, %v4043, %v4193
        %v4195 = vsel %vm4163, %v4044, %v4194
        %v4196 = vsel %vm4165, %v4045, %v4195
        %v4197 = vsel %vm4167, %v4046, %v4196
        %v4198 = vsel %vm4169, %v4047, %v4197
        %v4199 = vsel %vm4157, %v4049, %v4048
        %v4200 = vsel %vm4159, %v4050, %v4199
        %v4201 = vsel %vm4161, %v4051, %v4200
        %v4202 = vsel %vm4163, %v4052, %v4201
        %v4203 = vsel %vm4165, %v4053, %v4202
        %v4204 = vsel %vm4167, %v4054, %v4203
        %v4205 = vsel %vm4169, %v4055, %v4204
        %v4206 = vsel %vm4157, %v4057, %v4056
        %v4207 = vsel %vm4159, %v4058, %v4206
        %v4208 = vsel %vm4161, %v4059, %v4207
        %v4209 = vsel %vm4163, %v4060, %v4208
        %v4210 = vsel %vm4165, %v4061, %v4209
        %v4211 = vsel %vm4167, %v4062, %v4210
        %v4212 = vsel %vm4169, %v4063, %v4211
        %v4213 = vsel %vm4157, %v4065, %v4064
        %v4214 = vsel %vm4159, %v4066, %v4213
        %v4215 = vsel %vm4161, %v4067, %v4214
        %v4216 = vsel %vm4163, %v4068, %v4215
        %v4217 = vsel %vm4165, %v4069, %v4216
        %v4218 = vsel %vm4167, %v4070, %v4217
        %v4219 = vsel %vm4169, %v4071, %v4218
        %s4228 = scalar_lea.vmem [#allocation3], 16
        %4229 = vst.msk [vmem:[%s4228 + $0x1] sm:$0xff] %vm4072, %v4170
        %4230 = vst.msk [vmem:[%s4228 + $0x11] sm:$0xff] %vm4072, %v4177
        %4231 = vst.msk [vmem:[%s4228 + $0x21] sm:$0xff] %vm4072, %v4184
        %4232 = vst.msk [vmem:[%s4228 + $0x31] sm:$0xff] %vm4072, %v4191
        %4233 = vst.msk [vmem:[%s4228 + $0x41] sm:$0xff] %vm4072, %v4198
        %4234 = vst.msk [vmem:[%s4228 + $0x51] sm:$0xff] %vm4072, %v4205
        %4235 = vst.msk [vmem:[%s4228 + $0x61] sm:$0xff] %vm4072, %v4212
        %4236 = vst.msk [vmem:[%s4228 + $0x71] sm:$0xff] %vm4072, %v4219
        %v4237 = vld [vmem:[#allocation3] sm:$0xff]
        %v4238 = vld [vmem:[#allocation3 + $0x10] sm:$0xff]
        %v4239 = vld [vmem:[#allocation3 + $0x20] sm:$0xff]
        %v4240 = vld [vmem:[#allocation3 + $0x30] sm:$0xff]
        %v4241 = vld [vmem:[#allocation3 + $0x40] sm:$0xff]
        %v4242 = vld [vmem:[#allocation3 + $0x50] sm:$0xff]
        %v4243 = vld [vmem:[#allocation3 + $0x60] sm:$0xff]
        %v4244 = vld [vmem:[#allocation3 + $0x70] sm:$0xff]
        %4245 = vst.msk [vmem:[#allocation5] sm:$0xff] %vm4072, %v4237
        %4246 = vst.msk [vmem:[#allocation5 + $0x8] sm:$0xff] %vm4072, %v4238
        %4247 = vst.msk [vmem:[#allocation5 + $0x10] sm:$0xff] %vm4072, %v4239
        %4248 = vst.msk [vmem:[#allocation5 + $0x18] sm:$0xff] %vm4072, %v4240
        %4249 = vst.msk [vmem:[#allocation5 + $0x20] sm:$0xff] %vm4072, %v4241
        %4250 = vst.msk [vmem:[#allocation5 + $0x28] sm:$0xff] %vm4072, %v4242
        %4251 = vst.msk [vmem:[#allocation5 + $0x30] sm:$0xff] %vm4072, %v4243
        %4252 = vst.msk [vmem:[#allocation5 + $0x38] sm:$0xff] %vm4072, %v4244
        %v4253 = vld [vmem:[#allocation3 + $0x1] sm:$0xff]
        %v4254 = vld [vmem:[#allocation3 + $0x11] sm:$0xff]
        %v4255 = vld [vmem:[#allocation3 + $0x21] sm:$0xff]
        %v4256 = vld [vmem:[#allocation3 + $0x31] sm:$0xff]
        %v4257 = vld [vmem:[#allocation3 + $0x41] sm:$0xff]
        %v4258 = vld [vmem:[#allocation3 + $0x51] sm:$0xff]
        %v4259 = vld [vmem:[#allocation3 + $0x61] sm:$0xff]
        %v4260 = vld [vmem:[#allocation3 + $0x71] sm:$0xff]
        %4269 = vrot.lane.b32.xlu0 %v4253, 8
        %v4270 = vpop.permute.xlu0 %4269
        %4271 = vrot.lane.b32.xlu0 %v4254, 8
        %v4272 = vpop.permute.xlu0 %4271
        %4273 = vrot.lane.b32.xlu0 %v4255, 8
        %v4274 = vpop.permute.xlu0 %4273
        %4275 = vrot.lane.b32.xlu0 %v4256, 8
        %v4276 = vpop.permute.xlu0 %4275
        %4277 = vrot.lane.b32.xlu0 %v4257, 8
        %v4278 = vpop.permute.xlu0 %4277
        %4279 = vrot.lane.b32.xlu0 %v4258, 8
        %v4280 = vpop.permute.xlu0 %4279
        %4281 = vrot.lane.b32.xlu0 %v4259, 8
        %v4282 = vpop.permute.xlu0 %4281
        %4283 = vrot.lane.b32.xlu0 %v4260, 8
        %v4284 = vpop.permute.xlu0 %4283
        %vm4293 = vcmask 130112
        %4294 = vst.msk [vmem:[#allocation5] sm:$0xff] %vm4293, %v4270
        %4295 = vst.msk [vmem:[#allocation5 + $0x8] sm:$0xff] %vm4293, %v4272
        %4296 = vst.msk [vmem:[#allocation5 + $0x10] sm:$0xff] %vm4293, %v4274
        %4297 = vst.msk [vmem:[#allocation5 + $0x18] sm:$0xff] %vm4293, %v4276
        %4298 = vst.msk [vmem:[#allocation5 + $0x20] sm:$0xff] %vm4293, %v4278
        %4299 = vst.msk [vmem:[#allocation5 + $0x28] sm:$0xff] %vm4293, %v4280
        %4300 = vst.msk [vmem:[#allocation5 + $0x30] sm:$0xff] %vm4293, %v4282
        %4301 = vst.msk [vmem:[#allocation5 + $0x38] sm:$0xff] %vm4293, %v4284
        %v4302 = vld [vmem:[#allocation3 + $0x2] sm:$0xff]
        %v4303 = vld [vmem:[#allocation3 + $0x12] sm:$0xff]
        %v4304 = vld [vmem:[#allocation3 + $0x22] sm:$0xff]
        %v4305 = vld [vmem:[#allocation3 + $0x32] sm:$0xff]
        %v4306 = vld [vmem:[#allocation3 + $0x42] sm:$0xff]
        %v4307 = vld [vmem:[#allocation3 + $0x52] sm:$0xff]
        %v4308 = vld [vmem:[#allocation3 + $0x62] sm:$0xff]
        %v4309 = vld [vmem:[#allocation3 + $0x72] sm:$0xff]
        %4318 = vrot.lane.b32.xlu0 %v4302, 16
        %v4319 = vpop.permute.xlu0 %4318
        %4320 = vrot.lane.b32.xlu0 %v4303, 16
        %v4321 = vpop.permute.xlu0 %4320
        %4322 = vrot.lane.b32.xlu0 %v4304, 16
        %v4323 = vpop.permute.xlu0 %4322
        %4324 = vrot.lane.b32.xlu0 %v4305, 16
        %v4325 = vpop.permute.xlu0 %4324
        %4326 = vrot.lane.b32.xlu0 %v4306, 16
        %v4327 = vpop.permute.xlu0 %4326
        %4328 = vrot.lane.b32.xlu0 %v4307, 16
        %v4329 = vpop.permute.xlu0 %4328
        %4330 = vrot.lane.b32.xlu0 %v4308, 16
        %v4331 = vpop.permute.xlu0 %4330
        %4332 = vrot.lane.b32.xlu0 %v4309, 16
        %v4333 = vpop.permute.xlu0 %4332
        %vm4342 = vcmask 195712
        %4343 = vst.msk [vmem:[#allocation5] sm:$0xff] %vm4342, %v4319
        %4344 = vst.msk [vmem:[#allocation5 + $0x8] sm:$0xff] %vm4342, %v4321
        %4345 = vst.msk [vmem:[#allocation5 + $0x10] sm:$0xff] %vm4342, %v4323
        %4346 = vst.msk [vmem:[#allocation5 + $0x18] sm:$0xff] %vm4342, %v4325
        %4347 = vst.msk [vmem:[#allocation5 + $0x20] sm:$0xff] %vm4342, %v4327
        %4348 = vst.msk [vmem:[#allocation5 + $0x28] sm:$0xff] %vm4342, %v4329
        %4349 = vst.msk [vmem:[#allocation5 + $0x30] sm:$0xff] %vm4342, %v4331
        %4350 = vst.msk [vmem:[#allocation5 + $0x38] sm:$0xff] %vm4342, %v4333
        %v4351 = vld [vmem:[%s4228] sm:$0xff]
        %v4352 = vld [vmem:[%s4228 + $0x10] sm:$0xff]
        %v4353 = vld [vmem:[%s4228 + $0x20] sm:$0xff]
        %v4354 = vld [vmem:[%s4228 + $0x30] sm:$0xff]
        %v4355 = vld [vmem:[%s4228 + $0x40] sm:$0xff]
        %v4356 = vld [vmem:[%s4228 + $0x50] sm:$0xff]
        %v4357 = vld [vmem:[%s4228 + $0x60] sm:$0xff]
        %v4358 = vld [vmem:[%s4228 + $0x70] sm:$0xff]
        %4367 = vrot.lane.b32.xlu0 %v4351, 24
        %v4368 = vpop.permute.xlu0 %4367
        %4369 = vrot.lane.b32.xlu0 %v4352, 24
        %v4370 = vpop.permute.xlu0 %4369
        %4371 = vrot.lane.b32.xlu0 %v4353, 24
        %v4372 = vpop.permute.xlu0 %4371
        %4373 = vrot.lane.b32.xlu0 %v4354, 24
        %v4374 = vpop.permute.xlu0 %4373
        %4375 = vrot.lane.b32.xlu0 %v4355, 24
        %v4376 = vpop.permute.xlu0 %4375
        %4377 = vrot.lane.b32.xlu0 %v4356, 24
        %v4378 = vpop.permute.xlu0 %4377
        %4379 = vrot.lane.b32.xlu0 %v4357, 24
        %v4380 = vpop.permute.xlu0 %4379
        %4381 = vrot.lane.b32.xlu0 %v4358, 24
        %v4382 = vpop.permute.xlu0 %4381
        %vm4391 = vcmask 261312
        %4392 = vst.msk [vmem:[#allocation5] sm:$0xff] %vm4391, %v4368
        %4393 = vst.msk [vmem:[#allocation5 + $0x8] sm:$0xff] %vm4391, %v4370
        %4394 = vst.msk [vmem:[#allocation5 + $0x10] sm:$0xff] %vm4391, %v4372
        %4395 = vst.msk [vmem:[#allocation5 + $0x18] sm:$0xff] %vm4391, %v4374
        %4396 = vst.msk [vmem:[#allocation5 + $0x20] sm:$0xff] %vm4391, %v4376
        %4397 = vst.msk [vmem:[#allocation5 + $0x28] sm:$0xff] %vm4391, %v4378
        %4398 = vst.msk [vmem:[#allocation5 + $0x30] sm:$0xff] %vm4391, %v4380
        %4399 = vst.msk [vmem:[#allocation5 + $0x38] sm:$0xff] %vm4391, %v4382
        %v4400 = vld [vmem:[%s4228 + $0x1] sm:$0xff]
        %v4401 = vld [vmem:[%s4228 + $0x11] sm:$0xff]
        %v4402 = vld [vmem:[%s4228 + $0x21] sm:$0xff]
        %v4403 = vld [vmem:[%s4228 + $0x31] sm:$0xff]
        %v4404 = vld [vmem:[%s4228 + $0x41] sm:$0xff]
        %v4405 = vld [vmem:[%s4228 + $0x51] sm:$0xff]
        %v4406 = vld [vmem:[%s4228 + $0x61] sm:$0xff]
        %v4407 = vld [vmem:[%s4228 + $0x71] sm:$0xff]
        %4416 = vrot.lane.b32.xlu0 %v4400, 32
        %v4417 = vpop.permute.xlu0 %4416
        %4418 = vrot.lane.b32.xlu0 %v4401, 32
        %v4419 = vpop.permute.xlu0 %4418
        %4420 = vrot.lane.b32.xlu0 %v4402, 32
        %v4421 = vpop.permute.xlu0 %4420
        %4422 = vrot.lane.b32.xlu0 %v4403, 32
        %v4423 = vpop.permute.xlu0 %4422
        %4424 = vrot.lane.b32.xlu0 %v4404, 32
        %v4425 = vpop.permute.xlu0 %4424
        %4426 = vrot.lane.b32.xlu0 %v4405, 32
        %v4427 = vpop.permute.xlu0 %4426
        %4428 = vrot.lane.b32.xlu0 %v4406, 32
        %v4429 = vpop.permute.xlu0 %4428
        %4430 = vrot.lane.b32.xlu0 %v4407, 32
        %v4431 = vpop.permute.xlu0 %4430
        %vm4440 = vcmask 326912
        %4441 = vst.msk [vmem:[#allocation5] sm:$0xff] %vm4440, %v4417
        %4442 = vst.msk [vmem:[#allocation5 + $0x8] sm:$0xff] %vm4440, %v4419
        %4443 = vst.msk [vmem:[#allocation5 + $0x10] sm:$0xff] %vm4440, %v4421
        %4444 = vst.msk [vmem:[#allocation5 + $0x18] sm:$0xff] %vm4440, %v4423
        %4445 = vst.msk [vmem:[#allocation5 + $0x20] sm:$0xff] %vm4440, %v4425
        %4446 = vst.msk [vmem:[#allocation5 + $0x28] sm:$0xff] %vm4440, %v4427
        %4447 = vst.msk [vmem:[#allocation5 + $0x30] sm:$0xff] %vm4440, %v4429
        %4448 = vst.msk [vmem:[#allocation5 + $0x38] sm:$0xff] %vm4440, %v4431
        %v4449 = vld [vmem:[%s4228 + $0x2] sm:$0xff]
        %v4450 = vld [vmem:[%s4228 + $0x12] sm:$0xff]
        %v4451 = vld [vmem:[%s4228 + $0x22] sm:$0xff]
        %v4452 = vld [vmem:[%s4228 + $0x32] sm:$0xff]
        %v4453 = vld [vmem:[%s4228 + $0x42] sm:$0xff]
        %v4454 = vld [vmem:[%s4228 + $0x52] sm:$0xff]
        %v4455 = vld [vmem:[%s4228 + $0x62] sm:$0xff]
        %v4456 = vld [vmem:[%s4228 + $0x72] sm:$0xff]
        %4465 = vrot.lane.b32.xlu0 %v4449, 40
        %v4466 = vpop.permute.xlu0 %4465
        %4467 = vrot.lane.b32.xlu0 %v4450, 40
        %v4468 = vpop.permute.xlu0 %4467
        %4469 = vrot.lane.b32.xlu0 %v4451, 40
        %v4470 = vpop.permute.xlu0 %4469
        %4471 = vrot.lane.b32.xlu0 %v4452, 40
        %v4472 = vpop.permute.xlu0 %4471
        %4473 = vrot.lane.b32.xlu0 %v4453, 40
        %v4474 = vpop.permute.xlu0 %4473
        %4475 = vrot.lane.b32.xlu0 %v4454, 40
        %v4476 = vpop.permute.xlu0 %4475
        %4477 = vrot.lane.b32.xlu0 %v4455, 40
        %v4478 = vpop.permute.xlu0 %4477
        %4479 = vrot.lane.b32.xlu0 %v4456, 40
        %v4480 = vpop.permute.xlu0 %4479
        %vm4489 = vcmask 392512
        %4490 = vst.msk [vmem:[#allocation5] sm:$0xff] %vm4489, %v4466
        %4491 = vst.msk [vmem:[#allocation5 + $0x8] sm:$0xff] %vm4489, %v4468
        %4492 = vst.msk [vmem:[#allocation5 + $0x10] sm:$0xff] %vm4489, %v4470
        %4493 = vst.msk [vmem:[#allocation5 + $0x18] sm:$0xff] %vm4489, %v4472
        %4494 = vst.msk [vmem:[#allocation5 + $0x20] sm:$0xff] %vm4489, %v4474
        %4495 = vst.msk [vmem:[#allocation5 + $0x28] sm:$0xff] %vm4489, %v4476
        %4496 = vst.msk [vmem:[#allocation5 + $0x30] sm:$0xff] %vm4489, %v4478
        %4497 = vst.msk [vmem:[#allocation5 + $0x38] sm:$0xff] %vm4489, %v4480
        %s4498 = scalar_lea.vmem [#allocation3], 32
        %v4499 = vld [vmem:[%s4498] sm:$0xff]
        %v4500 = vld [vmem:[%s4498 + $0x10] sm:$0xff]
        %v4501 = vld [vmem:[%s4498 + $0x20] sm:$0xff]
        %v4502 = vld [vmem:[%s4498 + $0x30] sm:$0xff]
        %v4503 = vld [vmem:[%s4498 + $0x40] sm:$0xff]
        %v4504 = vld [vmem:[%s4498 + $0x50] sm:$0xff]
        %v4505 = vld [vmem:[%s4498 + $0x60] sm:$0xff]
        %v4506 = vld [vmem:[%s4498 + $0x70] sm:$0xff]
        %4515 = vrot.lane.b32.xlu0 %v4499, 48
        %v4516 = vpop.permute.xlu0 %4515
        %4517 = vrot.lane.b32.xlu0 %v4500, 48
        %v4518 = vpop.permute.xlu0 %4517
        %4519 = vrot.lane.b32.xlu0 %v4501, 48
        %v4520 = vpop.permute.xlu0 %4519
        %4521 = vrot.lane.b32.xlu0 %v4502, 48
        %v4522 = vpop.permute.xlu0 %4521
        %4523 = vrot.lane.b32.xlu0 %v4503, 48
        %v4524 = vpop.permute.xlu0 %4523
        %4525 = vrot.lane.b32.xlu0 %v4504, 48
        %v4526 = vpop.permute.xlu0 %4525
        %4527 = vrot.lane.b32.xlu0 %v4505, 48
        %v4528 = vpop.permute.xlu0 %4527
        %4529 = vrot.lane.b32.xlu0 %v4506, 48
        %v4530 = vpop.permute.xlu0 %4529
        %vm4539 = vcmask 458112
        %4540 = vst.msk [vmem:[#allocation5] sm:$0xff] %vm4539, %v4516
        %4541 = vst.msk [vmem:[#allocation5 + $0x8] sm:$0xff] %vm4539, %v4518
        %4542 = vst.msk [vmem:[#allocation5 + $0x10] sm:$0xff] %vm4539, %v4520
        %4543 = vst.msk [vmem:[#allocation5 + $0x18] sm:$0xff] %vm4539, %v4522
        %4544 = vst.msk [vmem:[#allocation5 + $0x20] sm:$0xff] %vm4539, %v4524
        %4545 = vst.msk [vmem:[#allocation5 + $0x28] sm:$0xff] %vm4539, %v4526
        %4546 = vst.msk [vmem:[#allocation5 + $0x30] sm:$0xff] %vm4539, %v4528
        %4547 = vst.msk [vmem:[#allocation5 + $0x38] sm:$0xff] %vm4539, %v4530
        %v4548 = vld [vmem:[%s4498 + $0x1] sm:$0xff]
        %v4549 = vld [vmem:[%s4498 + $0x11] sm:$0xff]
        %v4550 = vld [vmem:[%s4498 + $0x21] sm:$0xff]
        %v4551 = vld [vmem:[%s4498 + $0x31] sm:$0xff]
        %v4552 = vld [vmem:[%s4498 + $0x41] sm:$0xff]
        %v4553 = vld [vmem:[%s4498 + $0x51] sm:$0xff]
        %v4554 = vld [vmem:[%s4498 + $0x61] sm:$0xff]
        %v4555 = vld [vmem:[%s4498 + $0x71] sm:$0xff]
        %4564 = vrot.lane.b32.xlu0 %v4548, 56
        %v4565 = vpop.permute.xlu0 %4564
        %4566 = vrot.lane.b32.xlu0 %v4549, 56
        %v4567 = vpop.permute.xlu0 %4566
        %4568 = vrot.lane.b32.xlu0 %v4550, 56
        %v4569 = vpop.permute.xlu0 %4568
        %4570 = vrot.lane.b32.xlu0 %v4551, 56
        %v4571 = vpop.permute.xlu0 %4570
        %4572 = vrot.lane.b32.xlu0 %v4552, 56
        %v4573 = vpop.permute.xlu0 %4572
        %4574 = vrot.lane.b32.xlu0 %v4553, 56
        %v4575 = vpop.permute.xlu0 %4574
        %4576 = vrot.lane.b32.xlu0 %v4554, 56
        %v4577 = vpop.permute.xlu0 %4576
        %4578 = vrot.lane.b32.xlu0 %v4555, 56
        %v4579 = vpop.permute.xlu0 %4578
        %vm4588 = vcmask 523712
        %4589 = vst.msk [vmem:[#allocation5] sm:$0xff] %vm4588, %v4565
        %4590 = vst.msk [vmem:[#allocation5 + $0x8] sm:$0xff] %vm4588, %v4567
        %4591 = vst.msk [vmem:[#allocation5 + $0x10] sm:$0xff] %vm4588, %v4569
        %4592 = vst.msk [vmem:[#allocation5 + $0x18] sm:$0xff] %vm4588, %v4571
        %4593 = vst.msk [vmem:[#allocation5 + $0x20] sm:$0xff] %vm4588, %v4573
        %4594 = vst.msk [vmem:[#allocation5 + $0x28] sm:$0xff] %vm4588, %v4575
        %4595 = vst.msk [vmem:[#allocation5 + $0x30] sm:$0xff] %vm4588, %v4577
        %4596 = vst.msk [vmem:[#allocation5 + $0x38] sm:$0xff] %vm4588, %v4579
        %v4597 = vld [vmem:[%s4498 + $0x2] sm:$0xff]
        %v4598 = vld [vmem:[%s4498 + $0x12] sm:$0xff]
        %v4599 = vld [vmem:[%s4498 + $0x22] sm:$0xff]
        %v4600 = vld [vmem:[%s4498 + $0x32] sm:$0xff]
        %v4601 = vld [vmem:[%s4498 + $0x42] sm:$0xff]
        %v4602 = vld [vmem:[%s4498 + $0x52] sm:$0xff]
        %v4603 = vld [vmem:[%s4498 + $0x62] sm:$0xff]
        %v4604 = vld [vmem:[%s4498 + $0x72] sm:$0xff]
        %4613 = vrot.lane.b32.xlu0 %v4597, 64
        %v4614 = vpop.permute.xlu0 %4613
        %4615 = vrot.lane.b32.xlu0 %v4598, 64
        %v4616 = vpop.permute.xlu0 %4615
        %4617 = vrot.lane.b32.xlu0 %v4599, 64
        %v4618 = vpop.permute.xlu0 %4617
        %4619 = vrot.lane.b32.xlu0 %v4600, 64
        %v4620 = vpop.permute.xlu0 %4619
        %4621 = vrot.lane.b32.xlu0 %v4601, 64
        %v4622 = vpop.permute.xlu0 %4621
        %4623 = vrot.lane.b32.xlu0 %v4602, 64
        %v4624 = vpop.permute.xlu0 %4623
        %4625 = vrot.lane.b32.xlu0 %v4603, 64
        %v4626 = vpop.permute.xlu0 %4625
        %4627 = vrot.lane.b32.xlu0 %v4604, 64
        %v4628 = vpop.permute.xlu0 %4627
        %vm4637 = vcmask 589312
        %4638 = vst.msk [vmem:[#allocation5] sm:$0xff] %vm4637, %v4614
        %4639 = vst.msk [vmem:[#allocation5 + $0x8] sm:$0xff] %vm4637, %v4616
        %4640 = vst.msk [vmem:[#allocation5 + $0x10] sm:$0xff] %vm4637, %v4618
        %4641 = vst.msk [vmem:[#allocation5 + $0x18] sm:$0xff] %vm4637, %v4620
        %4642 = vst.msk [vmem:[#allocation5 + $0x20] sm:$0xff] %vm4637, %v4622
        %4643 = vst.msk [vmem:[#allocation5 + $0x28] sm:$0xff] %vm4637, %v4624
        %4644 = vst.msk [vmem:[#allocation5 + $0x30] sm:$0xff] %vm4637, %v4626
        %4645 = vst.msk [vmem:[#allocation5 + $0x38] sm:$0xff] %vm4637, %v4628
        %v4646 = vld [vmem:[#allocation5] sm:$0xff]
        %v4647 = vld [vmem:[#allocation5 + $0x8] sm:$0xff]
        %v4648 = vld [vmem:[#allocation5 + $0x10] sm:$0xff]
        %v4649 = vld [vmem:[#allocation5 + $0x18] sm:$0xff]
        %v4650 = vld [vmem:[#allocation5 + $0x20] sm:$0xff]
        %v4651 = vld [vmem:[#allocation5 + $0x28] sm:$0xff]
        %v4652 = vld [vmem:[#allocation5 + $0x30] sm:$0xff]
        %v4653 = vld [vmem:[#allocation5 + $0x38] sm:$0xff]
        %v4654 = vpack.c.bf16 %v4647, %v4646
        %v4655 = vpack.c.bf16 %v4649, %v4648
        %v4656 = vpack.c.bf16 %v4651, %v4650
        %v4657 = vpack.c.bf16 %v4653, %v4652
        %v4658 = vld [vmem:[%s3] sm:$0xff]
        %v4659 = vld [vmem:[%s3 + $0x8] sm:$0xff]
        %v4660 = vld [vmem:[%s3 + $0x10] sm:$0xff]
        %v4661 = vld [vmem:[%s3 + $0x18] sm:$0xff]
        %v4662 = vld [vmem:[%s3 + $0x20] sm:$0xff]
        %v4663 = vld [vmem:[%s3 + $0x28] sm:$0xff]
        %v4664 = vld [vmem:[%s3 + $0x30] sm:$0xff]
        %v4665 = vld [vmem:[%s3 + $0x38] sm:$0xff]
        %v4666 = vld [vmem:[%s3 + $0x40] sm:$0xff]
        %v4667 = vpack.c.bf16 %v4659, %v4658
        %v4668 = vpack.c.bf16 %v4661, %v4660
        %v4669 = vpack.c.bf16 %v4663, %v4662
        %v4670 = vpack.c.bf16 %v4665, %v4664
        %v4671 = vpack.c.bf16 %v4666, %v4666
        %v4672 = vld [vmem:[%s4] sm:$0x1]
        %v4674 = vlaneseq
        %v4675 = vshrl.u32 %v4674, 7
        %v4676 = vsub.s32 0, %v4675
        %v4677 = vrot.slane %v4672, %v4676
        %vm4679 = vcmask 588800
        %v4681 = vsel %vm4679, %v4654, 0
        %v4684 = vsel %vm4679, %v4655, 0
        %v4687 = vsel %vm4679, %v4656, 0
        %v4690 = vsel %vm4679, %v4657, 0
        %vm4692 = vcmask 1043456
        %v4694 = vsel %vm4692, %v4671, 0
        %4696 = vmatprep.subr.bf16.mxu0 0
        %4697 = vmatpush1.bf16.msra.mxu0 %v4667
        %4698 = vmatprep.subr.bf16.mxu0 0
        %4699 = vmatpush1.bf16.msra.mxu0 %v4668
        %4700 = vmatprep.subr.bf16.mxu0 0
        %4701 = vmatpush1.bf16.msra.mxu0 %v4669
        %4702 = vmatprep.subr.bf16.mxu0 0
        %4703 = vmatpush1.bf16.msra.mxu0 %v4670
        %4704 = vmatprep.subr.bf16.mxu0 0
        %4705 = vmatpush1.bf16.msra.mxu0 %v4694
        %4706 = vmatprep.subr.bf16.mxu0 0
        %4707 = vmatpush1.bf16.msra.mxu0 0
        %4708 = vmatprep.subr.bf16.mxu0 0
        %4709 = vmatpush1.bf16.msra.mxu0 0
        %4710 = vmatprep.subr.bf16.mxu0 0
        %4711 = vmatpush1.bf16.msra.mxu0 0
        %4712 = vmatprep.subr.bf16.mxu0 0
        %4713 = vmatpush1.bf16.msra.mxu0 0
        %4714 = vmatprep.subr.bf16.mxu0 0
        %4715 = vmatpush1.bf16.msra.mxu0 0
        %4716 = vmatprep.subr.bf16.mxu0 0
        %4717 = vmatpush1.bf16.msra.mxu0 0
        %4718 = vmatprep.subr.bf16.mxu0 0
        %4719 = vmatpush1.bf16.msra.mxu0 0
        %4720 = vmatprep.subr.bf16.mxu0 0
        %4721 = vmatpush1.bf16.msra.mxu0 0
        %4722 = vmatprep.subr.bf16.mxu0 0
        %4723 = vmatpush1.bf16.msra.mxu0 0
        %4724 = vmatprep.subr.bf16.mxu0 0
        %4725 = vmatpush1.bf16.msra.mxu0 0
        %4726 = vmatprep.subr.bf16.mxu0 0
        %4727 = vmatpush1.bf16.msra.mxu0 0
        %4728 = vmatprep.mubr.bf16.mxu0 0
        %4729 = vmatmul.mubr.bf16.gmra.mrb[0].mxu0 %v4681
        %v4730 = vpop.f32.mrb[0].mxu0
        %v4731 = vadd.f32 %v4677, %v4730
        %v4732 = vpop.f32.mrb[0].mxu0
        %v4733 = vpop.f32.mrb[0].mxu0
        %v4734 = vadd.f32 %v4677, %v4733
        %v4735 = vpop.f32.mrb[0].mxu0
        %4736 = vmatprep.mubr.bf16.mxu0 0
        %4737 = vmatmul.mubr.bf16.gmra.mrb[0].mxu0 %v4684
        %v4738 = vpop.f32.mrb[0].mxu0
        %v4739 = vadd.f32 %v4677, %v4738
        %v4740 = vpop.f32.mrb[0].mxu0
        %v4741 = vpop.f32.mrb[0].mxu0
        %v4742 = vadd.f32 %v4677, %v4741
        %v4743 = vpop.f32.mrb[0].mxu0
        %4744 = vmatprep.mubr.bf16.mxu0 0
        %4745 = vmatmul.mubr.bf16.gmra.mrb[0].mxu0 %v4687
        %v4746 = vpop.f32.mrb[0].mxu0
        %v4747 = vadd.f32 %v4677, %v4746
        %v4748 = vpop.f32.mrb[0].mxu0
        %v4749 = vpop.f32.mrb[0].mxu0
        %v4750 = vadd.f32 %v4677, %v4749
        %v4751 = vpop.f32.mrb[0].mxu0
        %4752 = vmatprep.mubr.bf16.mxu0 0
        %4753 = vmatmul.mubr.bf16.gmra.mrb[0].mxu0 %v4690
        %v4754 = vpop.f32.mrb[0].mxu0
        %v4755 = vadd.f32 %v4677, %v4754
        %v4756 = vpop.f32.mrb[0].mxu0
        %v4757 = vpop.f32.mrb[0].mxu0
        %v4758 = vadd.f32 %v4677, %v4757
        %v4759 = vpop.f32.mrb[0].mxu0
        %4760 = vdwg.mxu0
        %v4761 = vmax.f32 %v4731, 0.0
        %v4762 = vmax.f32 %v4734, 0.0
        %v4763 = vmax.f32 %v4739, 0.0
        %v4764 = vmax.f32 %v4742, 0.0
        %v4765 = vmax.f32 %v4747, 0.0
        %v4766 = vmax.f32 %v4750, 0.0
        %v4767 = vmax.f32 %v4755, 0.0
        %v4768 = vmax.f32 %v4758, 0.0
        %v4777 = vcombine.high %v4761, %v4761
        %v4779 = vunpack.c.l.s4 1983009808
        %v4780 = vunpack.c.0.s8 %v4779
        %v4781 = vlaneseq
        %v4782 = vshrl.u32 %v4781, 7
        %v4783 = vsub.s32 %v4780, %v4782
        %v4784 = vrot.slane %v4761, %v4783
        %v4786 = vunpack.c.l.s4 1983009808
        %v4787 = vunpack.c.0.s8 %v4786
        %v4788 = vlaneseq
        %v4789 = vshrl.u32 %v4788, 7
        %v4790 = vsub.s32 %v4787, %v4789
        %v4791 = vrot.slane %v4777, %v4790
        %v4792 = vcombine.high %v4784, %v4784
        %v4793 = vcombine.high %v4791, %v4791
        %v4794 = vcombine.high %v4762, %v4762
        %v4796 = vunpack.c.l.s4 1983009808
        %v4797 = vunpack.c.0.s8 %v4796
        %v4798 = vlaneseq
        %v4799 = vshrl.u32 %v4798, 7
        %v4800 = vsub.s32 %v4797, %v4799
        %v4801 = vrot.slane %v4762, %v4800
        %v4803 = vunpack.c.l.s4 1983009808
        %v4804 = vunpack.c.0.s8 %v4803
        %v4805 = vlaneseq
        %v4806 = vshrl.u32 %v4805, 7
        %v4807 = vsub.s32 %v4804, %v4806
        %v4808 = vrot.slane %v4794, %v4807
        %v4809 = vcombine.high %v4801, %v4801
        %v4810 = vcombine.high %v4808, %v4808
        %v4811 = vcombine.high %v4763, %v4763
        %v4813 = vunpack.c.l.s4 1983009808
        %v4814 = vunpack.c.0.s8 %v4813
        %v4815 = vlaneseq
        %v4816 = vshrl.u32 %v4815, 7
        %v4817 = vsub.s32 %v4814, %v4816
        %v4818 = vrot.slane %v4763, %v4817
        %v4820 = vunpack.c.l.s4 1983009808
        %v4821 = vunpack.c.0.s8 %v4820
        %v4822 = vlaneseq
        %v4823 = vshrl.u32 %v4822, 7
        %v4824 = vsub.s32 %v4821, %v4823
        %v4825 = vrot.slane %v4811, %v4824
        %v4826 = vcombine.high %v4818, %v4818
        %v4827 = vcombine.high %v4825, %v4825
        %v4828 = vcombine.high %v4764, %v4764
        %v4830 = vunpack.c.l.s4 1983009808
        %v4831 = vunpack.c.0.s8 %v4830
        %v4832 = vlaneseq
        %v4833 = vshrl.u32 %v4832, 7
        %v4834 = vsub.s32 %v4831, %v4833
        %v4835 = vrot.slane %v4764, %v4834
        %v4837 = vunpack.c.l.s4 1983009808
        %v4838 = vunpack.c.0.s8 %v4837
        %v4839 = vlaneseq
        %v4840 = vshrl.u32 %v4839, 7
        %v4841 = vsub.s32 %v4838, %v4840
        %v4842 = vrot.slane %v4828, %v4841
        %v4843 = vcombine.high %v4835, %v4835
        %v4844 = vcombine.high %v4842, %v4842
        %v4845 = vcombine.high %v4765, %v4765
        %v4847 = vunpack.c.l.s4 1983009808
        %v4848 = vunpack.c.0.s8 %v4847
        %v4849 = vlaneseq
        %v4850 = vshrl.u32 %v4849, 7
        %v4851 = vsub.s32 %v4848, %v4850
        %v4852 = vrot.slane %v4765, %v4851
        %v4854 = vunpack.c.l.s4 1983009808
        %v4855 = vunpack.c.0.s8 %v4854
        %v4856 = vlaneseq
        %v4857 = vshrl.u32 %v4856, 7
        %v4858 = vsub.s32 %v4855, %v4857
        %v4859 = vrot.slane %v4845, %v4858
        %v4860 = vcombine.high %v4852, %v4852
        %v4861 = vcombine.high %v4859, %v4859
        %v4862 = vcombine.high %v4766, %v4766
        %v4864 = vunpack.c.l.s4 1983009808
        %v4865 = vunpack.c.0.s8 %v4864
        %v4866 = vlaneseq
        %v4867 = vshrl.u32 %v4866, 7
        %v4868 = vsub.s32 %v4865, %v4867
        %v4869 = vrot.slane %v4766, %v4868
        %v4871 = vunpack.c.l.s4 1983009808
        %v4872 = vunpack.c.0.s8 %v4871
        %v4873 = vlaneseq
        %v4874 = vshrl.u32 %v4873, 7
        %v4875 = vsub.s32 %v4872, %v4874
        %v4876 = vrot.slane %v4862, %v4875
        %v4877 = vcombine.high %v4869, %v4869
        %v4878 = vcombine.high %v4876, %v4876
        %v4879 = vcombine.high %v4767, %v4767
        %v4881 = vunpack.c.l.s4 1983009808
        %v4882 = vunpack.c.0.s8 %v4881
        %v4883 = vlaneseq
        %v4884 = vshrl.u32 %v4883, 7
        %v4885 = vsub.s32 %v4882, %v4884
        %v4886 = vrot.slane %v4767, %v4885
        %v4888 = vunpack.c.l.s4 1983009808
        %v4889 = vunpack.c.0.s8 %v4888
        %v4890 = vlaneseq
        %v4891 = vshrl.u32 %v4890, 7
        %v4892 = vsub.s32 %v4889, %v4891
        %v4893 = vrot.slane %v4879, %v4892
        %v4894 = vcombine.high %v4886, %v4886
        %v4895 = vcombine.high %v4893, %v4893
        %v4896 = vcombine.high %v4768, %v4768
        %v4898 = vunpack.c.l.s4 1983009808
        %v4899 = vunpack.c.0.s8 %v4898
        %v4900 = vlaneseq
        %v4901 = vshrl.u32 %v4900, 7
        %v4902 = vsub.s32 %v4899, %v4901
        %v4903 = vrot.slane %v4768, %v4902
        %v4905 = vunpack.c.l.s4 1983009808
        %v4906 = vunpack.c.0.s8 %v4905
        %v4907 = vlaneseq
        %v4908 = vshrl.u32 %v4907, 7
        %v4909 = vsub.s32 %v4906, %v4908
        %v4910 = vrot.slane %v4896, %v4909
        %v4911 = vcombine.high %v4903, %v4903
        %v4912 = vcombine.high %v4910, %v4910
        %vm4945 = vcmask 123904
        %v4946 = vsel %vm4945, %v4784, -inf
        %v4947 = vrot.slane %v4946, 4
        %v4948 = vmax.f32 %v4946, %v4947
        %v4949 = vrot.slane %v4948, 2
        %v4950 = vmax.f32 %v4948, %v4949
        %v4951 = vrot.slane %v4950, 1
        %v4952 = vmax.f32 %v4950, %v4951
        %v4953 = vsel %vm4945, %v4792, -inf
        %v4954 = vrot.slane %v4953, 4
        %v4955 = vmax.f32 %v4953, %v4954
        %v4956 = vrot.slane %v4955, 2
        %v4957 = vmax.f32 %v4955, %v4956
        %v4958 = vrot.slane %v4957, 1
        %v4959 = vmax.f32 %v4957, %v4958
        %v4960 = vsel %vm4945, %v4791, -inf
        %v4961 = vrot.slane %v4960, 4
        %v4962 = vmax.f32 %v4960, %v4961
        %v4963 = vrot.slane %v4962, 2
        %v4964 = vmax.f32 %v4962, %v4963
        %v4965 = vrot.slane %v4964, 1
        %v4966 = vmax.f32 %v4964, %v4965
        %v4967 = vsel %vm4945, %v4793, -inf
        %v4968 = vrot.slane %v4967, 4
        %v4969 = vmax.f32 %v4967, %v4968
        %v4970 = vrot.slane %v4969, 2
        %v4971 = vmax.f32 %v4969, %v4970
        %v4972 = vrot.slane %v4971, 1
        %v4973 = vmax.f32 %v4971, %v4972
        %v4974 = vsel %vm4945, %v4801, -inf
        %v4975 = vrot.slane %v4974, 4
        %v4976 = vmax.f32 %v4974, %v4975
        %v4977 = vrot.slane %v4976, 2
        %v4978 = vmax.f32 %v4976, %v4977
        %v4979 = vrot.slane %v4978, 1
        %v4980 = vmax.f32 %v4978, %v4979
        %v4981 = vsel %vm4945, %v4809, -inf
        %v4982 = vrot.slane %v4981, 4
        %v4983 = vmax.f32 %v4981, %v4982
        %v4984 = vrot.slane %v4983, 2
        %v4985 = vmax.f32 %v4983, %v4984
        %v4986 = vrot.slane %v4985, 1
        %v4987 = vmax.f32 %v4985, %v4986
        %v4988 = vsel %vm4945, %v4808, -inf
        %v4989 = vrot.slane %v4988, 4
        %v4990 = vmax.f32 %v4988, %v4989
        %v4991 = vrot.slane %v4990, 2
        %v4992 = vmax.f32 %v4990, %v4991
        %v4993 = vrot.slane %v4992, 1
        %v4994 = vmax.f32 %v4992, %v4993
        %v4995 = vsel %vm4945, %v4810, -inf
        %v4996 = vrot.slane %v4995, 4
        %v4997 = vmax.f32 %v4995, %v4996
        %v4998 = vrot.slane %v4997, 2
        %v4999 = vmax.f32 %v4997, %v4998
        %v5000 = vrot.slane %v4999, 1
        %v5001 = vmax.f32 %v4999, %v5000
        %v5002 = vsel %vm4945, %v4818, -inf
        %v5003 = vrot.slane %v5002, 4
        %v5004 = vmax.f32 %v5002, %v5003
        %v5005 = vrot.slane %v5004, 2
        %v5006 = vmax.f32 %v5004, %v5005
        %v5007 = vrot.slane %v5006, 1
        %v5008 = vmax.f32 %v5006, %v5007
        %v5009 = vsel %vm4945, %v4826, -inf
        %v5010 = vrot.slane %v5009, 4
        %v5011 = vmax.f32 %v5009, %v5010
        %v5012 = vrot.slane %v5011, 2
        %v5013 = vmax.f32 %v5011, %v5012
        %v5014 = vrot.slane %v5013, 1
        %v5015 = vmax.f32 %v5013, %v5014
        %v5016 = vsel %vm4945, %v4825, -inf
        %v5017 = vrot.slane %v5016, 4
        %v5018 = vmax.f32 %v5016, %v5017
        %v5019 = vrot.slane %v5018, 2
        %v5020 = vmax.f32 %v5018, %v5019
        %v5021 = vrot.slane %v5020, 1
        %v5022 = vmax.f32 %v5020, %v5021
        %v5023 = vsel %vm4945, %v4827, -inf
        %v5024 = vrot.slane %v5023, 4
        %v5025 = vmax.f32 %v5023, %v5024
        %v5026 = vrot.slane %v5025, 2
        %v5027 = vmax.f32 %v5025, %v5026
        %v5028 = vrot.slane %v5027, 1
        %v5029 = vmax.f32 %v5027, %v5028
        %v5030 = vsel %vm4945, %v4835, -inf
        %v5031 = vrot.slane %v5030, 4
        %v5032 = vmax.f32 %v5030, %v5031
        %v5033 = vrot.slane %v5032, 2
        %v5034 = vmax.f32 %v5032, %v5033
        %v5035 = vrot.slane %v5034, 1
        %v5036 = vmax.f32 %v5034, %v5035
        %v5037 = vsel %vm4945, %v4843, -inf
        %v5038 = vrot.slane %v5037, 4
        %v5039 = vmax.f32 %v5037, %v5038
        %v5040 = vrot.slane %v5039, 2
        %v5041 = vmax.f32 %v5039, %v5040
        %v5042 = vrot.slane %v5041, 1
        %v5043 = vmax.f32 %v5041, %v5042
        %v5044 = vsel %vm4945, %v4842, -inf
        %v5045 = vrot.slane %v5044, 4
        %v5046 = vmax.f32 %v5044, %v5045
        %v5047 = vrot.slane %v5046, 2
        %v5048 = vmax.f32 %v5046, %v5047
        %v5049 = vrot.slane %v5048, 1
        %v5050 = vmax.f32 %v5048, %v5049
        %v5051 = vsel %vm4945, %v4844, -inf
        %v5052 = vrot.slane %v5051, 4
        %v5053 = vmax.f32 %v5051, %v5052
        %v5054 = vrot.slane %v5053, 2
        %v5055 = vmax.f32 %v5053, %v5054
        %v5056 = vrot.slane %v5055, 1
        %v5057 = vmax.f32 %v5055, %v5056
        %v5058 = vsel %vm4945, %v4852, -inf
        %v5059 = vrot.slane %v5058, 4
        %v5060 = vmax.f32 %v5058, %v5059
        %v5061 = vrot.slane %v5060, 2
        %v5062 = vmax.f32 %v5060, %v5061
        %v5063 = vrot.slane %v5062, 1
        %v5064 = vmax.f32 %v5062, %v5063
        %v5065 = vsel %vm4945, %v4860, -inf
        %v5066 = vrot.slane %v5065, 4
        %v5067 = vmax.f32 %v5065, %v5066
        %v5068 = vrot.slane %v5067, 2
        %v5069 = vmax.f32 %v5067, %v5068
        %v5070 = vrot.slane %v5069, 1
        %v5071 = vmax.f32 %v5069, %v5070
        %v5072 = vsel %vm4945, %v4859, -inf
        %v5073 = vrot.slane %v5072, 4
        %v5074 = vmax.f32 %v5072, %v5073
        %v5075 = vrot.slane %v5074, 2
        %v5076 = vmax.f32 %v5074, %v5075
        %v5077 = vrot.slane %v5076, 1
        %v5078 = vmax.f32 %v5076, %v5077
        %v5079 = vsel %vm4945, %v4861, -inf
        %v5080 = vrot.slane %v5079, 4
        %v5081 = vmax.f32 %v5079, %v5080
        %v5082 = vrot.slane %v5081, 2
        %v5083 = vmax.f32 %v5081, %v5082
        %v5084 = vrot.slane %v5083, 1
        %v5085 = vmax.f32 %v5083, %v5084
        %v5086 = vsel %vm4945, %v4869, -inf
        %v5087 = vrot.slane %v5086, 4
        %v5088 = vmax.f32 %v5086, %v5087
        %v5089 = vrot.slane %v5088, 2
        %v5090 = vmax.f32 %v5088, %v5089
        %v5091 = vrot.slane %v5090, 1
        %v5092 = vmax.f32 %v5090, %v5091
        %v5093 = vsel %vm4945, %v4877, -inf
        %v5094 = vrot.slane %v5093, 4
        %v5095 = vmax.f32 %v5093, %v5094
        %v5096 = vrot.slane %v5095, 2
        %v5097 = vmax.f32 %v5095, %v5096
        %v5098 = vrot.slane %v5097, 1
        %v5099 = vmax.f32 %v5097, %v5098
        %v5100 = vsel %vm4945, %v4876, -inf
        %v5101 = vrot.slane %v5100, 4
        %v5102 = vmax.f32 %v5100, %v5101
        %v5103 = vrot.slane %v5102, 2
        %v5104 = vmax.f32 %v5102, %v5103
        %v5105 = vrot.slane %v5104, 1
        %v5106 = vmax.f32 %v5104, %v5105
        %v5107 = vsel %vm4945, %v4878, -inf
        %v5108 = vrot.slane %v5107, 4
        %v5109 = vmax.f32 %v5107, %v5108
        %v5110 = vrot.slane %v5109, 2
        %v5111 = vmax.f32 %v5109, %v5110
        %v5112 = vrot.slane %v5111, 1
        %v5113 = vmax.f32 %v5111, %v5112
        %v5114 = vsel %vm4945, %v4886, -inf
        %v5115 = vrot.slane %v5114, 4
        %v5116 = vmax.f32 %v5114, %v5115
        %v5117 = vrot.slane %v5116, 2
        %v5118 = vmax.f32 %v5116, %v5117
        %v5119 = vrot.slane %v5118, 1
        %v5120 = vmax.f32 %v5118, %v5119
        %v5121 = vsel %vm4945, %v4894, -inf
        %v5122 = vrot.slane %v5121, 4
        %v5123 = vmax.f32 %v5121, %v5122
        %v5124 = vrot.slane %v5123, 2
        %v5125 = vmax.f32 %v5123, %v5124
        %v5126 = vrot.slane %v5125, 1
        %v5127 = vmax.f32 %v5125, %v5126
        %v5128 = vsel %vm4945, %v4893, -inf
        %v5129 = vrot.slane %v5128, 4
        %v5130 = vmax.f32 %v5128, %v5129
        %v5131 = vrot.slane %v5130, 2
        %v5132 = vmax.f32 %v5130, %v5131
        %v5133 = vrot.slane %v5132, 1
        %v5134 = vmax.f32 %v5132, %v5133
        %v5135 = vsel %vm4945, %v4895, -inf
        %v5136 = vrot.slane %v5135, 4
        %v5137 = vmax.f32 %v5135, %v5136
        %v5138 = vrot.slane %v5137, 2
        %v5139 = vmax.f32 %v5137, %v5138
        %v5140 = vrot.slane %v5139, 1
        %v5141 = vmax.f32 %v5139, %v5140
        %v5142 = vsel %vm4945, %v4903, -inf
        %v5143 = vrot.slane %v5142, 4
        %v5144 = vmax.f32 %v5142, %v5143
        %v5145 = vrot.slane %v5144, 2
        %v5146 = vmax.f32 %v5144, %v5145
        %v5147 = vrot.slane %v5146, 1
        %v5148 = vmax.f32 %v5146, %v5147
        %v5149 = vsel %vm4945, %v4911, -inf
        %v5150 = vrot.slane %v5149, 4
        %v5151 = vmax.f32 %v5149, %v5150
        %v5152 = vrot.slane %v5151, 2
        %v5153 = vmax.f32 %v5151, %v5152
        %v5154 = vrot.slane %v5153, 1
        %v5155 = vmax.f32 %v5153, %v5154
        %v5156 = vsel %vm4945, %v4910, -inf
        %v5157 = vrot.slane %v5156, 4
        %v5158 = vmax.f32 %v5156, %v5157
        %v5159 = vrot.slane %v5158, 2
        %v5160 = vmax.f32 %v5158, %v5159
        %v5161 = vrot.slane %v5160, 1
        %v5162 = vmax.f32 %v5160, %v5161
        %v5163 = vsel %vm4945, %v4912, -inf
        %v5164 = vrot.slane %v5163, 4
        %v5165 = vmax.f32 %v5163, %v5164
        %v5166 = vrot.slane %v5165, 2
        %v5167 = vmax.f32 %v5165, %v5166
        %v5168 = vrot.slane %v5167, 1
        %v5169 = vmax.f32 %v5167, %v5168
        %v5170 = vmax.f32 %v4952, %v4980
        %v5171 = vmax.f32 %v4959, %v4987
        %v5172 = vmax.f32 %v4966, %v4994
        %v5173 = vmax.f32 %v4973, %v5001
        %v5174 = vmax.f32 %v5008, %v5036
        %v5175 = vmax.f32 %v5015, %v5043
        %v5176 = vmax.f32 %v5022, %v5050
        %v5177 = vmax.f32 %v5029, %v5057
        %v5178 = vmax.f32 %v5064, %v5092
        %v5179 = vmax.f32 %v5071, %v5099
        %v5180 = vmax.f32 %v5078, %v5106
        %v5181 = vmax.f32 %v5085, %v5113
        %v5182 = vmax.f32 %v5120, %v5148
        %v5183 = vmax.f32 %v5127, %v5155
        %v5184 = vmax.f32 %v5134, %v5162
        %v5185 = vmax.f32 %v5141, %v5169
        %v5202 = vsel %vm4157, %v5171, %v5170
        %v5203 = vsel %vm4159, %v5172, %v5202
        %v5204 = vsel %vm4161, %v5173, %v5203
        %v5205 = vsel %vm4163, %v5174, %v5204
        %v5206 = vsel %vm4165, %v5175, %v5205
        %v5207 = vsel %vm4167, %v5176, %v5206
        %v5208 = vsel %vm4169, %v5177, %v5207
        %v5209 = vsel %vm4157, %v5179, %v5178
        %v5210 = vsel %vm4159, %v5180, %v5209
        %v5211 = vsel %vm4161, %v5181, %v5210
        %v5212 = vsel %vm4163, %v5182, %v5211
        %v5213 = vsel %vm4165, %v5183, %v5212
        %v5214 = vsel %vm4167, %v5184, %v5213
        %v5215 = vsel %vm4169, %v5185, %v5214
        %5218 = vxpose.xlu0.b32.start [1/16] %v5208, 128
        %5219 = vxpose.xlu0.b32.cont [2/16] %v5215, 128
        %5220 = vxpose.xlu0.b32.cont [3/16] 0.0, 128
        %5221 = vxpose.xlu0.b32.cont [4/16] 0.0, 128
        %5222 = vxpose.xlu0.b32.cont [5/16] 0.0, 128
        %5223 = vxpose.xlu0.b32.cont [6/16] 0.0, 128
        %5224 = vxpose.xlu0.b32.cont [7/16] 0.0, 128
        %5225 = vxpose.xlu0.b32.cont [8/16] 0.0, 128
        %5226 = vxpose.xlu0.b32.cont [9/16] 0.0, 128
        %5227 = vxpose.xlu0.b32.cont [10/16] 0.0, 128
        %5228 = vxpose.xlu0.b32.cont [11/16] 0.0, 128
        %5229 = vxpose.xlu0.b32.cont [12/16] 0.0, 128
        %5230 = vxpose.xlu0.b32.cont [13/16] 0.0, 128
        %5231 = vxpose.xlu0.b32.cont [14/16] 0.0, 128
        %5232 = vxpose.xlu0.b32.cont [15/16] 0.0, 128
        %5233 = vxpose.xlu0.b32.end [16/16] 0.0, 128
        %v5234 = vpop.trf.xlu0
        %v5235 = vpop.trf.xlu0
        %v5236 = vpop.trf.xlu0
        %v5237 = vpop.trf.xlu0
        %v5238 = vpop.trf.xlu0
        %v5239 = vpop.trf.xlu0
        %v5240 = vpop.trf.xlu0
        %v5241 = vpop.trf.xlu0
        %v5242 = vpop.trf.xlu0
        %v5243 = vpop.trf.xlu0
        %v5244 = vpop.trf.xlu0
        %v5245 = vpop.trf.xlu0
        %v5246 = vpop.trf.xlu0
        %v5247 = vpop.trf.xlu0
        %v5248 = vpop.trf.xlu0
        %v5249 = vpop.trf.xlu0
        %v5250 = vlaneseq
        %vm5251 = vcmp.ge.s32.totalorder %v5250, 0
        %vm5252 = vcmp.lt.s32.totalorder %v5250, 16
        %vm5253 = vmand %vm5251, %vm5252
        %5254 = vst.msk [vmem:[#allocation6] sm:$0x1] %vm5253, %v5234
        %v5257 = vunpack.c.l.s4 1966171168
        %v5258 = vunpack.c.0.s8 %v5257
        %v5259 = vlaneseq
        %v5260 = vshrl.u32 %v5259, 7
        %v5261 = vsub.s32 %v5258, %v5260
        %v5262 = vrot.slane %v5234, %v5261
        %v5263 = vcombine.high %v5262, %v5262
        %v5265 = vunpack.c.l.s4 1966171168
        %v5266 = vunpack.c.0.s8 %v5265
        %v5267 = vlaneseq
        %v5268 = vshrl.u32 %v5267, 7
        %v5269 = vsub.s32 %v5266, %v5268
        %v5270 = vrot.slane %v5262, %v5269
        %v5272 = vunpack.c.l.s4 1966171168
        %v5273 = vunpack.c.0.s8 %v5272
        %v5274 = vlaneseq
        %v5275 = vshrl.u32 %v5274, 7
        %v5276 = vsub.s32 %v5273, %v5275
        %v5277 = vrot.slane %v5263, %v5276
        %5278 = vrot.lane.b32.xlu0 %v5277, 16
        %v5279 = vpop.permute.xlu0 %5278
        %vm5281 = vcmp.ge.s32.totalorder %v5250, 16
        %vm5282 = vcmp.lt.s32.totalorder %v5250, 32
        %vm5283 = vmand %vm5281, %vm5282
        %5284 = vst.msk [vmem:[#allocation6] sm:$0x1] %vm5283, %v5279
        %v5285 = vcombine.high %v5270, %v5270
        %5286 = vrot.lane.b32.xlu0 %v5285, 32
        %v5287 = vpop.permute.xlu0 %5286
        %vm5289 = vcmp.ge.s32.totalorder %v5250, 32
        %vm5290 = vcmp.lt.s32.totalorder %v5250, 48
        %vm5291 = vmand %vm5289, %vm5290
        %5292 = vst.msk [vmem:[#allocation6] sm:$0x1] %vm5291, %v5287
        %v5293 = vcombine.high %v5277, %v5277
        %5294 = vrot.lane.b32.xlu0 %v5293, 48
        %v5295 = vpop.permute.xlu0 %5294
        %vm5297 = vcmp.ge.s32.totalorder %v5250, 48
        %vm5298 = vcmp.lt.s32.totalorder %v5250, 64
        %vm5299 = vmand %vm5297, %vm5298
        %5300 = vst.msk [vmem:[#allocation6] sm:$0x1] %vm5299, %v5295
        %v5301 = vcombine.high %v5234, %v5234
        %v5303 = vunpack.c.l.s4 1966171168
        %v5304 = vunpack.c.0.s8 %v5303
        %v5305 = vlaneseq
        %v5306 = vshrl.u32 %v5305, 7
        %v5307 = vsub.s32 %v5304, %v5306
        %v5308 = vrot.slane %v5301, %v5307
        %v5310 = vunpack.c.l.s4 1966171168
        %v5311 = vunpack.c.0.s8 %v5310
        %v5312 = vlaneseq
        %v5313 = vshrl.u32 %v5312, 7
        %v5314 = vsub.s32 %v5311, %v5313
        %v5315 = vrot.slane %v5308, %v5314
        %5316 = vrot.lane.b32.xlu0 %v5315, 64
        %v5317 = vpop.permute.xlu0 %5316
        %vm5319 = vcmp.ge.s32.totalorder %v5250, 64
        %vm5320 = vcmp.lt.s32.totalorder %v5250, 80
        %vm5321 = vmand %vm5319, %vm5320
        %5322 = vst.msk [vmem:[#allocation6] sm:$0x1] %vm5321, %v5317
        %v5323 = vcombine.high %v5308, %v5308
        %v5325 = vunpack.c.l.s4 1966171168
        %v5326 = vunpack.c.0.s8 %v5325
        %v5327 = vlaneseq
        %v5328 = vshrl.u32 %v5327, 7
        %v5329 = vsub.s32 %v5326, %v5328
        %v5330 = vrot.slane %v5323, %v5329
        %5331 = vrot.lane.b32.xlu0 %v5330, 80
        %v5332 = vpop.permute.xlu0 %5331
        %vm5334 = vcmp.ge.s32.totalorder %v5250, 80
        %vm5335 = vcmp.lt.s32.totalorder %v5250, 96
        %vm5336 = vmand %vm5334, %vm5335
        %5337 = vst.msk [vmem:[#allocation6] sm:$0x1] %vm5336, %v5332
        %v5338 = vcombine.high %v5315, %v5315
        %5339 = vrot.lane.b32.xlu0 %v5338, 96
        %v5340 = vpop.permute.xlu0 %5339
        %vm5342 = vcmp.ge.s32.totalorder %v5250, 96
        %vm5343 = vcmp.lt.s32.totalorder %v5250, 112
        %vm5344 = vmand %vm5342, %vm5343
        %5345 = vst.msk [vmem:[#allocation6] sm:$0x1] %vm5344, %v5340
        %v5346 = vcombine.high %v5330, %v5330
        %5347 = vrot.lane.b32.xlu0 %v5346, 112
        %v5348 = vpop.permute.xlu0 %5347
        %vm5350 = vcmp.ge.s32.totalorder %v5250, 112
        %vm5351 = vcmp.lt.s32.totalorder %v5250, 128
        %vm5352 = vmand %vm5350, %vm5351
        %5353 = vst.msk [vmem:[#allocation6] sm:$0x1] %vm5352, %v5348
        %5354 = vst.msk [vmem:[#allocation6 + $0x1] sm:$0x1] %vm5253, %v5235
        %v5357 = vunpack.c.l.s4 1966171168
        %v5358 = vunpack.c.0.s8 %v5357
        %v5359 = vlaneseq
        %v5360 = vshrl.u32 %v5359, 7
        %v5361 = vsub.s32 %v5358, %v5360
        %v5362 = vrot.slane %v5235, %v5361
        %v5363 = vcombine.high %v5362, %v5362
        %v5365 = vunpack.c.l.s4 1966171168
        %v5366 = vunpack.c.0.s8 %v5365
        %v5367 = vlaneseq
        %v5368 = vshrl.u32 %v5367, 7
        %v5369 = vsub.s32 %v5366, %v5368
        %v5370 = vrot.slane %v5362, %v5369
        %v5372 = vunpack.c.l.s4 1966171168
        %v5373 = vunpack.c.0.s8 %v5372
        %v5374 = vlaneseq
        %v5375 = vshrl.u32 %v5374, 7
        %v5376 = vsub.s32 %v5373, %v5375
        %v5377 = vrot.slane %v5363, %v5376
        %5378 = vrot.lane.b32.xlu0 %v5377, 16
        %v5379 = vpop.permute.xlu0 %5378
        %5381 = vst.msk [vmem:[#allocation6 + $0x1] sm:$0x1] %vm5283, %v5379
        %v5382 = vcombine.high %v5370, %v5370
        %5383 = vrot.lane.b32.xlu0 %v5382, 32
        %v5384 = vpop.permute.xlu0 %5383
        %5386 = vst.msk [vmem:[#allocation6 + $0x1] sm:$0x1] %vm5291, %v5384
        %v5387 = vcombine.high %v5377, %v5377
        %5388 = vrot.lane.b32.xlu0 %v5387, 48
        %v5389 = vpop.permute.xlu0 %5388
        %5391 = vst.msk [vmem:[#allocation6 + $0x1] sm:$0x1] %vm5299, %v5389
        %v5392 = vcombine.high %v5235, %v5235
        %v5394 = vunpack.c.l.s4 1966171168
        %v5395 = vunpack.c.0.s8 %v5394
        %v5396 = vlaneseq
        %v5397 = vshrl.u32 %v5396, 7
        %v5398 = vsub.s32 %v5395, %v5397
        %v5399 = vrot.slane %v5392, %v5398
        %v5401 = vunpack.c.l.s4 1966171168
        %v5402 = vunpack.c.0.s8 %v5401
        %v5403 = vlaneseq
        %v5404 = vshrl.u32 %v5403, 7
        %v5405 = vsub.s32 %v5402, %v5404
        %v5406 = vrot.slane %v5399, %v5405
        %5407 = vrot.lane.b32.xlu0 %v5406, 64
        %v5408 = vpop.permute.xlu0 %5407
        %5410 = vst.msk [vmem:[#allocation6 + $0x1] sm:$0x1] %vm5321, %v5408
        %v5411 = vcombine.high %v5399, %v5399
        %v5413 = vunpack.c.l.s4 1966171168
        %v5414 = vunpack.c.0.s8 %v5413
        %v5415 = vlaneseq
        %v5416 = vshrl.u32 %v5415, 7
        %v5417 = vsub.s32 %v5414, %v5416
        %v5418 = vrot.slane %v5411, %v5417
        %5419 = vrot.lane.b32.xlu0 %v5418, 80
        %v5420 = vpop.permute.xlu0 %5419
        %5422 = vst.msk [vmem:[#allocation6 + $0x1] sm:$0x1] %vm5336, %v5420
        %v5423 = vcombine.high %v5406, %v5406
        %5424 = vrot.lane.b32.xlu0 %v5423, 96
        %v5425 = vpop.permute.xlu0 %5424
        %5427 = vst.msk [vmem:[#allocation6 + $0x1] sm:$0x1] %vm5344, %v5425
        %v5428 = vcombine.high %v5418, %v5418
        %5429 = vrot.lane.b32.xlu0 %v5428, 112
        %v5430 = vpop.permute.xlu0 %5429
        %5432 = vst.msk [vmem:[#allocation6 + $0x1] sm:$0x1] %vm5352, %v5430
        %v5433 = vld [vmem:[#allocation6] sm:$0x3]
        %v5435 = vlaneseq
        %v5436 = vshrl.u32 %v5435, 7
        %v5437 = vsub.s32 0, %v5436
        %v5438 = vrot.slane %v5433, %v5437
        %v5439 = vlaneseq
        %v5440 = vshrl.u32 %v5439, 7
        %v5441 = vsub.s32 1, %v5440
        %v5442 = vrot.slane %v5433, %v5441
        %v5445 = vpack.c.bf16 %v5438, %v5438
        %v5446 = vpack.c.bf16 %v5442, %v5442
        %v5447 = vld [vmem:[%s5] sm:$0xff]
        %v5448 = vld [vmem:[%s5 + $0x8] sm:$0xff]
        %v5449 = vld [vmem:[%s5 + $0x10] sm:$0xff]
        %v5450 = vld [vmem:[%s5 + $0x18] sm:$0xff]
        %v5451 = vld [vmem:[%s5 + $0x20] sm:$0xff]
        %v5452 = vld [vmem:[%s5 + $0x28] sm:$0xff]
        %v5453 = vld [vmem:[%s5 + $0x30] sm:$0xff]
        %v5454 = vld [vmem:[%s5 + $0x38] sm:$0xff]
        %v5455 = vld [vmem:[%s5 + $0x40] sm:$0xff]
        %v5456 = vld [vmem:[%s5 + $0x48] sm:$0xff]
        %v5457 = vld [vmem:[%s5 + $0x50] sm:$0xff]
        %v5458 = vld [vmem:[%s5 + $0x58] sm:$0xff]
        %v5459 = vld [vmem:[%s5 + $0x60] sm:$0xff]
        %v5460 = vld [vmem:[%s5 + $0x68] sm:$0xff]
        %v5461 = vld [vmem:[%s5 + $0x70] sm:$0xff]
        %v5462 = vld [vmem:[%s5 + $0x78] sm:$0xff]
        %v5463 = vld [vmem:[%s5 + $0x80] sm:$0xff]
        %v5464 = vld [vmem:[%s5 + $0x88] sm:$0xff]
        %v5465 = vld [vmem:[%s5 + $0x90] sm:$0xff]
        %v5466 = vld [vmem:[%s5 + $0x98] sm:$0xff]
        %v5467 = vld [vmem:[%s5 + $0xa0] sm:$0xff]
        %v5468 = vld [vmem:[%s5 + $0xa8] sm:$0xff]
        %v5469 = vld [vmem:[%s5 + $0xb0] sm:$0xff]
        %v5470 = vld [vmem:[%s5 + $0xb8] sm:$0xff]
        %v5471 = vld [vmem:[%s5 + $0xc0] sm:$0xff]
        %v5472 = vld [vmem:[%s5 + $0xc8] sm:$0xff]
        %v5473 = vld [vmem:[%s5 + $0xd0] sm:$0xff]
        %v5474 = vld [vmem:[%s5 + $0xd8] sm:$0xff]
        %v5475 = vld [vmem:[%s5 + $0xe0] sm:$0xff]
        %v5476 = vld [vmem:[%s5 + $0xe8] sm:$0xff]
        %v5477 = vld [vmem:[%s5 + $0xf0] sm:$0xff]
        %v5478 = vld [vmem:[%s5 + $0xf8] sm:$0xff]
        %v5479 = vpack.c.bf16 %v5448, %v5447
        %v5480 = vpack.c.bf16 %v5450, %v5449
        %v5481 = vpack.c.bf16 %v5452, %v5451
        %v5482 = vpack.c.bf16 %v5454, %v5453
        %v5483 = vpack.c.bf16 %v5456, %v5455
        %v5484 = vpack.c.bf16 %v5458, %v5457
        %v5485 = vpack.c.bf16 %v5460, %v5459
        %v5486 = vpack.c.bf16 %v5462, %v5461
        %v5487 = vpack.c.bf16 %v5464, %v5463
        %v5488 = vpack.c.bf16 %v5466, %v5465
        %v5489 = vpack.c.bf16 %v5468, %v5467
        %v5490 = vpack.c.bf16 %v5470, %v5469
        %v5491 = vpack.c.bf16 %v5472, %v5471
        %v5492 = vpack.c.bf16 %v5474, %v5473
        %v5493 = vpack.c.bf16 %v5476, %v5475
        %v5494 = vpack.c.bf16 %v5478, %v5477
        %v5495 = vld [vmem:[%s6] sm:$0x1]
        %5496 = vmatprep.subr.bf16.mxu0 0
        %5497 = vmatpush1.bf16.msra.mxu0 %v5479
        %5498 = vmatprep.subr.bf16.mxu0 0
        %5499 = vmatpush1.bf16.msra.mxu0 %v5480
        %5500 = vmatprep.subr.bf16.mxu0 0
        %5501 = vmatpush1.bf16.msra.mxu0 %v5481
        %5502 = vmatprep.subr.bf16.mxu0 0
        %5503 = vmatpush1.bf16.msra.mxu0 %v5482
        %5504 = vmatprep.subr.bf16.mxu0 0
        %5505 = vmatpush1.bf16.msra.mxu0 %v5483
        %5506 = vmatprep.subr.bf16.mxu0 0
        %5507 = vmatpush1.bf16.msra.mxu0 %v5484
        %5508 = vmatprep.subr.bf16.mxu0 0
        %5509 = vmatpush1.bf16.msra.mxu0 %v5485
        %5510 = vmatprep.subr.bf16.mxu0 0
        %5511 = vmatpush1.bf16.msra.mxu0 %v5486
        %5512 = vmatprep.subr.bf16.mxu0 0
        %5513 = vmatpush1.bf16.msra.mxu0 %v5487
        %5514 = vmatprep.subr.bf16.mxu0 0
        %5515 = vmatpush1.bf16.msra.mxu0 %v5488
        %5516 = vmatprep.subr.bf16.mxu0 0
        %5517 = vmatpush1.bf16.msra.mxu0 %v5489
        %5518 = vmatprep.subr.bf16.mxu0 0
        %5519 = vmatpush1.bf16.msra.mxu0 %v5490
        %5520 = vmatprep.subr.bf16.mxu0 0
        %5521 = vmatpush1.bf16.msra.mxu0 %v5491
        %5522 = vmatprep.subr.bf16.mxu0 0
        %5523 = vmatpush1.bf16.msra.mxu0 %v5492
        %5524 = vmatprep.subr.bf16.mxu0 0
        %5525 = vmatpush1.bf16.msra.mxu0 %v5493
        %5526 = vmatprep.subr.bf16.mxu0 0
        %5527 = vmatpush1.bf16.msra.mxu0 %v5494
        %5528 = vmatprep.mubr.bf16.mxu0 %v5446
        %5529 = vmatmul.mubr.bf16.gmra.mrb[0].mxu0 %v5445
        %v5530 = vpop.f32.mrb[0].mxu0
        %v5531 = vadd.f32 %v5495, %v5530
        %v5532 = vpop.f32.mrb[0].mxu0
        %v5533 = vpop.f32.mrb[0].mxu0
        %v5534 = vpop.f32.mrb[0].mxu0
        %5535 = vdwg.mxu0
        %v5536 = vmax.f32 %v5531, 0.0
        %vm5537 = vcmask 253952
        %5538 = vst.msk [vmem:[%s361] sm:$0x1] %vm5537, %v5536
        %v5539 = vpack.c.bf16 %v5536, %v5536
        %v5540 = vld [vmem:[%s7] sm:$0xff]
        %v5541 = vld [vmem:[%s7 + $0x8] sm:$0xff]
        %v5542 = vld [vmem:[%s7 + $0x10] sm:$0xff]
        %v5543 = vld [vmem:[%s7 + $0x18] sm:$0xff]
        %v5544 = vpack.c.bf16 %v5541, %v5540
        %v5545 = vpack.c.bf16 %v5543, %v5542
        %v5546 = vld [vmem:[%s8] sm:$0x1]
        %vm5547 = vcmask 261120
        %v5549 = vsel %vm5547, %v5539, 0
        %5551 = vmatprep.subr.bf16.mxu0 0
        %5552 = vmatpush1.bf16.msra.mxu0 %v5544
        %5553 = vmatprep.subr.bf16.mxu0 0
        %5554 = vmatpush1.bf16.msra.mxu0 %v5545
        %5555 = vmatprep.subr.bf16.mxu0 0
        %5556 = vmatpush1.bf16.msra.mxu0 0
        %5557 = vmatprep.subr.bf16.mxu0 0
        %5558 = vmatpush1.bf16.msra.mxu0 0
        %5559 = vmatprep.subr.bf16.mxu0 0
        %5560 = vmatpush1.bf16.msra.mxu0 0
        %5561 = vmatprep.subr.bf16.mxu0 0
        %5562 = vmatpush1.bf16.msra.mxu0 0
        %5563 = vmatprep.subr.bf16.mxu0 0
        %5564 = vmatpush1.bf16.msra.mxu0 0
        %5565 = vmatprep.subr.bf16.mxu0 0
        %5566 = vmatpush1.bf16.msra.mxu0 0
        %5567 = vmatprep.subr.bf16.mxu0 0
        %5568 = vmatpush1.bf16.msra.mxu0 0
        %5569 = vmatprep.subr.bf16.mxu0 0
        %5570 = vmatpush1.bf16.msra.mxu0 0
        %5571 = vmatprep.subr.bf16.mxu0 0
        %5572 = vmatpush1.bf16.msra.mxu0 0
        %5573 = vmatprep.subr.bf16.mxu0 0
        %5574 = vmatpush1.bf16.msra.mxu0 0
        %5575 = vmatprep.subr.bf16.mxu0 0
        %5576 = vmatpush1.bf16.msra.mxu0 0
        %5577 = vmatprep.subr.bf16.mxu0 0
        %5578 = vmatpush1.bf16.msra.mxu0 0
        %5579 = vmatprep.subr.bf16.mxu0 0
        %5580 = vmatpush1.bf16.msra.mxu0 0
        %5581 = vmatprep.subr.bf16.mxu0 0
        %5582 = vmatpush1.bf16.msra.mxu0 0
        %5583 = vmatprep.mubr.bf16.mxu0 0
        %5584 = vmatmul.mubr.bf16.gmra.mrb[0].mxu0 %v5549
        %v5585 = vpop.f32.mrb[0].mxu0
        %v5586 = vadd.f32 %v5546, %v5585
        %v5587 = vpop.f32.mrb[0].mxu0
        %v5588 = vpop.f32.mrb[0].mxu0
        %v5589 = vpop.f32.mrb[0].mxu0
        %5590 = vdwg.mxu0
        %vm5591 = vcmask 73728
        %5592 = vst.msk [vmem:[%s355] sm:$0x1] %vm5591, %v5586
        %s5593 = sand.u32 %s230, 1
        %s5594 = scalar_lea.sflag [#allocation8], %s5593
        %s5595 = sand.u32 %s230, 1
        %s5596 = scalar_lea.vmem [#allocation7], %s5595
        %s5597 = sand.u32 %s256, 1
        %s5598 = scalar_lea.sflag [#allocation10], %s5597
        %s5599 = sand.u32 %s256, 1
        %s5600 = scalar_lea.vmem [#allocation9], %s5599
        // Predicated region
        $region57: #{conv_lin_seq_forward.1} parent=55 // pred_check
          %p5601 = pneg %p240
        $region58: #{conv_lin_seq_forward.1} parent=55 // pred_check_branch
          %5603 = sbr.rel (%p5601) target = $region60
        $region59: #{conv_lin_seq_forward.1} parent=55 // pred_region
          %s5605 = ssub.s32 16, 16
          %5606 = vsyncadd %s5594, %s5605
          %s5607 = smul.addr %s28, 16
          %s5608 = scalar_lea.hbm %s9, %s5607
          %s5610 = sshll.u32 %s5596, 4
          %s5611 = int_to_ptr.vmem [resolvable:$true] %s5610
          %5613 = dma.vmem_to_hbm [thread:$0]  %s5611, 16, %s5608, %s5594
        $region60: #{conv_lin_seq_forward.1} parent=55 // pred_fallthru
          _
        // Predicated region
        $region61: #{conv_lin_seq_forward.1} parent=55 // pred_check
          %p5614 = pneg %p266
        $region62: #{conv_lin_seq_forward.1} parent=55 // pred_check_branch
          %5616 = sbr.rel (%p5614) target = $region64
        $region63: #{conv_lin_seq_forward.1} parent=55 // pred_region
          %s5618 = ssub.s32 16, 16
          %5619 = vsyncadd %s5598, %s5618
          %s5620 = smul.addr %s28, 16
          %s5621 = scalar_lea.hbm %s10, %s5620
          %s5623 = sshll.u32 %s5600, 4
          %s5624 = int_to_ptr.vmem [resolvable:$true] %s5623
          %5626 = dma.vmem_to_hbm [thread:$0]  %s5624, 16, %s5621, %s5598
        $region64: #{conv_lin_seq_forward.1} parent=55 // pred_fallthru
          _
      $region56: #{conv_lin_seq_forward.1} parent=5 // pred_fallthru
        _
      %p5627 = scmp.le.s32.totalorder 2, %s23
      // Predicated region
      $region65: #{conv_lin_seq_forward.1} parent=5 // pred_check
        %p5628 = pneg %p5627
      $region66: #{conv_lin_seq_forward.1} parent=5 // pred_check_branch
        %5630 = sbr.rel (%p5628) target = $region68
      $region67: #{conv_lin_seq_forward.1} parent=5 // pred_region
        %s5631 = ssub.s32 %s23, 2
        // Predicated region
        $region69: #{conv_lin_seq_forward.1} parent=67 // pred_check
          %p5632 = pneg %p246
        $region70: #{conv_lin_seq_forward.1} parent=67 // pred_check_branch
          %5634 = sbr.rel (%p5632) target = $region72
        $region71: #{conv_lin_seq_forward.1} parent=67 // pred_region
          %s5635 = sand.u32 %s231, 1
          %s5636 = scalar_lea.sflag [#allocation8], %s5635
          %s5637 = sand.u32 %s231, 1
          %s5638 = scalar_lea.vmem [#allocation7], %s5637
          %5639 = dma.done %s5636, 16
        $region72: #{conv_lin_seq_forward.1} parent=67 // pred_fallthru
          _
        // Predicated region
        $region73: #{conv_lin_seq_forward.1} parent=67 // pred_check
          %p5640 = pneg %p272
        $region74: #{conv_lin_seq_forward.1} parent=67 // pred_check_branch
          %5642 = sbr.rel (%p5640) target = $region76
        $region75: #{conv_lin_seq_forward.1} parent=67 // pred_region
          %s5643 = sand.u32 %s257, 1
          %s5644 = scalar_lea.sflag [#allocation10], %s5643
          %s5645 = sand.u32 %s257, 1
          %s5646 = scalar_lea.vmem [#allocation9], %s5645
          %5647 = dma.done %s5644, 16
        $region76: #{conv_lin_seq_forward.1} parent=67 // pred_fallthru
          _
      $region68: #{conv_lin_seq_forward.1} parent=5 // pred_fallthru
        _
    $region6: #{conv_lin_seq_forward.1} parent=1 // loop_footer
      %s27 = sadd.s32 1, %s23
    $region7: #{conv_lin_seq_forward.1} parent=1 // loop_footer_branch
      %22 = sbr.rel target = $region3
    $region8: #{conv_lin_seq_forward.1} parent=1 // loop_exit
      _
    %5648 = vsyncpa [#allocation8], 1
    %s5649 = scalar_lea.sflag [#allocation8], 1
    %5650 = vsyncpa %s5649, 1
    %5651 = vsyncpa [#allocation10], 1
    %s5652 = scalar_lea.sflag [#allocation10], 1
    %5653 = vsyncpa %s5652, 1

</llo_original>
